<compile_context>
chip_gen: v5e
topology: v5e:2x2
jax: 0.10.0
libtpu: 0.0.40
codegen_flags: <defaults>
</compile_context>

<pallas_src>
import functools
import math

import jax
import jax.numpy as jnp
from jax.experimental import pallas as pl
from jax.experimental.pallas import tpu as pltpu


# Pipeline-buffer VMEM budget (per pallas_call): safe under v5e's 16 MiB default
# scoped limit and far under the 32 MiB default on v6e/v7x (64 MiB physical/TC on v7x).
_VMEM_TILE_BUDGET = 16 << 20
_VMEM_LIMIT_BYTES = 32 << 20
# Below this output size, skip Pallas entirely (launch + DMA dwarfs the compute).
_MIN_PALLAS_OUT_BYTES = 512 * 1024
_MAX_TILE_ROWS = 4096


def _round_up(n, m):
    return ((n + m - 1) // m) * m


# ----------------------------- kernels ----------------------------------- #

def _sinusoidal_kernel(x_ref, f_ref, o_ref, *, half):
    # x_ref: [tile, 1] f32, f_ref: [1, half] f32 (scale folded in),
    # o_ref: [tile, 2*half].  half % 128 == 0 -> both stores lane-aligned.
    e = x_ref[...] * f_ref[...]                                   # [tile, half]
    o_ref[:, :half] = jnp.sin(e).astype(o_ref.dtype)
    o_ref[:, half:] = jnp.cos(e).astype(o_ref.dtype)


def _learnable_kernel(x_ref, w_ref, b_ref, o_ref):
    # x_ref: [tile, 1], w_ref/b_ref: [1, size] (1/size folded into w), o_ref: [tile, size]
    o_ref[...] = (x_ref[...] * w_ref[...] + b_ref[...]).astype(o_ref.dtype)


# ----------------------------- tiled launcher ------------------------------ #

def _row_tiled_call(kernel, x2, extra_inputs, extra_specs, out_width, out_dtype,
                    cost_estimate):
    """Run `kernel` over a row-tiled grid: x2 is [N, 1], output is [N, out_width]."""
    n = x2.shape[0]
    out_bytes = jnp.dtype(out_dtype).itemsize
    row_align = 8 if out_bytes >= 4 else 16          # packed sublanes for bf16/f16

    # VMEM per row: double-buffered output + one f32-wide intermediate + x dbuf.
    per_row = 2 * out_width * out_bytes + out_width * 4 + 16
    tile = max(row_align, (_VMEM_TILE_BUDGET // per_row) // row_align * row_align)
    tile = min(tile, _MAX_TILE_ROWS)
    # Ensure >= 2 grid programs whenever possible so v7x's 2nd TensorCore has work.
    tile = min(tile, _round_up(pl.cdiv(n, 2), row_align))

    grid = (pl.cdiv(n, tile),)                        # ragged last block: Pallas masks
    return pl.pallas_call(
        kernel,
        out_shape=jax.ShapeDtypeStruct((n, out_width), out_dtype),
        grid_spec=pltpu.PrefetchScalarGridSpec(
            num_scalar_prefetch=0,
            grid=grid,
            in_specs=[pl.BlockSpec((tile, 1), lambda i: (i, 0))] + list(extra_specs),
            out_specs=pl.BlockSpec((tile, out_width), lambda i: (i, 0)),
        ),
        compiler_params=pltpu.CompilerParams(
            dimension_semantics=("parallel",),        # v7x: 2 TCs shard the row grid
            vmem_limit_bytes=_VMEM_LIMIT_BYTES,
        ),
        cost_estimate=cost_estimate,
    )(x2, *extra_inputs)


# ----------------------------- wrappers ----------------------------------- #

def _make_sinusoidal_freqs(size, scale):
    half = size // 2
    assert half >= 2, "sinusoidal embedding requires size >= 4 (half - 1 > 0)"
    emb_scale = math.log(10000.0) / (half - 1)
    freqs = jnp.exp(-emb_scale * jnp.arange(half, dtype=jnp.float32))
    return (jnp.float32(scale) * freqs).reshape(1, half)   # scale folded in


def sinusoidal_embedding(x, size, scale=1.0, *, freqs=None,
                         out_dtype=jnp.float32, force_pallas=False):
    half = size // 2
    assert half >= 2, "sinusoidal embedding requires size >= 4 (half - 1 > 0)"
    if freqs is None:
        freqs = _make_sinusoidal_freqs(size, scale)
    n = x.shape[0]
    xf = x.astype(jnp.float32)
    out_bytes = jnp.dtype(out_dtype).itemsize
    small = n * 2 * half * out_bytes < _MIN_PALLAS_OUT_BYTES
    if (small or half % 128 != 0) and not force_pallas:
        # jnp fallback: tiny problems, or half not lane-aligned (avoids masked vst).
        e = xf[:, None] * freqs
        return jnp.concatenate([jnp.sin(e), jnp.cos(e)], axis=-1).astype(out_dtype)

    x2 = xf.reshape(n, 1)
    cost = pl.CostEstimate(
        flops=4 * n * half,
        transcendentals=2 * n * half,
        bytes_accessed=n * 4 + half * 4 + n * 2 * half * out_bytes,
    )
    f_spec = pl.BlockSpec((1, half), lambda i: (0, 0))
    return _row_tiled_call(
        functools.partial(_sinusoidal_kernel, half=half),
        x2, [freqs], [f_spec], 2 * half, out_dtype, cost)


def learnable_embedding(x, weight, bias, size, *, w_scaled=None, b2=None,
                        out_dtype=jnp.float32, force_pallas=False):
    # weight: [size, 1] (nn.Linear(1, size) layout), bias: [size]
    n = x.shape[0]
    if w_scaled is None:
        w_scaled = weight.astype(jnp.float32).reshape(size, 1).T / size   # [1, size]
    if b2 is None:
        b2 = bias.astype(jnp.float32).reshape(1, size)
    xf = x.astype(jnp.float32)
    out_bytes = jnp.dtype(out_dtype).itemsize
    if n * size * out_bytes < _MIN_PALLAS_OUT_BYTES and not force_pallas:
        return (xf[:, None] * w_scaled + b2).astype(out_dtype)

    x2 = xf.reshape(n, 1)
    cost = pl.CostEstimate(
        flops=2 * n * size,
        transcendentals=0,
        bytes_accessed=n * 4 + 2 * size * 4 + n * size * out_bytes,
    )
    wb_spec = pl.BlockSpec((1, size), lambda i: (0, 0))
    return _row_tiled_call(
        _learnable_kernel, x2, [w_scaled, b2], [wb_spec, wb_spec],
        size, out_dtype, cost)


# zero / identity / linear: single-vreg elementwise — pure jnp (fuses into consumer).
def linear_embedding(x, size, scale=1.0):
    return (x.astype(jnp.float32) / size * scale)[:, None]


def zero_embedding(x):
    return x[:, None] * 0.0


def identity_embedding(x):
    return x[:, None]


class PositionalEmbedding:
    """JAX/Pallas port of the PyTorch PositionalEmbedding module."""

    def __init__(self, size, type, scale=1.0, key=None):
        self.size = size
        self.type = type
        self.scale = scale
        if type == "sinusoidal":
            # Cache freqs once (scale folded in): no per-call XLA dispatches.
            self.freqs = _make_sinusoidal_freqs(size, scale)
        elif type == "learnable":
            if key is None:
                key = jax.random.PRNGKey(0)
            kw, kb = jax.random.split(key)
            # nn.Linear(1, size): weight [size, 1], bias [size]; U(-1, 1) since fan_in=1
            self.weight = jax.random.uniform(kw, (size, 1), jnp.float32, -1.0, 1.0)
            self.bias = jax.random.uniform(kb, (size,), jnp.float32, -1.0, 1.0)
            # Cache transposed / scaled params once.
            self.w_scaled = self.weight.T / size            # [1, size]
            self.b2 = self.bias.reshape(1, size)
        elif type not in ("linear", "zero", "identity"):
            raise ValueError(f"Unknown positional embedding type: {type}")

    def __call__(self, x, out_dtype=jnp.float32):
        if self.type == "sinusoidal":
            return sinusoidal_embedding(x, self.size, self.scale,
                                        freqs=self.freqs, out_dtype=out_dtype)
        if self.type == "learnable":
            return learnable_embedding(x, self.weight, self.bias, self.size,
                                       w_scaled=self.w_scaled, b2=self.b2,
                                       out_dtype=out_dtype)
        if self.type == "linear":
            return linear_embedding(x, self.size, self.scale)
        if self.type == "zero":
            return zero_embedding(x)
        return identity_embedding(x)

    def __len__(self):
        if self.type in ("sinusoidal", "learnable"):
            return self.size
        return 1


# ----------------------------- reference ---------------------------------- #

def _ref_forward(emb: PositionalEmbedding, x):
    x = x.astype(jnp.float32)
    if emb.type == "sinusoidal":
        half = emb.size // 2
        xs = x * emb.scale
        f = jnp.exp(-(jnp.log(10000.0) / (half - 1)) * jnp.arange(half, dtype=jnp.float32))
        e = xs[:, None] * f[None, :]
        return jnp.concatenate([jnp.sin(e), jnp.cos(e)], axis=-1)
    if emb.type == "learnable":
        return (x[:, None] / emb.size) @ emb.weight.T + emb.bias[None, :]
    if emb.type == "linear":
        return (x / emb.size * emb.scale)[:, None]
    if emb.type == "zero":
        return x[:, None] * 0.0
    return x[:, None]


def _check(name, out, ref, atol=1e-5, rtol=1e-5):
    if out.shape != ref.shape or not jnp.allclose(out, ref, atol=atol, rtol=rtol):
        print(f"MISMATCH in {name}: max abs err "
              f"{float(jnp.max(jnp.abs(out.astype(jnp.float32) - ref)))}")
        return False
    return True


# ----------------------------- main ---------------------------------------- #

if __name__ == "__main__":
    key = jax.random.PRNGKey(0)
    k_x, k_param, k_xb = jax.random.split(key, 3)

    ok = True

    # 1) Small shapes through the module (small-problem jnp fast paths).
    seq, hidden = 8, 32
    x_small = jax.random.uniform(k_x, (seq,), jnp.float32, 0.0, 100.0)
    for t in ("sinusoidal", "linear", "learnable", "zero", "identity"):
        emb = PositionalEmbedding(hidden, t, key=k_param)
        out = jax.block_until_ready(emb(x_small))
        ok &= _check(f"type={t} (small)", out, _ref_forward(emb, x_small))

    # 2) Pallas-path checks: lane-aligned size (half=128), ragged row count,
    #    exercising the real kernels on TPU.
    n_big, size_big = 300, 256
    x_big = jax.random.uniform(k_xb, (n_big,), jnp.float32, 0.0, 10.0)

    emb_s = PositionalEmbedding(size_big, "sinusoidal", key=k_param)
    out_s = jax.block_until_ready(
        sinusoidal_embedding(x_big, size_big, emb_s.scale,
                             freqs=emb_s.freqs, force_pallas=True))
    ok &= _check("sinusoidal (pallas)", out_s, _ref_forward(emb_s, x_big))

    emb_l = PositionalEmbedding(size_big, "learnable", key=k_param)
    out_l = jax.block_until_ready(
        learnable_embedding(x_big, emb_l.weight, emb_l.bias, size_big,
                            w_scaled=emb_l.w_scaled, b2=emb_l.b2,
                            force_pallas=True))
    ok &= _check("learnable (pallas)", out_l, _ref_forward(emb_l, x_big))

    if ok:
        print("KERNEL_OK")
</pallas_src>

<mosaic_0001>
module attributes {stable_mosaic.version = 11 : i64} {
  func.func @_sinusoidal_kernel(%arg0: i32, %arg1: memref<152x1xf32, #tpu.memory_space<vmem>>, %arg2: memref<1x128xf32, #tpu.memory_space<vmem>>, %arg3: memref<152x256xf32, #tpu.memory_space<vmem>>) attributes {dimension_semantics = [#tpu.dimension_semantics<parallel>], iteration_bounds = array<i64: 2>, scalar_prefetch = 0 : i64, scratch_operands = 0 : i64, tpu.core_type = #tpu.core_type<tc>, window_params = [{transform_indices = @transform_0, window_bounds = array<i64: 152, 1>}, {pipeline_mode = #tpu.pipeline_mode<synchronous>, transform_indices = @transform_1, window_bounds = array<i64: 1, 128>}, {transform_indices = @transform_2, window_bounds = array<i64: 152, 256>}]} {
    %c0 = arith.constant 0 : index
    %c0_0 = arith.constant 0 : index
    %0 = vector.load %arg1[%c0, %c0_0] : memref<152x1xf32, #tpu.memory_space<vmem>>, vector<152x1xf32>
    %c0_1 = arith.constant 0 : index
    %c0_2 = arith.constant 0 : index
    %1 = vector.load %arg2[%c0_1, %c0_2] : memref<1x128xf32, #tpu.memory_space<vmem>>, vector<1x128xf32>
    %2 = vector.broadcast %0 : vector<152x1xf32> to vector<152x128xf32>
    %3 = vector.broadcast %1 : vector<1x128xf32> to vector<152x128xf32>
    %4 = arith.mulf %2, %3 : vector<152x128xf32>
    %5 = math.sin %4 : vector<152x128xf32>
    %c0_3 = arith.constant 0 : index
    %c0_4 = arith.constant 0 : index
    %6 = vector.load %arg3[%c0_3, %c0_4] : memref<152x256xf32, #tpu.memory_space<vmem>>, vector<152x128xf32>
    tpu.vector_store %arg3[%c0_3, %c0_4], %5 {strides = array<i32>} : memref<152x256xf32, #tpu.memory_space<vmem>>, vector<152x128xf32>,
    %7 = math.cos %4 : vector<152x128xf32>
    %c0_5 = arith.constant 0 : index
    %c128 = arith.constant 128 : index
    %8 = vector.load %arg3[%c0_5, %c128] : memref<152x256xf32, #tpu.memory_space<vmem>>, vector<152x128xf32>
    tpu.vector_store %arg3[%c0_5, %c128], %7 {strides = array<i32>} : memref<152x256xf32, #tpu.memory_space<vmem>>, vector<152x128xf32>,
    return
  }
  func.func @transform_0(%arg0: i32) -> (i32, i32) {
    %c0_i32 = arith.constant 0 : i32
    %c0_i32_0 = arith.constant 0 : i32
    return %arg0, %c0_i32 : i32, i32
  }
  func.func @transform_1(%arg0: i32) -> (i32, i32) {
    %c0_i32 = arith.constant 0 : i32
    %c0_i32_0 = arith.constant 0 : i32
    %c0_i32_1 = arith.constant 0 : i32
    return %c0_i32, %c0_i32_0 : i32, i32
  }
  func.func @transform_2(%arg0: i32) -> (i32, i32) {
    %c0_i32 = arith.constant 0 : i32
    %c0_i32_0 = arith.constant 0 : i32
    return %arg0, %c0_i32 : i32, i32
  }
}

</mosaic_0001>

<llo_original>
// kernel: tpu_custom_call.1
$region0: #{tpu_custom_call.1}
  #allocation0 [shape = 'u32[]', space=smem, size = 0x4, offset = 0x4, fixed_abs, tag = 'smem constant byte address 0x4 - core index']
  #allocation1 [shape = 'u32[72,128]{1,0:T(1,128)}', space=vmem, size = 0x9000, scoped, tag = 'internal scratch']
  %s0 = inlined_call_operand.vmem [shape: f32[300,1], index: 0, kind: input, shape index: {}]
  %s1 = inlined_call_operand.vmem [shape: f32[1,128], index: 1, kind: input, shape index: {}]
  %s2 = inlined_call_operand.hbm [shape: f32[300,256], index: 2, kind: output, shape index: {}]
  %s3 = sld [smem:[#allocation0]]
  $region41: #{tpu_custom_call.1} parent=0
    _
  %s5 = ssub.s32 1, %s3
  %s6 = scalar_select 0, %s5, %s3
  $region1: #{tpu_custom_call.1} parent=0
    #allocation2 [shape = 'u8[311296]{0}', space=vmem, size = 0x4c000, scoped, tag = 'output window, operand 0']
    #allocation3 [shape = 's32[2]{0}', space=sflag, size = 0x8, scoped, tag = 'scoped memory for tpu_custom_call.1']
    %7 = vsyncpa [#allocation3], 0
    %s8 = scalar_lea.sflag [#allocation3], 1
    %9 = vsyncpa %s8, 0
    loop: start=0, step=1, limit=4
    $region2: #{tpu_custom_call.1} parent=1 // loop_pre_header
      _
    $region3: #{tpu_custom_call.1} parent=1 // loop_header
      %s11 = sphi 0, %s15
      %p12 = scmp.ge.s32.totalorder %s11, 4
      %s21 = sphi 0, %s23
      %s24 = sphi 0, %s21
      %s25 = sphi 0, %s24
      %s41 = sphi 0, %s25
      %s45 = sphi 0, %s45
      %s47 = sphi 0, %s45
      %s48 = sphi 0, %s47
      %s62 = sphi 0, %s48
      %s68 = sphi 0, %s70
      %s71 = sphi 0, %s68
      %s72 = sphi 0, %s71
      %s88 = sphi 0, %s72
    $region4: #{tpu_custom_call.1} parent=1 // loop_header_branch
      %14 = sbr.rel (%p12) target = $region8
    $region5: #{tpu_custom_call.1} parent=1 // loop_body
      %s16 = ssub.s32 %s11, 1
      %s17 = ssub.s32 %s11, 2
      %s18 = sadd.s32 %s11, 1
      %s19 = ssub.s32 %s11, %s18
      %p20 = scmp.eq.s32.totalorder %s19, 0
      %s22 = sadd.s32 %s21, 1
      %s23 = scalar_select %p20, %s21, %s22
      %p26 = pneg %p20
      %p27 = scmp.eq.s32.totalorder %s11, 1
      %p28 = por %p26, %p27
      %p29 = scmp.ne.s32.totalorder %s21, %s24
      %p30 = scmp.eq.s32.totalorder %s11, 0
      %p31 = por %p29, %p30
      %p32 = scmp.ne.s32.totalorder %s21, %s24
      %p33 = scmp.eq.s32.totalorder %s16, 1
      %p34 = por %p32, %p33
      %p35 = scmp.ne.s32.totalorder %s24, %s25
      %p36 = scmp.eq.s32.totalorder %s16, 0
      %p37 = por %p35, %p36
      %p38 = scmp.ne.s32.totalorder %s24, %s25
      %p39 = scmp.eq.s32.totalorder %s17, 1
      %p40 = por %p38, %p39
      %p42 = scmp.ne.s32.totalorder %s25, %s41
      %p43 = scmp.eq.s32.totalorder %s17, 0
      %p44 = por %p42, %p43
      %s46 = sadd.s32 %s45, 1
      %p49 = scmp.eq.s32.totalorder %s11, 1
      %p50 = scmp.ne.s32.totalorder %s45, %s47
      %p51 = scmp.eq.s32.totalorder %s11, 0
      %p52 = por %p50, %p51
      %p53 = scmp.ne.s32.totalorder %s45, %s47
      %p54 = scmp.eq.s32.totalorder %s16, 1
      %p55 = por %p53, %p54
      %p56 = scmp.ne.s32.totalorder %s47, %s48
      %p57 = scmp.eq.s32.totalorder %s16, 0
      %p58 = por %p56, %p57
      %p59 = scmp.ne.s32.totalorder %s47, %s48
      %p60 = scmp.eq.s32.totalorder %s17, 1
      %p61 = por %p59, %p60
      %p63 = scmp.ne.s32.totalorder %s48, %s62
      %p64 = scmp.eq.s32.totalorder %s17, 0
      %p65 = por %p63, %p64
      %s66 = ssub.s32 %s11, %s18
      %p67 = scmp.eq.s32.totalorder %s66, 0
      %s69 = sadd.s32 %s68, 1
      %s70 = scalar_select %p67, %s68, %s69
      %p73 = pneg %p67
      %p74 = scmp.eq.s32.totalorder %s11, 1
      %p75 = por %p73, %p74
      %p76 = scmp.ne.s32.totalorder %s68, %s71
      %p77 = scmp.eq.s32.totalorder %s11, 0
      %p78 = por %p76, %p77
      %p79 = scmp.ne.s32.totalorder %s68, %s71
      %p80 = scmp.eq.s32.totalorder %s16, 1
      %p81 = por %p79, %p80
      %p82 = scmp.ne.s32.totalorder %s71, %s72
      %p83 = scmp.eq.s32.totalorder %s16, 0
      %p84 = por %p82, %p83
      %p85 = scmp.ne.s32.totalorder %s71, %s72
      %p86 = scmp.eq.s32.totalorder %s17, 1
      %p87 = por %p85, %p86
      %p89 = scmp.ne.s32.totalorder %s72, %s88
      %p90 = scmp.eq.s32.totalorder %s17, 0
      %p91 = por %p89, %p90
      %p92 = scmp.le.s32.totalorder 1, %s11
      %p93 = scmp.lt.s32.totalorder %s11, 3
      %p94 = pnand %p92, %p93
      %p95 = pneg %p94
      // Predicated region
      $region9: #{tpu_custom_call.1} parent=5 // pred_check
        _
      $region10: #{tpu_custom_call.1} parent=5 // pred_check_branch
        %97 = sbr.rel (%p94) target = $region12
      $region11: #{tpu_custom_call.1} parent=5 // pred_region
        %s98 = ssub.s32 %s11, 1
        // Predicated region
        $region13: #{tpu_custom_call.1} parent=11 // pred_check
          %p99 = pneg %p58
        $region14: #{tpu_custom_call.1} parent=11 // pred_check_branch
          %101 = sbr.rel (%p99) target = $region16
        $region15: #{tpu_custom_call.1} parent=11 // pred_region
          _
        $region16: #{tpu_custom_call.1} parent=11 // pred_fallthru
          _
      $region12: #{tpu_custom_call.1} parent=5 // pred_fallthru
        _
      %p102 = scmp.lt.s32.totalorder %s11, 2
      // Predicated region
      $region17: #{tpu_custom_call.1} parent=5 // pred_check
        %p103 = pneg %p102
      $region18: #{tpu_custom_call.1} parent=5 // pred_check_branch
        %105 = sbr.rel (%p103) target = $region20
      $region19: #{tpu_custom_call.1} parent=5 // pred_region
        // Predicated region
        $region21: #{tpu_custom_call.1} parent=19 // pred_check
          %p106 = pneg %p31
        $region22: #{tpu_custom_call.1} parent=19 // pred_check_branch
          %108 = sbr.rel (%p106) target = $region24
        $region23: #{tpu_custom_call.1} parent=19 // pred_region
          %s109 = smul.u32 19, %s11
          %p110 = scmp.lt.s32.totalorder %s109, 37
          %s111 = scalar_select %p110, %s109, 37
          %s112 = smul.addr %s111, 8
          %s113 = scalar_lea.vmem %s0, %s112
          %s114 = smul.u32 19, %s11
        $region24: #{tpu_custom_call.1} parent=19 // pred_fallthru
          _
      $region20: #{tpu_custom_call.1} parent=5 // pred_fallthru
        _
      %p115 = scmp.le.s32.totalorder 1, %s11
      %p116 = scmp.lt.s32.totalorder %s11, 3
      %p117 = pnand %p115, %p116
      %p118 = pneg %p117
      // Predicated region
      $region25: #{tpu_custom_call.1} parent=5 // pred_check
        _
      $region26: #{tpu_custom_call.1} parent=5 // pred_check_branch
        %120 = sbr.rel (%p117) target = $region28
      $region27: #{tpu_custom_call.1} parent=5 // pred_region
        %s121 = ssub.s32 %s11, 1
        %s122 = smul.u32 19, %s16
        %p123 = scmp.lt.s32.totalorder %s122, 37
        %s124 = scalar_select %p123, %s122, 37
        %s125 = smul.addr %s124, 8
        %s126 = scalar_lea.vmem %s0, %s125
        %p127 = pneg %p37
        %p128 = pneg %p34
        %p129 = pneg %p58
        %p130 = pneg %p55
        %p131 = pneg %p84
        %p132 = pneg %p81
        %s133 = sand.u32 %s71, 1
        %s134 = scalar_lea.sflag [#allocation3], %s133
        %s135 = sand.u32 %s71, 1
        %s136 = smul.addr %s135, 304
        %s137 = scalar_lea.vmem [#allocation2], %s136
        %s138 = smul.u32 19, %s16
        %p139 = scmp.lt.s32.totalorder %s138, 37
        %s140 = scalar_select %p139, %s138, 37
        %s141 = smul.addr %s140, 8
        %s142 = scalar_lea.vmem %s0, %s141
        %s143 = smul.u32 19, %s16
        %s144 = smul.u32 19, %s16
        %v145 = vld [vmem:[%s142] sm:$0xff]
        %v146 = vld [vmem:[%s142 + $0x8] sm:$0xff]
        %v147 = vld [vmem:[%s142 + $0x10] sm:$0xff]
        %v148 = vld [vmem:[%s142 + $0x18] sm:$0xff]
        %v149 = vld [vmem:[%s142 + $0x20] sm:$0xff]
        %v150 = vld [vmem:[%s142 + $0x28] sm:$0xff]
        %v151 = vld [vmem:[%s142 + $0x30] sm:$0xff]
        %v152 = vld [vmem:[%s142 + $0x38] sm:$0xff]
        %v153 = vld [vmem:[%s142 + $0x40] sm:$0xff]
        %v154 = vld [vmem:[%s142 + $0x48] sm:$0xff]
        %v155 = vld [vmem:[%s142 + $0x50] sm:$0xff]
        %v156 = vld [vmem:[%s142 + $0x58] sm:$0xff]
        %v157 = vld [vmem:[%s142 + $0x60] sm:$0xff]
        %v158 = vld [vmem:[%s142 + $0x68] sm:$0xff]
        %v159 = vld [vmem:[%s142 + $0x70] sm:$0xff]
        %v160 = vld [vmem:[%s142 + $0x78] sm:$0xff]
        %v161 = vld [vmem:[%s142 + $0x80] sm:$0xff]
        %v162 = vld [vmem:[%s142 + $0x88] sm:$0xff]
        %v163 = vld [vmem:[%s142 + $0x90] sm:$0xff]
        %v164 = vld [vmem:[%s1] sm:$0x1]
        %166 = vset.pattern.permute.xlu0 0
        %167 = vperm.xlu0 %166, %v145
        %v168 = vpop.permute.xlu0 %167
        %171 = vset.pattern.permute.xlu0 0
        %172 = vperm.xlu0 %171, %v146
        %v173 = vpop.permute.xlu0 %172
        %176 = vset.pattern.permute.xlu0 0
        %177 = vperm.xlu0 %176, %v147
        %v178 = vpop.permute.xlu0 %177
        %181 = vset.pattern.permute.xlu0 0
        %182 = vperm.xlu0 %181, %v148
        %v183 = vpop.permute.xlu0 %182
        %186 = vset.pattern.permute.xlu0 0
        %187 = vperm.xlu0 %186, %v149
        %v188 = vpop.permute.xlu0 %187
        %191 = vset.pattern.permute.xlu0 0
        %192 = vperm.xlu0 %191, %v150
        %v193 = vpop.permute.xlu0 %192
        %196 = vset.pattern.permute.xlu0 0
        %197 = vperm.xlu0 %196, %v151
        %v198 = vpop.permute.xlu0 %197
        %201 = vset.pattern.permute.xlu0 0
        %202 = vperm.xlu0 %201, %v152
        %v203 = vpop.permute.xlu0 %202
        %206 = vset.pattern.permute.xlu0 0
        %207 = vperm.xlu0 %206, %v153
        %v208 = vpop.permute.xlu0 %207
        %211 = vset.pattern.permute.xlu0 0
        %212 = vperm.xlu0 %211, %v154
        %v213 = vpop.permute.xlu0 %212
        %216 = vset.pattern.permute.xlu0 0
        %217 = vperm.xlu0 %216, %v155
        %v218 = vpop.permute.xlu0 %217
        %221 = vset.pattern.permute.xlu0 0
        %222 = vperm.xlu0 %221, %v156
        %v223 = vpop.permute.xlu0 %222
        %226 = vset.pattern.permute.xlu0 0
        %227 = vperm.xlu0 %226, %v157
        %v228 = vpop.permute.xlu0 %227
        %231 = vset.pattern.permute.xlu0 0
        %232 = vperm.xlu0 %231, %v158
        %v233 = vpop.permute.xlu0 %232
        %236 = vset.pattern.permute.xlu0 0
        %237 = vperm.xlu0 %236, %v159
        %v238 = vpop.permute.xlu0 %237
        %241 = vset.pattern.permute.xlu0 0
        %242 = vperm.xlu0 %241, %v160
        %v243 = vpop.permute.xlu0 %242
        %246 = vset.pattern.permute.xlu0 0
        %247 = vperm.xlu0 %246, %v161
        %v248 = vpop.permute.xlu0 %247
        %251 = vset.pattern.permute.xlu0 0
        %252 = vperm.xlu0 %251, %v162
        %v253 = vpop.permute.xlu0 %252
        %256 = vset.pattern.permute.xlu0 0
        %257 = vperm.xlu0 %256, %v163
        %v258 = vpop.permute.xlu0 %257
        %v261 = vperm.slane %v164, 0
        %v263 = vmul.f32 %v168, %v261
        %v264 = vmul.f32 %v173, %v261
        %v265 = vmul.f32 %v178, %v261
        %v266 = vmul.f32 %v183, %v261
        %v267 = vmul.f32 %v188, %v261
        %v268 = vmul.f32 %v193, %v261
        %v269 = vmul.f32 %v198, %v261
        %v270 = vmul.f32 %v203, %v261
        %v271 = vmul.f32 %v208, %v261
        %v272 = vmul.f32 %v213, %v261
        %v273 = vmul.f32 %v218, %v261
        %v274 = vmul.f32 %v223, %v261
        %v275 = vmul.f32 %v228, %v261
        %v276 = vmul.f32 %v233, %v261
        %v277 = vmul.f32 %v238, %v261
        %v278 = vmul.f32 %v243, %v261
        %v279 = vmul.f32 %v248, %v261
        %v280 = vmul.f32 %v253, %v261
        %v281 = vmul.f32 %v258, %v261
        %v282 = vand.u32 2147483647, %v263
        %vm283 = vcmp.le.f32.partialorder %v282, 0.7853982
        %vm284 = vcmp.lt.s32.totalorder %v263, 0
        %v285 = vand.u32 %v263, 2139095040
        %v286 = vshrl.u32 %v285, 23
        %v287 = vsub.s32 %v286, 127
        %v288 = vand.u32 2147483647, %v263
        %v289 = vand.u32 %v288, 8388607
        %v290 = vor.u32 %v289, 8388608
        %v291 = vsub.s32 0, %v290
        %v292 = vadd.s32 %v287, 1
        %vm293 = vcmp.gt.s32.totalorder %v292, 0
        %v294 = vsel %vm293, %v292, 0
        %v295 = vshrl.u32 %v294, 5
        %v296 = vand.u32 %v294, 31
        %v297 = vsub.s32 32, %v296
        %v298 = vshrl.u32 683565275, %v297
        %v299 = vshll.u32 683565275, %v296
        %v300 = vshrl.u32 2475754826, %v297
        %v301 = vor.u32 %v299, %v300
        %v302 = vshll.u32 2475754826, %v296
        %v303 = vshrl.u32 2131351028, %v297
        %v304 = vor.u32 %v302, %v303
        %v305 = vshll.u32 2131351028, %v296
        %v306 = vshrl.u32 2102212464, %v297
        %v307 = vor.u32 %v305, %v306
        %v308 = vshll.u32 2102212464, %v296
        %v309 = vshrl.u32 920167782, %v297
        %v310 = vor.u32 %v308, %v309
        %v311 = vshll.u32 920167782, %v296
        %v312 = vshrl.u32 1326507024, %v297
        %v313 = vor.u32 %v311, %v312
        %vm314 = vcmp.lt.s32.totalorder %v295, 1
        %vm315 = vcmp.lt.s32.totalorder %v295, 2
        %vm316 = vcmp.lt.s32.totalorder %v295, 3
        %vm317 = vcmp.lt.s32.totalorder %v295, 4
        %v318 = vsel %vm314, %v298, %v301
        %v319 = vsel %vm317, %v307, 2102212464
        %v320 = vsel %vm316, %v304, %v319
        %v321 = vsel %vm315, %v318, %v320
        %v322 = vsel %vm314, %v301, %v304
        %v323 = vsel %vm317, %v310, 920167782
        %v324 = vsel %vm316, %v307, %v323
        %v325 = vsel %vm315, %v322, %v324
        %v326 = vsel %vm314, %v304, %v307
        %v327 = vsel %vm317, %v313, 1326507024
        %v328 = vsel %vm316, %v310, %v327
        %v329 = vsel %vm315, %v326, %v328
        %v330 = vshll.u32 %v290, 8
        %v331 = vand.u32 %v330, 65535
        %v332 = vshrl.u32 %v330, 16
        %v333 = vand.u32 %v329, 65535
        %v334 = vshrl.u32 %v329, 16
        %v335 = vmul.u32 %v331, %v333
        %v336 = vmul.u32 %v331, %v334
        %v337 = vmul.u32 %v332, %v333
        %v338 = vmul.u32 %v332, %v334
        %v339 = vshll.u32 %v336, 16
        %v340 = vshrl.u32 %v336, 16
        %v341 = vshll.u32 %v337, 16
        %v342 = vshrl.u32 %v337, 16
        %vm343 = vc.u32 %v335, %v339
        %v344 = vsel %vm343, 1, 0
        %v345 = vadd.s32 %v335, %v339
        %v346 = vadd.s32 %v338, %v344
        %vm347 = vc.u32 %v345, %v341
        %v348 = vsel %vm347, 1, 0
        %v349 = vadd.s32 %v345, %v341
        %v350 = vadd.s32 %v346, %v348
        %v351 = vadd.s32 %v350, %v340
        %v352 = vadd.s32 %v351, %v342
        %v353 = vand.u32 %v330, 65535
        %v354 = vshrl.u32 %v330, 16
        %v355 = vand.u32 %v325, 65535
        %v356 = vshrl.u32 %v325, 16
        %v357 = vmul.u32 %v353, %v355
        %v358 = vmul.u32 %v353, %v356
        %v359 = vmul.u32 %v354, %v355
        %v360 = vmul.u32 %v354, %v356
        %v361 = vshll.u32 %v358, 16
        %v362 = vshrl.u32 %v358, 16
        %v363 = vshll.u32 %v359, 16
        %v364 = vshrl.u32 %v359, 16
        %vm365 = vc.u32 %v357, %v361
        %v366 = vsel %vm365, 1, 0
        %v367 = vadd.s32 %v357, %v361
        %v368 = vadd.s32 %v360, %v366
        %vm369 = vc.u32 %v367, %v363
        %v370 = vsel %vm369, 1, 0
        %v371 = vadd.s32 %v367, %v363
        %v372 = vadd.s32 %v368, %v370
        %v373 = vadd.s32 %v372, %v362
        %v374 = vadd.s32 %v373, %v364
        %v375 = vmul.u32 %v330, %v321
        %v376 = vadd.s32 %v352, %v371
        %vm377 = vc.u32 %v352, %v371
        %v378 = vadd.s32 %v374, 1
        %v379 = vsel %vm377, %v378, %v374
        %v380 = vadd.s32 %v375, %v379
        %v381 = vadd.s32 %v380, 536870912
        %v382 = vshrl.u32 %v381, 30
        %v383 = vshll.u32 %v382, 30
        %v384 = vsub.s32 %v380, %v383
        %vm385 = vcmp.lt.s32.totalorder %v384, 0
        %v386 = vsub.s32 0, %v384
        %v387 = vsel %vm385, %v386, %v384
        %v388 = vclz %v387
        %v389 = vsub.s32 %v388, 2
        %vm390 = vcmp.gt.s32.totalorder 0, %v389
        %v391 = vsel %vm390, 0, %v389
        %v392 = vsub.s32 32, %v391
        %v393 = vshll.u32 %v384, %v391
        %v394 = vshrl.u32 %v376, %v392
        %v395 = vor.u32 %v393, %v394
        %v396 = vsub.s32 4294967266, %v391
        %v397 = vadd.s32 %v396, 127
        %v398 = vshll.u32 %v397, 23
        %v399 = vor.u32 4788187, %v398
        %v400 = vand.u32 2147483647, %v399
        %v402 = vcvt.s32.f32 %v395
        %v403 = vmul.f32 %v402, %v400
        %v404 = vxor.u32 %v403, 2147483648
        %v405 = vsel %vm284, %v404, %v403
        %v406 = vsub.s32 4, %v382
        %v407 = vsel %vm284, %v406, %v382
        %v408 = vsel %vm283, %v263, %v405
        %v409 = vsel %vm283, 0, %v407
        %v410 = vmul.f32 %v408, %v408
        %v411 = vmul.f32 %v410, -0.001358992
        %v412 = vadd.f32 %v411, 0.041655596
        %v413 = vmul.f32 %v410, %v412
        %v414 = vadd.f32 %v413, -0.4999988
        %v415 = vmul.f32 %v410, %v414
        %v416 = vadd.f32 1.0, %v415
        %v417 = vmul.f32 %v408, %v408
        %v418 = vmul.f32 %v417, -0.00019511016
        %v419 = vadd.f32 %v418, 0.008332121
        %v420 = vmul.f32 %v417, %v419
        %v421 = vadd.f32 %v420, -0.16666654
        %v422 = vmul.f32 %v417, %v421
        %v423 = vadd.f32 %v422, 1.0
        %v424 = vmul.f32 %v423, %v408
        %vm425 = vweird.f32 %v263
        %v426 = vadd.s32 %v409, 3
        %v427 = vand.u32 %v426, 3
        %vm428 = vcmp.lt.s32.totalorder %v427, 2
        %vm429 = vcmp.eq.s32.totalorder %v427, 0
        %v430 = vxor.u32 %v424, 2147483648
        %v431 = vsel %vm429, %v416, %v430
        %vm432 = vcmp.eq.s32.totalorder %v427, 2
        %v433 = vxor.u32 %v416, 2147483648
        %v434 = vsel %vm432, %v433, %v424
        %v435 = vsel %vm428, %v431, %v434
        %v436 = vsel %vm425, nan, %v435
        %v437 = vand.u32 2147483647, %v264
        %vm438 = vcmp.le.f32.partialorder %v437, 0.7853982
        %vm439 = vcmp.lt.s32.totalorder %v264, 0
        %v440 = vand.u32 %v264, 2139095040
        %v441 = vshrl.u32 %v440, 23
        %v442 = vsub.s32 %v441, 127
        %v443 = vand.u32 2147483647, %v264
        %v444 = vand.u32 %v443, 8388607
        %v445 = vor.u32 %v444, 8388608
        %v446 = vsub.s32 0, %v445
        %v447 = vadd.s32 %v442, 1
        %vm448 = vcmp.gt.s32.totalorder %v447, 0
        %v449 = vsel %vm448, %v447, 0
        %v450 = vshrl.u32 %v449, 5
        %v451 = vand.u32 %v449, 31
        %v452 = vsub.s32 32, %v451
        %v453 = vshrl.u32 683565275, %v452
        %v454 = vshll.u32 683565275, %v451
        %v455 = vshrl.u32 2475754826, %v452
        %v456 = vor.u32 %v454, %v455
        %v457 = vshll.u32 2475754826, %v451
        %v458 = vshrl.u32 2131351028, %v452
        %v459 = vor.u32 %v457, %v458
        %v460 = vshll.u32 2131351028, %v451
        %v461 = vshrl.u32 2102212464, %v452
        %v462 = vor.u32 %v460, %v461
        %v463 = vshll.u32 2102212464, %v451
        %v464 = vshrl.u32 920167782, %v452
        %v465 = vor.u32 %v463, %v464
        %v466 = vshll.u32 920167782, %v451
        %v467 = vshrl.u32 1326507024, %v452
        %v468 = vor.u32 %v466, %v467
        %vm469 = vcmp.lt.s32.totalorder %v450, 1
        %vm470 = vcmp.lt.s32.totalorder %v450, 2
        %vm471 = vcmp.lt.s32.totalorder %v450, 3
        %vm472 = vcmp.lt.s32.totalorder %v450, 4
        %v473 = vsel %vm469, %v453, %v456
        %v474 = vsel %vm472, %v462, 2102212464
        %v475 = vsel %vm471, %v459, %v474
        %v476 = vsel %vm470, %v473, %v475
        %v477 = vsel %vm469, %v456, %v459
        %v478 = vsel %vm472, %v465, 920167782
        %v479 = vsel %vm471, %v462, %v478
        %v480 = vsel %vm470, %v477, %v479
        %v481 = vsel %vm469, %v459, %v462
        %v482 = vsel %vm472, %v468, 1326507024
        %v483 = vsel %vm471, %v465, %v482
        %v484 = vsel %vm470, %v481, %v483
        %v485 = vshll.u32 %v445, 8
        %v486 = vand.u32 %v485, 65535
        %v487 = vshrl.u32 %v485, 16
        %v488 = vand.u32 %v484, 65535
        %v489 = vshrl.u32 %v484, 16
        %v490 = vmul.u32 %v486, %v488
        %v491 = vmul.u32 %v486, %v489
        %v492 = vmul.u32 %v487, %v488
        %v493 = vmul.u32 %v487, %v489
        %v494 = vshll.u32 %v491, 16
        %v495 = vshrl.u32 %v491, 16
        %v496 = vshll.u32 %v492, 16
        %v497 = vshrl.u32 %v492, 16
        %vm498 = vc.u32 %v490, %v494
        %v499 = vsel %vm498, 1, 0
        %v500 = vadd.s32 %v490, %v494
        %v501 = vadd.s32 %v493, %v499
        %vm502 = vc.u32 %v500, %v496
        %v503 = vsel %vm502, 1, 0
        %v504 = vadd.s32 %v500, %v496
        %v505 = vadd.s32 %v501, %v503
        %v506 = vadd.s32 %v505, %v495
        %v507 = vadd.s32 %v506, %v497
        %v508 = vand.u32 %v485, 65535
        %v509 = vshrl.u32 %v485, 16
        %v510 = vand.u32 %v480, 65535
        %v511 = vshrl.u32 %v480, 16
        %v512 = vmul.u32 %v508, %v510
        %v513 = vmul.u32 %v508, %v511
        %v514 = vmul.u32 %v509, %v510
        %v515 = vmul.u32 %v509, %v511
        %v516 = vshll.u32 %v513, 16
        %v517 = vshrl.u32 %v513, 16
        %v518 = vshll.u32 %v514, 16
        %v519 = vshrl.u32 %v514, 16
        %vm520 = vc.u32 %v512, %v516
        %v521 = vsel %vm520, 1, 0
        %v522 = vadd.s32 %v512, %v516
        %v523 = vadd.s32 %v515, %v521
        %vm524 = vc.u32 %v522, %v518
        %v525 = vsel %vm524, 1, 0
        %v526 = vadd.s32 %v522, %v518
        %v527 = vadd.s32 %v523, %v525
        %v528 = vadd.s32 %v527, %v517
        %v529 = vadd.s32 %v528, %v519
        %v530 = vmul.u32 %v485, %v476
        %v531 = vadd.s32 %v507, %v526
        %vm532 = vc.u32 %v507, %v526
        %v533 = vadd.s32 %v529, 1
        %v534 = vsel %vm532, %v533, %v529
        %v535 = vadd.s32 %v530, %v534
        %v536 = vadd.s32 %v535, 536870912
        %v537 = vshrl.u32 %v536, 30
        %v538 = vshll.u32 %v537, 30
        %v539 = vsub.s32 %v535, %v538
        %vm540 = vcmp.lt.s32.totalorder %v539, 0
        %v541 = vsub.s32 0, %v539
        %v542 = vsel %vm540, %v541, %v539
        %v543 = vclz %v542
        %v544 = vsub.s32 %v543, 2
        %vm545 = vcmp.gt.s32.totalorder 0, %v544
        %v546 = vsel %vm545, 0, %v544
        %v547 = vsub.s32 32, %v546
        %v548 = vshll.u32 %v539, %v546
        %v549 = vshrl.u32 %v531, %v547
        %v550 = vor.u32 %v548, %v549
        %v551 = vsub.s32 4294967266, %v546
        %v552 = vadd.s32 %v551, 127
        %v553 = vshll.u32 %v552, 23
        %v554 = vor.u32 4788187, %v553
        %v555 = vand.u32 2147483647, %v554
        %v557 = vcvt.s32.f32 %v550
        %v558 = vmul.f32 %v557, %v555
        %v559 = vxor.u32 %v558, 2147483648
        %v560 = vsel %vm439, %v559, %v558
        %v561 = vsub.s32 4, %v537
        %v562 = vsel %vm439, %v561, %v537
        %v563 = vsel %vm438, %v264, %v560
        %v564 = vsel %vm438, 0, %v562
        %v565 = vmul.f32 %v563, %v563
        %v566 = vmul.f32 %v565, -0.001358992
        %v567 = vadd.f32 %v566, 0.041655596
        %v568 = vmul.f32 %v565, %v567
        %v569 = vadd.f32 %v568, -0.4999988
        %v570 = vmul.f32 %v565, %v569
        %v571 = vadd.f32 1.0, %v570
        %v572 = vmul.f32 %v563, %v563
        %v573 = vmul.f32 %v572, -0.00019511016
        %v574 = vadd.f32 %v573, 0.008332121
        %v575 = vmul.f32 %v572, %v574
        %v576 = vadd.f32 %v575, -0.16666654
        %v577 = vmul.f32 %v572, %v576
        %v578 = vadd.f32 %v577, 1.0
        %v579 = vmul.f32 %v578, %v563
        %vm580 = vweird.f32 %v264
        %v581 = vadd.s32 %v564, 3
        %v582 = vand.u32 %v581, 3
        %vm583 = vcmp.lt.s32.totalorder %v582, 2
        %vm584 = vcmp.eq.s32.totalorder %v582, 0
        %v585 = vxor.u32 %v579, 2147483648
        %v586 = vsel %vm584, %v571, %v585
        %vm587 = vcmp.eq.s32.totalorder %v582, 2
        %v588 = vxor.u32 %v571, 2147483648
        %v589 = vsel %vm587, %v588, %v579
        %v590 = vsel %vm583, %v586, %v589
        %v591 = vsel %vm580, nan, %v590
        %v592 = vand.u32 2147483647, %v265
        %vm593 = vcmp.le.f32.partialorder %v592, 0.7853982
        %vm594 = vcmp.lt.s32.totalorder %v265, 0
        %v595 = vand.u32 %v265, 2139095040
        %v596 = vshrl.u32 %v595, 23
        %v597 = vsub.s32 %v596, 127
        %v598 = vand.u32 2147483647, %v265
        %v599 = vand.u32 %v598, 8388607
        %v600 = vor.u32 %v599, 8388608
        %v601 = vsub.s32 0, %v600
        %v602 = vadd.s32 %v597, 1
        %vm603 = vcmp.gt.s32.totalorder %v602, 0
        %v604 = vsel %vm603, %v602, 0
        %v605 = vshrl.u32 %v604, 5
        %v606 = vand.u32 %v604, 31
        %v607 = vsub.s32 32, %v606
        %v608 = vshrl.u32 683565275, %v607
        %v609 = vshll.u32 683565275, %v606
        %v610 = vshrl.u32 2475754826, %v607
        %v611 = vor.u32 %v609, %v610
        %v612 = vshll.u32 2475754826, %v606
        %v613 = vshrl.u32 2131351028, %v607
        %v614 = vor.u32 %v612, %v613
        %v615 = vshll.u32 2131351028, %v606
        %v616 = vshrl.u32 2102212464, %v607
        %v617 = vor.u32 %v615, %v616
        %v618 = vshll.u32 2102212464, %v606
        %v619 = vshrl.u32 920167782, %v607
        %v620 = vor.u32 %v618, %v619
        %v621 = vshll.u32 920167782, %v606
        %v622 = vshrl.u32 1326507024, %v607
        %v623 = vor.u32 %v621, %v622
        %vm624 = vcmp.lt.s32.totalorder %v605, 1
        %vm625 = vcmp.lt.s32.totalorder %v605, 2
        %vm626 = vcmp.lt.s32.totalorder %v605, 3
        %vm627 = vcmp.lt.s32.totalorder %v605, 4
        %v628 = vsel %vm624, %v608, %v611
        %v629 = vsel %vm627, %v617, 2102212464
        %v630 = vsel %vm626, %v614, %v629
        %v631 = vsel %vm625, %v628, %v630
        %v632 = vsel %vm624, %v611, %v614
        %v633 = vsel %vm627, %v620, 920167782
        %v634 = vsel %vm626, %v617, %v633
        %v635 = vsel %vm625, %v632, %v634
        %v636 = vsel %vm624, %v614, %v617
        %v637 = vsel %vm627, %v623, 1326507024
        %v638 = vsel %vm626, %v620, %v637
        %v639 = vsel %vm625, %v636, %v638
        %v640 = vshll.u32 %v600, 8
        %v641 = vand.u32 %v640, 65535
        %v642 = vshrl.u32 %v640, 16
        %v643 = vand.u32 %v639, 65535
        %v644 = vshrl.u32 %v639, 16
        %v645 = vmul.u32 %v641, %v643
        %v646 = vmul.u32 %v641, %v644
        %v647 = vmul.u32 %v642, %v643
        %v648 = vmul.u32 %v642, %v644
        %v649 = vshll.u32 %v646, 16
        %v650 = vshrl.u32 %v646, 16
        %v651 = vshll.u32 %v647, 16
        %v652 = vshrl.u32 %v647, 16
        %vm653 = vc.u32 %v645, %v649
        %v654 = vsel %vm653, 1, 0
        %v655 = vadd.s32 %v645, %v649
        %v656 = vadd.s32 %v648, %v654
        %vm657 = vc.u32 %v655, %v651
        %v658 = vsel %vm657, 1, 0
        %v659 = vadd.s32 %v655, %v651
        %v660 = vadd.s32 %v656, %v658
        %v661 = vadd.s32 %v660, %v650
        %v662 = vadd.s32 %v661, %v652
        %v663 = vand.u32 %v640, 65535
        %v664 = vshrl.u32 %v640, 16
        %v665 = vand.u32 %v635, 65535
        %v666 = vshrl.u32 %v635, 16
        %v667 = vmul.u32 %v663, %v665
        %v668 = vmul.u32 %v663, %v666
        %v669 = vmul.u32 %v664, %v665
        %v670 = vmul.u32 %v664, %v666
        %v671 = vshll.u32 %v668, 16
        %v672 = vshrl.u32 %v668, 16
        %v673 = vshll.u32 %v669, 16
        %v674 = vshrl.u32 %v669, 16
        %vm675 = vc.u32 %v667, %v671
        %v676 = vsel %vm675, 1, 0
        %v677 = vadd.s32 %v667, %v671
        %v678 = vadd.s32 %v670, %v676
        %vm679 = vc.u32 %v677, %v673
        %v680 = vsel %vm679, 1, 0
        %v681 = vadd.s32 %v677, %v673
        %v682 = vadd.s32 %v678, %v680
        %v683 = vadd.s32 %v682, %v672
        %v684 = vadd.s32 %v683, %v674
        %v685 = vmul.u32 %v640, %v631
        %v686 = vadd.s32 %v662, %v681
        %vm687 = vc.u32 %v662, %v681
        %v688 = vadd.s32 %v684, 1
        %v689 = vsel %vm687, %v688, %v684
        %v690 = vadd.s32 %v685, %v689
        %v691 = vadd.s32 %v690, 536870912
        %v692 = vshrl.u32 %v691, 30
        %v693 = vshll.u32 %v692, 30
        %v694 = vsub.s32 %v690, %v693
        %vm695 = vcmp.lt.s32.totalorder %v694, 0
        %v696 = vsub.s32 0, %v694
        %v697 = vsel %vm695, %v696, %v694
        %v698 = vclz %v697
        %v699 = vsub.s32 %v698, 2
        %vm700 = vcmp.gt.s32.totalorder 0, %v699
        %v701 = vsel %vm700, 0, %v699
        %v702 = vsub.s32 32, %v701
        %v703 = vshll.u32 %v694, %v701
        %v704 = vshrl.u32 %v686, %v702
        %v705 = vor.u32 %v703, %v704
        %v706 = vsub.s32 4294967266, %v701
        %v707 = vadd.s32 %v706, 127
        %v708 = vshll.u32 %v707, 23
        %v709 = vor.u32 4788187, %v708
        %v710 = vand.u32 2147483647, %v709
        %v712 = vcvt.s32.f32 %v705
        %v713 = vmul.f32 %v712, %v710
        %v714 = vxor.u32 %v713, 2147483648
        %v715 = vsel %vm594, %v714, %v713
        %v716 = vsub.s32 4, %v692
        %v717 = vsel %vm594, %v716, %v692
        %v718 = vsel %vm593, %v265, %v715
        %v719 = vsel %vm593, 0, %v717
        %v720 = vmul.f32 %v718, %v718
        %v721 = vmul.f32 %v720, -0.001358992
        %v722 = vadd.f32 %v721, 0.041655596
        %v723 = vmul.f32 %v720, %v722
        %v724 = vadd.f32 %v723, -0.4999988
        %v725 = vmul.f32 %v720, %v724
        %v726 = vadd.f32 1.0, %v725
        %v727 = vmul.f32 %v718, %v718
        %v728 = vmul.f32 %v727, -0.00019511016
        %v729 = vadd.f32 %v728, 0.008332121
        %v730 = vmul.f32 %v727, %v729
        %v731 = vadd.f32 %v730, -0.16666654
        %v732 = vmul.f32 %v727, %v731
        %v733 = vadd.f32 %v732, 1.0
        %v734 = vmul.f32 %v733, %v718
        %vm735 = vweird.f32 %v265
        %v736 = vadd.s32 %v719, 3
        %v737 = vand.u32 %v736, 3
        %vm738 = vcmp.lt.s32.totalorder %v737, 2
        %vm739 = vcmp.eq.s32.totalorder %v737, 0
        %v740 = vxor.u32 %v734, 2147483648
        %v741 = vsel %vm739, %v726, %v740
        %vm742 = vcmp.eq.s32.totalorder %v737, 2
        %v743 = vxor.u32 %v726, 2147483648
        %v744 = vsel %vm742, %v743, %v734
        %v745 = vsel %vm738, %v741, %v744
        %v746 = vsel %vm735, nan, %v745
        %v747 = vand.u32 2147483647, %v266
        %vm748 = vcmp.le.f32.partialorder %v747, 0.7853982
        %vm749 = vcmp.lt.s32.totalorder %v266, 0
        %v750 = vand.u32 %v266, 2139095040
        %v751 = vshrl.u32 %v750, 23
        %v752 = vsub.s32 %v751, 127
        %v753 = vand.u32 2147483647, %v266
        %v754 = vand.u32 %v753, 8388607
        %v755 = vor.u32 %v754, 8388608
        %v756 = vsub.s32 0, %v755
        %v757 = vadd.s32 %v752, 1
        %vm758 = vcmp.gt.s32.totalorder %v757, 0
        %v759 = vsel %vm758, %v757, 0
        %v760 = vshrl.u32 %v759, 5
        %v761 = vand.u32 %v759, 31
        %v762 = vsub.s32 32, %v761
        %v763 = vshrl.u32 683565275, %v762
        %v764 = vshll.u32 683565275, %v761
        %v765 = vshrl.u32 2475754826, %v762
        %v766 = vor.u32 %v764, %v765
        %v767 = vshll.u32 2475754826, %v761
        %v768 = vshrl.u32 2131351028, %v762
        %v769 = vor.u32 %v767, %v768
        %v770 = vshll.u32 2131351028, %v761
        %v771 = vshrl.u32 2102212464, %v762
        %v772 = vor.u32 %v770, %v771
        %v773 = vshll.u32 2102212464, %v761
        %v774 = vshrl.u32 920167782, %v762
        %v775 = vor.u32 %v773, %v774
        %v776 = vshll.u32 920167782, %v761
        %v777 = vshrl.u32 1326507024, %v762
        %v778 = vor.u32 %v776, %v777
        %vm779 = vcmp.lt.s32.totalorder %v760, 1
        %vm780 = vcmp.lt.s32.totalorder %v760, 2
        %vm781 = vcmp.lt.s32.totalorder %v760, 3
        %vm782 = vcmp.lt.s32.totalorder %v760, 4
        %v783 = vsel %vm779, %v763, %v766
        %v784 = vsel %vm782, %v772, 2102212464
        %v785 = vsel %vm781, %v769, %v784
        %v786 = vsel %vm780, %v783, %v785
        %v787 = vsel %vm779, %v766, %v769
        %v788 = vsel %vm782, %v775, 920167782
        %v789 = vsel %vm781, %v772, %v788
        %v790 = vsel %vm780, %v787, %v789
        %v791 = vsel %vm779, %v769, %v772
        %v792 = vsel %vm782, %v778, 1326507024
        %v793 = vsel %vm781, %v775, %v792
        %v794 = vsel %vm780, %v791, %v793
        %v795 = vshll.u32 %v755, 8
        %v796 = vand.u32 %v795, 65535
        %v797 = vshrl.u32 %v795, 16
        %v798 = vand.u32 %v794, 65535
        %v799 = vshrl.u32 %v794, 16
        %v800 = vmul.u32 %v796, %v798
        %v801 = vmul.u32 %v796, %v799
        %v802 = vmul.u32 %v797, %v798
        %v803 = vmul.u32 %v797, %v799
        %v804 = vshll.u32 %v801, 16
        %v805 = vshrl.u32 %v801, 16
        %v806 = vshll.u32 %v802, 16
        %v807 = vshrl.u32 %v802, 16
        %vm808 = vc.u32 %v800, %v804
        %v809 = vsel %vm808, 1, 0
        %v810 = vadd.s32 %v800, %v804
        %v811 = vadd.s32 %v803, %v809
        %vm812 = vc.u32 %v810, %v806
        %v813 = vsel %vm812, 1, 0
        %v814 = vadd.s32 %v810, %v806
        %v815 = vadd.s32 %v811, %v813
        %v816 = vadd.s32 %v815, %v805
        %v817 = vadd.s32 %v816, %v807
        %v818 = vand.u32 %v795, 65535
        %v819 = vshrl.u32 %v795, 16
        %v820 = vand.u32 %v790, 65535
        %v821 = vshrl.u32 %v790, 16
        %v822 = vmul.u32 %v818, %v820
        %v823 = vmul.u32 %v818, %v821
        %v824 = vmul.u32 %v819, %v820
        %v825 = vmul.u32 %v819, %v821
        %v826 = vshll.u32 %v823, 16
        %v827 = vshrl.u32 %v823, 16
        %v828 = vshll.u32 %v824, 16
        %v829 = vshrl.u32 %v824, 16
        %vm830 = vc.u32 %v822, %v826
        %v831 = vsel %vm830, 1, 0
        %v832 = vadd.s32 %v822, %v826
        %v833 = vadd.s32 %v825, %v831
        %vm834 = vc.u32 %v832, %v828
        %v835 = vsel %vm834, 1, 0
        %v836 = vadd.s32 %v832, %v828
        %v837 = vadd.s32 %v833, %v835
        %v838 = vadd.s32 %v837, %v827
        %v839 = vadd.s32 %v838, %v829
        %v840 = vmul.u32 %v795, %v786
        %v841 = vadd.s32 %v817, %v836
        %vm842 = vc.u32 %v817, %v836
        %v843 = vadd.s32 %v839, 1
        %v844 = vsel %vm842, %v843, %v839
        %v845 = vadd.s32 %v840, %v844
        %v846 = vadd.s32 %v845, 536870912
        %v847 = vshrl.u32 %v846, 30
        %v848 = vshll.u32 %v847, 30
        %v849 = vsub.s32 %v845, %v848
        %vm850 = vcmp.lt.s32.totalorder %v849, 0
        %v851 = vsub.s32 0, %v849
        %v852 = vsel %vm850, %v851, %v849
        %v853 = vclz %v852
        %v854 = vsub.s32 %v853, 2
        %vm855 = vcmp.gt.s32.totalorder 0, %v854
        %v856 = vsel %vm855, 0, %v854
        %v857 = vsub.s32 32, %v856
        %v858 = vshll.u32 %v849, %v856
        %v859 = vshrl.u32 %v841, %v857
        %v860 = vor.u32 %v858, %v859
        %v861 = vsub.s32 4294967266, %v856
        %v862 = vadd.s32 %v861, 127
        %v863 = vshll.u32 %v862, 23
        %v864 = vor.u32 4788187, %v863
        %v865 = vand.u32 2147483647, %v864
        %v867 = vcvt.s32.f32 %v860
        %v868 = vmul.f32 %v867, %v865
        %v869 = vxor.u32 %v868, 2147483648
        %v870 = vsel %vm749, %v869, %v868
        %v871 = vsub.s32 4, %v847
        %v872 = vsel %vm749, %v871, %v847
        %v873 = vsel %vm748, %v266, %v870
        %v874 = vsel %vm748, 0, %v872
        %v875 = vmul.f32 %v873, %v873
        %v876 = vmul.f32 %v875, -0.001358992
        %v877 = vadd.f32 %v876, 0.041655596
        %v878 = vmul.f32 %v875, %v877
        %v879 = vadd.f32 %v878, -0.4999988
        %v880 = vmul.f32 %v875, %v879
        %v881 = vadd.f32 1.0, %v880
        %v882 = vmul.f32 %v873, %v873
        %v883 = vmul.f32 %v882, -0.00019511016
        %v884 = vadd.f32 %v883, 0.008332121
        %v885 = vmul.f32 %v882, %v884
        %v886 = vadd.f32 %v885, -0.16666654
        %v887 = vmul.f32 %v882, %v886
        %v888 = vadd.f32 %v887, 1.0
        %v889 = vmul.f32 %v888, %v873
        %vm890 = vweird.f32 %v266
        %v891 = vadd.s32 %v874, 3
        %v892 = vand.u32 %v891, 3
        %vm893 = vcmp.lt.s32.totalorder %v892, 2
        %vm894 = vcmp.eq.s32.totalorder %v892, 0
        %v895 = vxor.u32 %v889, 2147483648
        %v896 = vsel %vm894, %v881, %v895
        %vm897 = vcmp.eq.s32.totalorder %v892, 2
        %v898 = vxor.u32 %v881, 2147483648
        %v899 = vsel %vm897, %v898, %v889
        %v900 = vsel %vm893, %v896, %v899
        %v901 = vsel %vm890, nan, %v900
        %v902 = vand.u32 2147483647, %v267
        %vm903 = vcmp.le.f32.partialorder %v902, 0.7853982
        %vm904 = vcmp.lt.s32.totalorder %v267, 0
        %v905 = vand.u32 %v267, 2139095040
        %v906 = vshrl.u32 %v905, 23
        %v907 = vsub.s32 %v906, 127
        %v908 = vand.u32 2147483647, %v267
        %v909 = vand.u32 %v908, 8388607
        %v910 = vor.u32 %v909, 8388608
        %v911 = vsub.s32 0, %v910
        %v912 = vadd.s32 %v907, 1
        %vm913 = vcmp.gt.s32.totalorder %v912, 0
        %v914 = vsel %vm913, %v912, 0
        %v915 = vshrl.u32 %v914, 5
        %v916 = vand.u32 %v914, 31
        %v917 = vsub.s32 32, %v916
        %v918 = vshrl.u32 683565275, %v917
        %v919 = vshll.u32 683565275, %v916
        %v920 = vshrl.u32 2475754826, %v917
        %v921 = vor.u32 %v919, %v920
        %v922 = vshll.u32 2475754826, %v916
        %v923 = vshrl.u32 2131351028, %v917
        %v924 = vor.u32 %v922, %v923
        %v925 = vshll.u32 2131351028, %v916
        %v926 = vshrl.u32 2102212464, %v917
        %v927 = vor.u32 %v925, %v926
        %v928 = vshll.u32 2102212464, %v916
        %v929 = vshrl.u32 920167782, %v917
        %v930 = vor.u32 %v928, %v929
        %v931 = vshll.u32 920167782, %v916
        %v932 = vshrl.u32 1326507024, %v917
        %v933 = vor.u32 %v931, %v932
        %vm934 = vcmp.lt.s32.totalorder %v915, 1
        %vm935 = vcmp.lt.s32.totalorder %v915, 2
        %vm936 = vcmp.lt.s32.totalorder %v915, 3
        %vm937 = vcmp.lt.s32.totalorder %v915, 4
        %v938 = vsel %vm934, %v918, %v921
        %v939 = vsel %vm937, %v927, 2102212464
        %v940 = vsel %vm936, %v924, %v939
        %v941 = vsel %vm935, %v938, %v940
        %v942 = vsel %vm934, %v921, %v924
        %v943 = vsel %vm937, %v930, 920167782
        %v944 = vsel %vm936, %v927, %v943
        %v945 = vsel %vm935, %v942, %v944
        %v946 = vsel %vm934, %v924, %v927
        %v947 = vsel %vm937, %v933, 1326507024
        %v948 = vsel %vm936, %v930, %v947
        %v949 = vsel %vm935, %v946, %v948
        %v950 = vshll.u32 %v910, 8
        %v951 = vand.u32 %v950, 65535
        %v952 = vshrl.u32 %v950, 16
        %v953 = vand.u32 %v949, 65535
        %v954 = vshrl.u32 %v949, 16
        %v955 = vmul.u32 %v951, %v953
        %v956 = vmul.u32 %v951, %v954
        %v957 = vmul.u32 %v952, %v953
        %v958 = vmul.u32 %v952, %v954
        %v959 = vshll.u32 %v956, 16
        %v960 = vshrl.u32 %v956, 16
        %v961 = vshll.u32 %v957, 16
        %v962 = vshrl.u32 %v957, 16
        %vm963 = vc.u32 %v955, %v959
        %v964 = vsel %vm963, 1, 0
        %v965 = vadd.s32 %v955, %v959
        %v966 = vadd.s32 %v958, %v964
        %vm967 = vc.u32 %v965, %v961
        %v968 = vsel %vm967, 1, 0
        %v969 = vadd.s32 %v965, %v961
        %v970 = vadd.s32 %v966, %v968
        %v971 = vadd.s32 %v970, %v960
        %v972 = vadd.s32 %v971, %v962
        %v973 = vand.u32 %v950, 65535
        %v974 = vshrl.u32 %v950, 16
        %v975 = vand.u32 %v945, 65535
        %v976 = vshrl.u32 %v945, 16
        %v977 = vmul.u32 %v973, %v975
        %v978 = vmul.u32 %v973, %v976
        %v979 = vmul.u32 %v974, %v975
        %v980 = vmul.u32 %v974, %v976
        %v981 = vshll.u32 %v978, 16
        %v982 = vshrl.u32 %v978, 16
        %v983 = vshll.u32 %v979, 16
        %v984 = vshrl.u32 %v979, 16
        %vm985 = vc.u32 %v977, %v981
        %v986 = vsel %vm985, 1, 0
        %v987 = vadd.s32 %v977, %v981
        %v988 = vadd.s32 %v980, %v986
        %vm989 = vc.u32 %v987, %v983
        %v990 = vsel %vm989, 1, 0
        %v991 = vadd.s32 %v987, %v983
        %v992 = vadd.s32 %v988, %v990
        %v993 = vadd.s32 %v992, %v982
        %v994 = vadd.s32 %v993, %v984
        %v995 = vmul.u32 %v950, %v941
        %v996 = vadd.s32 %v972, %v991
        %vm997 = vc.u32 %v972, %v991
        %v998 = vadd.s32 %v994, 1
        %v999 = vsel %vm997, %v998, %v994
        %v1000 = vadd.s32 %v995, %v999
        %v1001 = vadd.s32 %v1000, 536870912
        %v1002 = vshrl.u32 %v1001, 30
        %v1003 = vshll.u32 %v1002, 30
        %v1004 = vsub.s32 %v1000, %v1003
        %vm1005 = vcmp.lt.s32.totalorder %v1004, 0
        %v1006 = vsub.s32 0, %v1004
        %v1007 = vsel %vm1005, %v1006, %v1004
        %v1008 = vclz %v1007
        %v1009 = vsub.s32 %v1008, 2
        %vm1010 = vcmp.gt.s32.totalorder 0, %v1009
        %v1011 = vsel %vm1010, 0, %v1009
        %v1012 = vsub.s32 32, %v1011
        %v1013 = vshll.u32 %v1004, %v1011
        %v1014 = vshrl.u32 %v996, %v1012
        %v1015 = vor.u32 %v1013, %v1014
        %v1016 = vsub.s32 4294967266, %v1011
        %v1017 = vadd.s32 %v1016, 127
        %v1018 = vshll.u32 %v1017, 23
        %v1019 = vor.u32 4788187, %v1018
        %v1020 = vand.u32 2147483647, %v1019
        %v1022 = vcvt.s32.f32 %v1015
        %v1023 = vmul.f32 %v1022, %v1020
        %v1024 = vxor.u32 %v1023, 2147483648
        %v1025 = vsel %vm904, %v1024, %v1023
        %v1026 = vsub.s32 4, %v1002
        %v1027 = vsel %vm904, %v1026, %v1002
        %v1028 = vsel %vm903, %v267, %v1025
        %v1029 = vsel %vm903, 0, %v1027
        %v1030 = vmul.f32 %v1028, %v1028
        %v1031 = vmul.f32 %v1030, -0.001358992
        %v1032 = vadd.f32 %v1031, 0.041655596
        %v1033 = vmul.f32 %v1030, %v1032
        %v1034 = vadd.f32 %v1033, -0.4999988
        %v1035 = vmul.f32 %v1030, %v1034
        %v1036 = vadd.f32 1.0, %v1035
        %v1037 = vmul.f32 %v1028, %v1028
        %v1038 = vmul.f32 %v1037, -0.00019511016
        %v1039 = vadd.f32 %v1038, 0.008332121
        %v1040 = vmul.f32 %v1037, %v1039
        %v1041 = vadd.f32 %v1040, -0.16666654
        %v1042 = vmul.f32 %v1037, %v1041
        %v1043 = vadd.f32 %v1042, 1.0
        %v1044 = vmul.f32 %v1043, %v1028
        %vm1045 = vweird.f32 %v267
        %v1046 = vadd.s32 %v1029, 3
        %v1047 = vand.u32 %v1046, 3
        %vm1048 = vcmp.lt.s32.totalorder %v1047, 2
        %vm1049 = vcmp.eq.s32.totalorder %v1047, 0
        %v1050 = vxor.u32 %v1044, 2147483648
        %v1051 = vsel %vm1049, %v1036, %v1050
        %vm1052 = vcmp.eq.s32.totalorder %v1047, 2
        %v1053 = vxor.u32 %v1036, 2147483648
        %v1054 = vsel %vm1052, %v1053, %v1044
        %v1055 = vsel %vm1048, %v1051, %v1054
        %v1056 = vsel %vm1045, nan, %v1055
        %v1057 = vand.u32 2147483647, %v268
        %vm1058 = vcmp.le.f32.partialorder %v1057, 0.7853982
        %vm1059 = vcmp.lt.s32.totalorder %v268, 0
        %v1060 = vand.u32 %v268, 2139095040
        %v1061 = vshrl.u32 %v1060, 23
        %v1062 = vsub.s32 %v1061, 127
        %v1063 = vand.u32 2147483647, %v268
        %v1064 = vand.u32 %v1063, 8388607
        %v1065 = vor.u32 %v1064, 8388608
        %v1066 = vsub.s32 0, %v1065
        %v1067 = vadd.s32 %v1062, 1
        %vm1068 = vcmp.gt.s32.totalorder %v1067, 0
        %v1069 = vsel %vm1068, %v1067, 0
        %v1070 = vshrl.u32 %v1069, 5
        %v1071 = vand.u32 %v1069, 31
        %v1072 = vsub.s32 32, %v1071
        %v1073 = vshrl.u32 683565275, %v1072
        %v1074 = vshll.u32 683565275, %v1071
        %v1075 = vshrl.u32 2475754826, %v1072
        %v1076 = vor.u32 %v1074, %v1075
        %v1077 = vshll.u32 2475754826, %v1071
        %v1078 = vshrl.u32 2131351028, %v1072
        %v1079 = vor.u32 %v1077, %v1078
        %v1080 = vshll.u32 2131351028, %v1071
        %v1081 = vshrl.u32 2102212464, %v1072
        %v1082 = vor.u32 %v1080, %v1081
        %v1083 = vshll.u32 2102212464, %v1071
        %v1084 = vshrl.u32 920167782, %v1072
        %v1085 = vor.u32 %v1083, %v1084
        %v1086 = vshll.u32 920167782, %v1071
        %v1087 = vshrl.u32 1326507024, %v1072
        %v1088 = vor.u32 %v1086, %v1087
        %vm1089 = vcmp.lt.s32.totalorder %v1070, 1
        %vm1090 = vcmp.lt.s32.totalorder %v1070, 2
        %vm1091 = vcmp.lt.s32.totalorder %v1070, 3
        %vm1092 = vcmp.lt.s32.totalorder %v1070, 4
        %v1093 = vsel %vm1089, %v1073, %v1076
        %v1094 = vsel %vm1092, %v1082, 2102212464
        %v1095 = vsel %vm1091, %v1079, %v1094
        %v1096 = vsel %vm1090, %v1093, %v1095
        %v1097 = vsel %vm1089, %v1076, %v1079
        %v1098 = vsel %vm1092, %v1085, 920167782
        %v1099 = vsel %vm1091, %v1082, %v1098
        %v1100 = vsel %vm1090, %v1097, %v1099
        %v1101 = vsel %vm1089, %v1079, %v1082
        %v1102 = vsel %vm1092, %v1088, 1326507024
        %v1103 = vsel %vm1091, %v1085, %v1102
        %v1104 = vsel %vm1090, %v1101, %v1103
        %v1105 = vshll.u32 %v1065, 8
        %v1106 = vand.u32 %v1105, 65535
        %v1107 = vshrl.u32 %v1105, 16
        %v1108 = vand.u32 %v1104, 65535
        %v1109 = vshrl.u32 %v1104, 16
        %v1110 = vmul.u32 %v1106, %v1108
        %v1111 = vmul.u32 %v1106, %v1109
        %v1112 = vmul.u32 %v1107, %v1108
        %v1113 = vmul.u32 %v1107, %v1109
        %v1114 = vshll.u32 %v1111, 16
        %v1115 = vshrl.u32 %v1111, 16
        %v1116 = vshll.u32 %v1112, 16
        %v1117 = vshrl.u32 %v1112, 16
        %vm1118 = vc.u32 %v1110, %v1114
        %v1119 = vsel %vm1118, 1, 0
        %v1120 = vadd.s32 %v1110, %v1114
        %v1121 = vadd.s32 %v1113, %v1119
        %vm1122 = vc.u32 %v1120, %v1116
        %v1123 = vsel %vm1122, 1, 0
        %v1124 = vadd.s32 %v1120, %v1116
        %v1125 = vadd.s32 %v1121, %v1123
        %v1126 = vadd.s32 %v1125, %v1115
        %v1127 = vadd.s32 %v1126, %v1117
        %v1128 = vand.u32 %v1105, 65535
        %v1129 = vshrl.u32 %v1105, 16
        %v1130 = vand.u32 %v1100, 65535
        %v1131 = vshrl.u32 %v1100, 16
        %v1132 = vmul.u32 %v1128, %v1130
        %v1133 = vmul.u32 %v1128, %v1131
        %v1134 = vmul.u32 %v1129, %v1130
        %v1135 = vmul.u32 %v1129, %v1131
        %v1136 = vshll.u32 %v1133, 16
        %v1137 = vshrl.u32 %v1133, 16
        %v1138 = vshll.u32 %v1134, 16
        %v1139 = vshrl.u32 %v1134, 16
        %vm1140 = vc.u32 %v1132, %v1136
        %v1141 = vsel %vm1140, 1, 0
        %v1142 = vadd.s32 %v1132, %v1136
        %v1143 = vadd.s32 %v1135, %v1141
        %vm1144 = vc.u32 %v1142, %v1138
        %v1145 = vsel %vm1144, 1, 0
        %v1146 = vadd.s32 %v1142, %v1138
        %v1147 = vadd.s32 %v1143, %v1145
        %v1148 = vadd.s32 %v1147, %v1137
        %v1149 = vadd.s32 %v1148, %v1139
        %v1150 = vmul.u32 %v1105, %v1096
        %v1151 = vadd.s32 %v1127, %v1146
        %vm1152 = vc.u32 %v1127, %v1146
        %v1153 = vadd.s32 %v1149, 1
        %v1154 = vsel %vm1152, %v1153, %v1149
        %v1155 = vadd.s32 %v1150, %v1154
        %v1156 = vadd.s32 %v1155, 536870912
        %v1157 = vshrl.u32 %v1156, 30
        %v1158 = vshll.u32 %v1157, 30
        %v1159 = vsub.s32 %v1155, %v1158
        %vm1160 = vcmp.lt.s32.totalorder %v1159, 0
        %v1161 = vsub.s32 0, %v1159
        %v1162 = vsel %vm1160, %v1161, %v1159
        %v1163 = vclz %v1162
        %v1164 = vsub.s32 %v1163, 2
        %vm1165 = vcmp.gt.s32.totalorder 0, %v1164
        %v1166 = vsel %vm1165, 0, %v1164
        %v1167 = vsub.s32 32, %v1166
        %v1168 = vshll.u32 %v1159, %v1166
        %v1169 = vshrl.u32 %v1151, %v1167
        %v1170 = vor.u32 %v1168, %v1169
        %v1171 = vsub.s32 4294967266, %v1166
        %v1172 = vadd.s32 %v1171, 127
        %v1173 = vshll.u32 %v1172, 23
        %v1174 = vor.u32 4788187, %v1173
        %v1175 = vand.u32 2147483647, %v1174
        %v1177 = vcvt.s32.f32 %v1170
        %v1178 = vmul.f32 %v1177, %v1175
        %v1179 = vxor.u32 %v1178, 2147483648
        %v1180 = vsel %vm1059, %v1179, %v1178
        %v1181 = vsub.s32 4, %v1157
        %v1182 = vsel %vm1059, %v1181, %v1157
        %v1183 = vsel %vm1058, %v268, %v1180
        %v1184 = vsel %vm1058, 0, %v1182
        %v1185 = vmul.f32 %v1183, %v1183
        %v1186 = vmul.f32 %v1185, -0.001358992
        %v1187 = vadd.f32 %v1186, 0.041655596
        %v1188 = vmul.f32 %v1185, %v1187
        %v1189 = vadd.f32 %v1188, -0.4999988
        %v1190 = vmul.f32 %v1185, %v1189
        %v1191 = vadd.f32 1.0, %v1190
        %v1192 = vmul.f32 %v1183, %v1183
        %v1193 = vmul.f32 %v1192, -0.00019511016
        %v1194 = vadd.f32 %v1193, 0.008332121
        %v1195 = vmul.f32 %v1192, %v1194
        %v1196 = vadd.f32 %v1195, -0.16666654
        %v1197 = vmul.f32 %v1192, %v1196
        %v1198 = vadd.f32 %v1197, 1.0
        %v1199 = vmul.f32 %v1198, %v1183
        %vm1200 = vweird.f32 %v268
        %v1201 = vadd.s32 %v1184, 3
        %v1202 = vand.u32 %v1201, 3
        %vm1203 = vcmp.lt.s32.totalorder %v1202, 2
        %vm1204 = vcmp.eq.s32.totalorder %v1202, 0
        %v1205 = vxor.u32 %v1199, 2147483648
        %v1206 = vsel %vm1204, %v1191, %v1205
        %vm1207 = vcmp.eq.s32.totalorder %v1202, 2
        %v1208 = vxor.u32 %v1191, 2147483648
        %v1209 = vsel %vm1207, %v1208, %v1199
        %v1210 = vsel %vm1203, %v1206, %v1209
        %v1211 = vsel %vm1200, nan, %v1210
        %v1212 = vand.u32 2147483647, %v269
        %vm1213 = vcmp.le.f32.partialorder %v1212, 0.7853982
        %vm1214 = vcmp.lt.s32.totalorder %v269, 0
        %v1215 = vand.u32 %v269, 2139095040
        %v1216 = vshrl.u32 %v1215, 23
        %v1217 = vsub.s32 %v1216, 127
        %v1218 = vand.u32 2147483647, %v269
        %v1219 = vand.u32 %v1218, 8388607
        %v1220 = vor.u32 %v1219, 8388608
        %v1221 = vsub.s32 0, %v1220
        %v1222 = vadd.s32 %v1217, 1
        %vm1223 = vcmp.gt.s32.totalorder %v1222, 0
        %v1224 = vsel %vm1223, %v1222, 0
        %v1225 = vshrl.u32 %v1224, 5
        %v1226 = vand.u32 %v1224, 31
        %v1227 = vsub.s32 32, %v1226
        %v1228 = vshrl.u32 683565275, %v1227
        %v1229 = vshll.u32 683565275, %v1226
        %v1230 = vshrl.u32 2475754826, %v1227
        %v1231 = vor.u32 %v1229, %v1230
        %v1232 = vshll.u32 2475754826, %v1226
        %v1233 = vshrl.u32 2131351028, %v1227
        %v1234 = vor.u32 %v1232, %v1233
        %v1235 = vshll.u32 2131351028, %v1226
        %v1236 = vshrl.u32 2102212464, %v1227
        %v1237 = vor.u32 %v1235, %v1236
        %v1238 = vshll.u32 2102212464, %v1226
        %v1239 = vshrl.u32 920167782, %v1227
        %v1240 = vor.u32 %v1238, %v1239
        %v1241 = vshll.u32 920167782, %v1226
        %v1242 = vshrl.u32 1326507024, %v1227
        %v1243 = vor.u32 %v1241, %v1242
        %vm1244 = vcmp.lt.s32.totalorder %v1225, 1
        %vm1245 = vcmp.lt.s32.totalorder %v1225, 2
        %vm1246 = vcmp.lt.s32.totalorder %v1225, 3
        %vm1247 = vcmp.lt.s32.totalorder %v1225, 4
        %v1248 = vsel %vm1244, %v1228, %v1231
        %v1249 = vsel %vm1247, %v1237, 2102212464
        %v1250 = vsel %vm1246, %v1234, %v1249
        %v1251 = vsel %vm1245, %v1248, %v1250
        %v1252 = vsel %vm1244, %v1231, %v1234
        %v1253 = vsel %vm1247, %v1240, 920167782
        %v1254 = vsel %vm1246, %v1237, %v1253
        %v1255 = vsel %vm1245, %v1252, %v1254
        %v1256 = vsel %vm1244, %v1234, %v1237
        %v1257 = vsel %vm1247, %v1243, 1326507024
        %v1258 = vsel %vm1246, %v1240, %v1257
        %v1259 = vsel %vm1245, %v1256, %v1258
        %v1260 = vshll.u32 %v1220, 8
        %v1261 = vand.u32 %v1260, 65535
        %v1262 = vshrl.u32 %v1260, 16
        %v1263 = vand.u32 %v1259, 65535
        %v1264 = vshrl.u32 %v1259, 16
        %v1265 = vmul.u32 %v1261, %v1263
        %v1266 = vmul.u32 %v1261, %v1264
        %v1267 = vmul.u32 %v1262, %v1263
        %v1268 = vmul.u32 %v1262, %v1264
        %v1269 = vshll.u32 %v1266, 16
        %v1270 = vshrl.u32 %v1266, 16
        %v1271 = vshll.u32 %v1267, 16
        %v1272 = vshrl.u32 %v1267, 16
        %vm1273 = vc.u32 %v1265, %v1269
        %v1274 = vsel %vm1273, 1, 0
        %v1275 = vadd.s32 %v1265, %v1269
        %v1276 = vadd.s32 %v1268, %v1274
        %vm1277 = vc.u32 %v1275, %v1271
        %v1278 = vsel %vm1277, 1, 0
        %v1279 = vadd.s32 %v1275, %v1271
        %v1280 = vadd.s32 %v1276, %v1278
        %v1281 = vadd.s32 %v1280, %v1270
        %v1282 = vadd.s32 %v1281, %v1272
        %v1283 = vand.u32 %v1260, 65535
        %v1284 = vshrl.u32 %v1260, 16
        %v1285 = vand.u32 %v1255, 65535
        %v1286 = vshrl.u32 %v1255, 16
        %v1287 = vmul.u32 %v1283, %v1285
        %v1288 = vmul.u32 %v1283, %v1286
        %v1289 = vmul.u32 %v1284, %v1285
        %v1290 = vmul.u32 %v1284, %v1286
        %v1291 = vshll.u32 %v1288, 16
        %v1292 = vshrl.u32 %v1288, 16
        %v1293 = vshll.u32 %v1289, 16
        %v1294 = vshrl.u32 %v1289, 16
        %vm1295 = vc.u32 %v1287, %v1291
        %v1296 = vsel %vm1295, 1, 0
        %v1297 = vadd.s32 %v1287, %v1291
        %v1298 = vadd.s32 %v1290, %v1296
        %vm1299 = vc.u32 %v1297, %v1293
        %v1300 = vsel %vm1299, 1, 0
        %v1301 = vadd.s32 %v1297, %v1293
        %v1302 = vadd.s32 %v1298, %v1300
        %v1303 = vadd.s32 %v1302, %v1292
        %v1304 = vadd.s32 %v1303, %v1294
        %v1305 = vmul.u32 %v1260, %v1251
        %v1306 = vadd.s32 %v1282, %v1301
        %vm1307 = vc.u32 %v1282, %v1301
        %v1308 = vadd.s32 %v1304, 1
        %v1309 = vsel %vm1307, %v1308, %v1304
        %v1310 = vadd.s32 %v1305, %v1309
        %v1311 = vadd.s32 %v1310, 536870912
        %v1312 = vshrl.u32 %v1311, 30
        %v1313 = vshll.u32 %v1312, 30
        %v1314 = vsub.s32 %v1310, %v1313
        %vm1315 = vcmp.lt.s32.totalorder %v1314, 0
        %v1316 = vsub.s32 0, %v1314
        %v1317 = vsel %vm1315, %v1316, %v1314
        %v1318 = vclz %v1317
        %v1319 = vsub.s32 %v1318, 2
        %vm1320 = vcmp.gt.s32.totalorder 0, %v1319
        %v1321 = vsel %vm1320, 0, %v1319
        %v1322 = vsub.s32 32, %v1321
        %v1323 = vshll.u32 %v1314, %v1321
        %v1324 = vshrl.u32 %v1306, %v1322
        %v1325 = vor.u32 %v1323, %v1324
        %v1326 = vsub.s32 4294967266, %v1321
        %v1327 = vadd.s32 %v1326, 127
        %v1328 = vshll.u32 %v1327, 23
        %v1329 = vor.u32 4788187, %v1328
        %v1330 = vand.u32 2147483647, %v1329
        %v1332 = vcvt.s32.f32 %v1325
        %v1333 = vmul.f32 %v1332, %v1330
        %v1334 = vxor.u32 %v1333, 2147483648
        %v1335 = vsel %vm1214, %v1334, %v1333
        %v1336 = vsub.s32 4, %v1312
        %v1337 = vsel %vm1214, %v1336, %v1312
        %v1338 = vsel %vm1213, %v269, %v1335
        %v1339 = vsel %vm1213, 0, %v1337
        %v1340 = vmul.f32 %v1338, %v1338
        %v1341 = vmul.f32 %v1340, -0.001358992
        %v1342 = vadd.f32 %v1341, 0.041655596
        %v1343 = vmul.f32 %v1340, %v1342
        %v1344 = vadd.f32 %v1343, -0.4999988
        %v1345 = vmul.f32 %v1340, %v1344
        %v1346 = vadd.f32 1.0, %v1345
        %v1347 = vmul.f32 %v1338, %v1338
        %v1348 = vmul.f32 %v1347, -0.00019511016
        %v1349 = vadd.f32 %v1348, 0.008332121
        %v1350 = vmul.f32 %v1347, %v1349
        %v1351 = vadd.f32 %v1350, -0.16666654
        %v1352 = vmul.f32 %v1347, %v1351
        %v1353 = vadd.f32 %v1352, 1.0
        %v1354 = vmul.f32 %v1353, %v1338
        %vm1355 = vweird.f32 %v269
        %v1356 = vadd.s32 %v1339, 3
        %v1357 = vand.u32 %v1356, 3
        %vm1358 = vcmp.lt.s32.totalorder %v1357, 2
        %vm1359 = vcmp.eq.s32.totalorder %v1357, 0
        %v1360 = vxor.u32 %v1354, 2147483648
        %v1361 = vsel %vm1359, %v1346, %v1360
        %vm1362 = vcmp.eq.s32.totalorder %v1357, 2
        %v1363 = vxor.u32 %v1346, 2147483648
        %v1364 = vsel %vm1362, %v1363, %v1354
        %v1365 = vsel %vm1358, %v1361, %v1364
        %v1366 = vsel %vm1355, nan, %v1365
        %v1367 = vand.u32 2147483647, %v270
        %vm1368 = vcmp.le.f32.partialorder %v1367, 0.7853982
        %vm1369 = vcmp.lt.s32.totalorder %v270, 0
        %v1370 = vand.u32 %v270, 2139095040
        %v1371 = vshrl.u32 %v1370, 23
        %v1372 = vsub.s32 %v1371, 127
        %v1373 = vand.u32 2147483647, %v270
        %v1374 = vand.u32 %v1373, 8388607
        %v1375 = vor.u32 %v1374, 8388608
        %v1376 = vsub.s32 0, %v1375
        %v1377 = vadd.s32 %v1372, 1
        %vm1378 = vcmp.gt.s32.totalorder %v1377, 0
        %v1379 = vsel %vm1378, %v1377, 0
        %v1380 = vshrl.u32 %v1379, 5
        %v1381 = vand.u32 %v1379, 31
        %v1382 = vsub.s32 32, %v1381
        %v1383 = vshrl.u32 683565275, %v1382
        %v1384 = vshll.u32 683565275, %v1381
        %v1385 = vshrl.u32 2475754826, %v1382
        %v1386 = vor.u32 %v1384, %v1385
        %v1387 = vshll.u32 2475754826, %v1381
        %v1388 = vshrl.u32 2131351028, %v1382
        %v1389 = vor.u32 %v1387, %v1388
        %v1390 = vshll.u32 2131351028, %v1381
        %v1391 = vshrl.u32 2102212464, %v1382
        %v1392 = vor.u32 %v1390, %v1391
        %v1393 = vshll.u32 2102212464, %v1381
        %v1394 = vshrl.u32 920167782, %v1382
        %v1395 = vor.u32 %v1393, %v1394
        %v1396 = vshll.u32 920167782, %v1381
        %v1397 = vshrl.u32 1326507024, %v1382
        %v1398 = vor.u32 %v1396, %v1397
        %vm1399 = vcmp.lt.s32.totalorder %v1380, 1
        %vm1400 = vcmp.lt.s32.totalorder %v1380, 2
        %vm1401 = vcmp.lt.s32.totalorder %v1380, 3
        %vm1402 = vcmp.lt.s32.totalorder %v1380, 4
        %v1403 = vsel %vm1399, %v1383, %v1386
        %v1404 = vsel %vm1402, %v1392, 2102212464
        %v1405 = vsel %vm1401, %v1389, %v1404
        %v1406 = vsel %vm1400, %v1403, %v1405
        %v1407 = vsel %vm1399, %v1386, %v1389
        %v1408 = vsel %vm1402, %v1395, 920167782
        %v1409 = vsel %vm1401, %v1392, %v1408
        %v1410 = vsel %vm1400, %v1407, %v1409
        %v1411 = vsel %vm1399, %v1389, %v1392
        %v1412 = vsel %vm1402, %v1398, 1326507024
        %v1413 = vsel %vm1401, %v1395, %v1412
        %v1414 = vsel %vm1400, %v1411, %v1413
        %v1415 = vshll.u32 %v1375, 8
        %v1416 = vand.u32 %v1415, 65535
        %v1417 = vshrl.u32 %v1415, 16
        %v1418 = vand.u32 %v1414, 65535
        %v1419 = vshrl.u32 %v1414, 16
        %v1420 = vmul.u32 %v1416, %v1418
        %v1421 = vmul.u32 %v1416, %v1419
        %v1422 = vmul.u32 %v1417, %v1418
        %v1423 = vmul.u32 %v1417, %v1419
        %v1424 = vshll.u32 %v1421, 16
        %v1425 = vshrl.u32 %v1421, 16
        %v1426 = vshll.u32 %v1422, 16
        %v1427 = vshrl.u32 %v1422, 16
        %vm1428 = vc.u32 %v1420, %v1424
        %v1429 = vsel %vm1428, 1, 0
        %v1430 = vadd.s32 %v1420, %v1424
        %v1431 = vadd.s32 %v1423, %v1429
        %vm1432 = vc.u32 %v1430, %v1426
        %v1433 = vsel %vm1432, 1, 0
        %v1434 = vadd.s32 %v1430, %v1426
        %v1435 = vadd.s32 %v1431, %v1433
        %v1436 = vadd.s32 %v1435, %v1425
        %v1437 = vadd.s32 %v1436, %v1427
        %v1438 = vand.u32 %v1415, 65535
        %v1439 = vshrl.u32 %v1415, 16
        %v1440 = vand.u32 %v1410, 65535
        %v1441 = vshrl.u32 %v1410, 16
        %v1442 = vmul.u32 %v1438, %v1440
        %v1443 = vmul.u32 %v1438, %v1441
        %v1444 = vmul.u32 %v1439, %v1440
        %v1445 = vmul.u32 %v1439, %v1441
        %v1446 = vshll.u32 %v1443, 16
        %v1447 = vshrl.u32 %v1443, 16
        %v1448 = vshll.u32 %v1444, 16
        %v1449 = vshrl.u32 %v1444, 16
        %vm1450 = vc.u32 %v1442, %v1446
        %v1451 = vsel %vm1450, 1, 0
        %v1452 = vadd.s32 %v1442, %v1446
        %v1453 = vadd.s32 %v1445, %v1451
        %vm1454 = vc.u32 %v1452, %v1448
        %v1455 = vsel %vm1454, 1, 0
        %v1456 = vadd.s32 %v1452, %v1448
        %v1457 = vadd.s32 %v1453, %v1455
        %v1458 = vadd.s32 %v1457, %v1447
        %v1459 = vadd.s32 %v1458, %v1449
        %v1460 = vmul.u32 %v1415, %v1406
        %v1461 = vadd.s32 %v1437, %v1456
        %vm1462 = vc.u32 %v1437, %v1456
        %v1463 = vadd.s32 %v1459, 1
        %v1464 = vsel %vm1462, %v1463, %v1459
        %v1465 = vadd.s32 %v1460, %v1464
        %v1466 = vadd.s32 %v1465, 536870912
        %v1467 = vshrl.u32 %v1466, 30
        %v1468 = vshll.u32 %v1467, 30
        %v1469 = vsub.s32 %v1465, %v1468
        %vm1470 = vcmp.lt.s32.totalorder %v1469, 0
        %v1471 = vsub.s32 0, %v1469
        %v1472 = vsel %vm1470, %v1471, %v1469
        %v1473 = vclz %v1472
        %v1474 = vsub.s32 %v1473, 2
        %vm1475 = vcmp.gt.s32.totalorder 0, %v1474
        %v1476 = vsel %vm1475, 0, %v1474
        %v1477 = vsub.s32 32, %v1476
        %v1478 = vshll.u32 %v1469, %v1476
        %v1479 = vshrl.u32 %v1461, %v1477
        %v1480 = vor.u32 %v1478, %v1479
        %v1481 = vsub.s32 4294967266, %v1476
        %v1482 = vadd.s32 %v1481, 127
        %v1483 = vshll.u32 %v1482, 23
        %v1484 = vor.u32 4788187, %v1483
        %v1485 = vand.u32 2147483647, %v1484
        %v1487 = vcvt.s32.f32 %v1480
        %v1488 = vmul.f32 %v1487, %v1485
        %v1489 = vxor.u32 %v1488, 2147483648
        %v1490 = vsel %vm1369, %v1489, %v1488
        %v1491 = vsub.s32 4, %v1467
        %v1492 = vsel %vm1369, %v1491, %v1467
        %v1493 = vsel %vm1368, %v270, %v1490
        %v1494 = vsel %vm1368, 0, %v1492
        %v1495 = vmul.f32 %v1493, %v1493
        %v1496 = vmul.f32 %v1495, -0.001358992
        %v1497 = vadd.f32 %v1496, 0.041655596
        %v1498 = vmul.f32 %v1495, %v1497
        %v1499 = vadd.f32 %v1498, -0.4999988
        %v1500 = vmul.f32 %v1495, %v1499
        %v1501 = vadd.f32 1.0, %v1500
        %v1502 = vmul.f32 %v1493, %v1493
        %v1503 = vmul.f32 %v1502, -0.00019511016
        %v1504 = vadd.f32 %v1503, 0.008332121
        %v1505 = vmul.f32 %v1502, %v1504
        %v1506 = vadd.f32 %v1505, -0.16666654
        %v1507 = vmul.f32 %v1502, %v1506
        %v1508 = vadd.f32 %v1507, 1.0
        %v1509 = vmul.f32 %v1508, %v1493
        %vm1510 = vweird.f32 %v270
        %v1511 = vadd.s32 %v1494, 3
        %v1512 = vand.u32 %v1511, 3
        %vm1513 = vcmp.lt.s32.totalorder %v1512, 2
        %vm1514 = vcmp.eq.s32.totalorder %v1512, 0
        %v1515 = vxor.u32 %v1509, 2147483648
        %v1516 = vsel %vm1514, %v1501, %v1515
        %vm1517 = vcmp.eq.s32.totalorder %v1512, 2
        %v1518 = vxor.u32 %v1501, 2147483648
        %v1519 = vsel %vm1517, %v1518, %v1509
        %v1520 = vsel %vm1513, %v1516, %v1519
        %v1521 = vsel %vm1510, nan, %v1520
        %v1522 = vand.u32 2147483647, %v271
        %vm1523 = vcmp.le.f32.partialorder %v1522, 0.7853982
        %vm1524 = vcmp.lt.s32.totalorder %v271, 0
        %v1525 = vand.u32 %v271, 2139095040
        %v1526 = vshrl.u32 %v1525, 23
        %v1527 = vsub.s32 %v1526, 127
        %v1528 = vand.u32 2147483647, %v271
        %v1529 = vand.u32 %v1528, 8388607
        %v1530 = vor.u32 %v1529, 8388608
        %v1531 = vsub.s32 0, %v1530
        %v1532 = vadd.s32 %v1527, 1
        %vm1533 = vcmp.gt.s32.totalorder %v1532, 0
        %v1534 = vsel %vm1533, %v1532, 0
        %v1535 = vshrl.u32 %v1534, 5
        %v1536 = vand.u32 %v1534, 31
        %v1537 = vsub.s32 32, %v1536
        %v1538 = vshrl.u32 683565275, %v1537
        %v1539 = vshll.u32 683565275, %v1536
        %v1540 = vshrl.u32 2475754826, %v1537
        %v1541 = vor.u32 %v1539, %v1540
        %v1542 = vshll.u32 2475754826, %v1536
        %v1543 = vshrl.u32 2131351028, %v1537
        %v1544 = vor.u32 %v1542, %v1543
        %v1545 = vshll.u32 2131351028, %v1536
        %v1546 = vshrl.u32 2102212464, %v1537
        %v1547 = vor.u32 %v1545, %v1546
        %v1548 = vshll.u32 2102212464, %v1536
        %v1549 = vshrl.u32 920167782, %v1537
        %v1550 = vor.u32 %v1548, %v1549
        %v1551 = vshll.u32 920167782, %v1536
        %v1552 = vshrl.u32 1326507024, %v1537
        %v1553 = vor.u32 %v1551, %v1552
        %vm1554 = vcmp.lt.s32.totalorder %v1535, 1
        %vm1555 = vcmp.lt.s32.totalorder %v1535, 2
        %vm1556 = vcmp.lt.s32.totalorder %v1535, 3
        %vm1557 = vcmp.lt.s32.totalorder %v1535, 4
        %v1558 = vsel %vm1554, %v1538, %v1541
        %v1559 = vsel %vm1557, %v1547, 2102212464
        %v1560 = vsel %vm1556, %v1544, %v1559
        %v1561 = vsel %vm1555, %v1558, %v1560
        %v1562 = vsel %vm1554, %v1541, %v1544
        %v1563 = vsel %vm1557, %v1550, 920167782
        %v1564 = vsel %vm1556, %v1547, %v1563
        %v1565 = vsel %vm1555, %v1562, %v1564
        %v1566 = vsel %vm1554, %v1544, %v1547
        %v1567 = vsel %vm1557, %v1553, 1326507024
        %v1568 = vsel %vm1556, %v1550, %v1567
        %v1569 = vsel %vm1555, %v1566, %v1568
        %v1570 = vshll.u32 %v1530, 8
        %v1571 = vand.u32 %v1570, 65535
        %v1572 = vshrl.u32 %v1570, 16
        %v1573 = vand.u32 %v1569, 65535
        %v1574 = vshrl.u32 %v1569, 16
        %v1575 = vmul.u32 %v1571, %v1573
        %v1576 = vmul.u32 %v1571, %v1574
        %v1577 = vmul.u32 %v1572, %v1573
        %v1578 = vmul.u32 %v1572, %v1574
        %v1579 = vshll.u32 %v1576, 16
        %v1580 = vshrl.u32 %v1576, 16
        %v1581 = vshll.u32 %v1577, 16
        %v1582 = vshrl.u32 %v1577, 16
        %vm1583 = vc.u32 %v1575, %v1579
        %v1584 = vsel %vm1583, 1, 0
        %v1585 = vadd.s32 %v1575, %v1579
        %v1586 = vadd.s32 %v1578, %v1584
        %vm1587 = vc.u32 %v1585, %v1581
        %v1588 = vsel %vm1587, 1, 0
        %v1589 = vadd.s32 %v1585, %v1581
        %v1590 = vadd.s32 %v1586, %v1588
        %v1591 = vadd.s32 %v1590, %v1580
        %v1592 = vadd.s32 %v1591, %v1582
        %v1593 = vand.u32 %v1570, 65535
        %v1594 = vshrl.u32 %v1570, 16
        %v1595 = vand.u32 %v1565, 65535
        %v1596 = vshrl.u32 %v1565, 16
        %v1597 = vmul.u32 %v1593, %v1595
        %v1598 = vmul.u32 %v1593, %v1596
        %v1599 = vmul.u32 %v1594, %v1595
        %v1600 = vmul.u32 %v1594, %v1596
        %v1601 = vshll.u32 %v1598, 16
        %v1602 = vshrl.u32 %v1598, 16
        %v1603 = vshll.u32 %v1599, 16
        %v1604 = vshrl.u32 %v1599, 16
        %vm1605 = vc.u32 %v1597, %v1601
        %v1606 = vsel %vm1605, 1, 0
        %v1607 = vadd.s32 %v1597, %v1601
        %v1608 = vadd.s32 %v1600, %v1606
        %vm1609 = vc.u32 %v1607, %v1603
        %v1610 = vsel %vm1609, 1, 0
        %v1611 = vadd.s32 %v1607, %v1603
        %v1612 = vadd.s32 %v1608, %v1610
        %v1613 = vadd.s32 %v1612, %v1602
        %v1614 = vadd.s32 %v1613, %v1604
        %v1615 = vmul.u32 %v1570, %v1561
        %v1616 = vadd.s32 %v1592, %v1611
        %vm1617 = vc.u32 %v1592, %v1611
        %v1618 = vadd.s32 %v1614, 1
        %v1619 = vsel %vm1617, %v1618, %v1614
        %v1620 = vadd.s32 %v1615, %v1619
        %v1621 = vadd.s32 %v1620, 536870912
        %v1622 = vshrl.u32 %v1621, 30
        %v1623 = vshll.u32 %v1622, 30
        %v1624 = vsub.s32 %v1620, %v1623
        %vm1625 = vcmp.lt.s32.totalorder %v1624, 0
        %v1626 = vsub.s32 0, %v1624
        %v1627 = vsel %vm1625, %v1626, %v1624
        %v1628 = vclz %v1627
        %v1629 = vsub.s32 %v1628, 2
        %vm1630 = vcmp.gt.s32.totalorder 0, %v1629
        %v1631 = vsel %vm1630, 0, %v1629
        %v1632 = vsub.s32 32, %v1631
        %v1633 = vshll.u32 %v1624, %v1631
        %v1634 = vshrl.u32 %v1616, %v1632
        %v1635 = vor.u32 %v1633, %v1634
        %v1636 = vsub.s32 4294967266, %v1631
        %v1637 = vadd.s32 %v1636, 127
        %v1638 = vshll.u32 %v1637, 23
        %v1639 = vor.u32 4788187, %v1638
        %v1640 = vand.u32 2147483647, %v1639
        %v1642 = vcvt.s32.f32 %v1635
        %v1643 = vmul.f32 %v1642, %v1640
        %v1644 = vxor.u32 %v1643, 2147483648
        %v1645 = vsel %vm1524, %v1644, %v1643
        %v1646 = vsub.s32 4, %v1622
        %v1647 = vsel %vm1524, %v1646, %v1622
        %v1648 = vsel %vm1523, %v271, %v1645
        %v1649 = vsel %vm1523, 0, %v1647
        %v1650 = vmul.f32 %v1648, %v1648
        %v1651 = vmul.f32 %v1650, -0.001358992
        %v1652 = vadd.f32 %v1651, 0.041655596
        %v1653 = vmul.f32 %v1650, %v1652
        %v1654 = vadd.f32 %v1653, -0.4999988
        %v1655 = vmul.f32 %v1650, %v1654
        %v1656 = vadd.f32 1.0, %v1655
        %v1657 = vmul.f32 %v1648, %v1648
        %v1658 = vmul.f32 %v1657, -0.00019511016
        %v1659 = vadd.f32 %v1658, 0.008332121
        %v1660 = vmul.f32 %v1657, %v1659
        %v1661 = vadd.f32 %v1660, -0.16666654
        %v1662 = vmul.f32 %v1657, %v1661
        %v1663 = vadd.f32 %v1662, 1.0
        %v1664 = vmul.f32 %v1663, %v1648
        %vm1665 = vweird.f32 %v271
        %v1666 = vadd.s32 %v1649, 3
        %v1667 = vand.u32 %v1666, 3
        %vm1668 = vcmp.lt.s32.totalorder %v1667, 2
        %vm1669 = vcmp.eq.s32.totalorder %v1667, 0
        %v1670 = vxor.u32 %v1664, 2147483648
        %v1671 = vsel %vm1669, %v1656, %v1670
        %vm1672 = vcmp.eq.s32.totalorder %v1667, 2
        %v1673 = vxor.u32 %v1656, 2147483648
        %v1674 = vsel %vm1672, %v1673, %v1664
        %v1675 = vsel %vm1668, %v1671, %v1674
        %v1676 = vsel %vm1665, nan, %v1675
        %v1677 = vand.u32 2147483647, %v272
        %vm1678 = vcmp.le.f32.partialorder %v1677, 0.7853982
        %vm1679 = vcmp.lt.s32.totalorder %v272, 0
        %v1680 = vand.u32 %v272, 2139095040
        %v1681 = vshrl.u32 %v1680, 23
        %v1682 = vsub.s32 %v1681, 127
        %v1683 = vand.u32 2147483647, %v272
        %v1684 = vand.u32 %v1683, 8388607
        %v1685 = vor.u32 %v1684, 8388608
        %v1686 = vsub.s32 0, %v1685
        %v1687 = vadd.s32 %v1682, 1
        %vm1688 = vcmp.gt.s32.totalorder %v1687, 0
        %v1689 = vsel %vm1688, %v1687, 0
        %v1690 = vshrl.u32 %v1689, 5
        %v1691 = vand.u32 %v1689, 31
        %v1692 = vsub.s32 32, %v1691
        %v1693 = vshrl.u32 683565275, %v1692
        %v1694 = vshll.u32 683565275, %v1691
        %v1695 = vshrl.u32 2475754826, %v1692
        %v1696 = vor.u32 %v1694, %v1695
        %v1697 = vshll.u32 2475754826, %v1691
        %v1698 = vshrl.u32 2131351028, %v1692
        %v1699 = vor.u32 %v1697, %v1698
        %v1700 = vshll.u32 2131351028, %v1691
        %v1701 = vshrl.u32 2102212464, %v1692
        %v1702 = vor.u32 %v1700, %v1701
        %v1703 = vshll.u32 2102212464, %v1691
        %v1704 = vshrl.u32 920167782, %v1692
        %v1705 = vor.u32 %v1703, %v1704
        %v1706 = vshll.u32 920167782, %v1691
        %v1707 = vshrl.u32 1326507024, %v1692
        %v1708 = vor.u32 %v1706, %v1707
        %vm1709 = vcmp.lt.s32.totalorder %v1690, 1
        %vm1710 = vcmp.lt.s32.totalorder %v1690, 2
        %vm1711 = vcmp.lt.s32.totalorder %v1690, 3
        %vm1712 = vcmp.lt.s32.totalorder %v1690, 4
        %v1713 = vsel %vm1709, %v1693, %v1696
        %v1714 = vsel %vm1712, %v1702, 2102212464
        %v1715 = vsel %vm1711, %v1699, %v1714
        %v1716 = vsel %vm1710, %v1713, %v1715
        %v1717 = vsel %vm1709, %v1696, %v1699
        %v1718 = vsel %vm1712, %v1705, 920167782
        %v1719 = vsel %vm1711, %v1702, %v1718
        %v1720 = vsel %vm1710, %v1717, %v1719
        %v1721 = vsel %vm1709, %v1699, %v1702
        %v1722 = vsel %vm1712, %v1708, 1326507024
        %v1723 = vsel %vm1711, %v1705, %v1722
        %v1724 = vsel %vm1710, %v1721, %v1723
        %v1725 = vshll.u32 %v1685, 8
        %v1726 = vand.u32 %v1725, 65535
        %v1727 = vshrl.u32 %v1725, 16
        %v1728 = vand.u32 %v1724, 65535
        %v1729 = vshrl.u32 %v1724, 16
        %v1730 = vmul.u32 %v1726, %v1728
        %v1731 = vmul.u32 %v1726, %v1729
        %v1732 = vmul.u32 %v1727, %v1728
        %v1733 = vmul.u32 %v1727, %v1729
        %v1734 = vshll.u32 %v1731, 16
        %v1735 = vshrl.u32 %v1731, 16
        %v1736 = vshll.u32 %v1732, 16
        %v1737 = vshrl.u32 %v1732, 16
        %vm1738 = vc.u32 %v1730, %v1734
        %v1739 = vsel %vm1738, 1, 0
        %v1740 = vadd.s32 %v1730, %v1734
        %v1741 = vadd.s32 %v1733, %v1739
        %vm1742 = vc.u32 %v1740, %v1736
        %v1743 = vsel %vm1742, 1, 0
        %v1744 = vadd.s32 %v1740, %v1736
        %v1745 = vadd.s32 %v1741, %v1743
        %v1746 = vadd.s32 %v1745, %v1735
        %v1747 = vadd.s32 %v1746, %v1737
        %v1748 = vand.u32 %v1725, 65535
        %v1749 = vshrl.u32 %v1725, 16
        %v1750 = vand.u32 %v1720, 65535
        %v1751 = vshrl.u32 %v1720, 16
        %v1752 = vmul.u32 %v1748, %v1750
        %v1753 = vmul.u32 %v1748, %v1751
        %v1754 = vmul.u32 %v1749, %v1750
        %v1755 = vmul.u32 %v1749, %v1751
        %v1756 = vshll.u32 %v1753, 16
        %v1757 = vshrl.u32 %v1753, 16
        %v1758 = vshll.u32 %v1754, 16
        %v1759 = vshrl.u32 %v1754, 16
        %vm1760 = vc.u32 %v1752, %v1756
        %v1761 = vsel %vm1760, 1, 0
        %v1762 = vadd.s32 %v1752, %v1756
        %v1763 = vadd.s32 %v1755, %v1761
        %vm1764 = vc.u32 %v1762, %v1758
        %v1765 = vsel %vm1764, 1, 0
        %v1766 = vadd.s32 %v1762, %v1758
        %v1767 = vadd.s32 %v1763, %v1765
        %v1768 = vadd.s32 %v1767, %v1757
        %v1769 = vadd.s32 %v1768, %v1759
        %v1770 = vmul.u32 %v1725, %v1716
        %v1771 = vadd.s32 %v1747, %v1766
        %vm1772 = vc.u32 %v1747, %v1766
        %v1773 = vadd.s32 %v1769, 1
        %v1774 = vsel %vm1772, %v1773, %v1769
        %v1775 = vadd.s32 %v1770, %v1774
        %v1776 = vadd.s32 %v1775, 536870912
        %v1777 = vshrl.u32 %v1776, 30
        %v1778 = vshll.u32 %v1777, 30
        %v1779 = vsub.s32 %v1775, %v1778
        %vm1780 = vcmp.lt.s32.totalorder %v1779, 0
        %v1781 = vsub.s32 0, %v1779
        %v1782 = vsel %vm1780, %v1781, %v1779
        %v1783 = vclz %v1782
        %v1784 = vsub.s32 %v1783, 2
        %vm1785 = vcmp.gt.s32.totalorder 0, %v1784
        %v1786 = vsel %vm1785, 0, %v1784
        %v1787 = vsub.s32 32, %v1786
        %v1788 = vshll.u32 %v1779, %v1786
        %v1789 = vshrl.u32 %v1771, %v1787
        %v1790 = vor.u32 %v1788, %v1789
        %v1791 = vsub.s32 4294967266, %v1786
        %v1792 = vadd.s32 %v1791, 127
        %v1793 = vshll.u32 %v1792, 23
        %v1794 = vor.u32 4788187, %v1793
        %v1795 = vand.u32 2147483647, %v1794
        %v1797 = vcvt.s32.f32 %v1790
        %v1798 = vmul.f32 %v1797, %v1795
        %v1799 = vxor.u32 %v1798, 2147483648
        %v1800 = vsel %vm1679, %v1799, %v1798
        %v1801 = vsub.s32 4, %v1777
        %v1802 = vsel %vm1679, %v1801, %v1777
        %v1803 = vsel %vm1678, %v272, %v1800
        %v1804 = vsel %vm1678, 0, %v1802
        %v1805 = vmul.f32 %v1803, %v1803
        %v1806 = vmul.f32 %v1805, -0.001358992
        %v1807 = vadd.f32 %v1806, 0.041655596
        %v1808 = vmul.f32 %v1805, %v1807
        %v1809 = vadd.f32 %v1808, -0.4999988
        %v1810 = vmul.f32 %v1805, %v1809
        %v1811 = vadd.f32 1.0, %v1810
        %v1812 = vmul.f32 %v1803, %v1803
        %v1813 = vmul.f32 %v1812, -0.00019511016
        %v1814 = vadd.f32 %v1813, 0.008332121
        %v1815 = vmul.f32 %v1812, %v1814
        %v1816 = vadd.f32 %v1815, -0.16666654
        %v1817 = vmul.f32 %v1812, %v1816
        %v1818 = vadd.f32 %v1817, 1.0
        %v1819 = vmul.f32 %v1818, %v1803
        %vm1820 = vweird.f32 %v272
        %v1821 = vadd.s32 %v1804, 3
        %v1822 = vand.u32 %v1821, 3
        %vm1823 = vcmp.lt.s32.totalorder %v1822, 2
        %vm1824 = vcmp.eq.s32.totalorder %v1822, 0
        %v1825 = vxor.u32 %v1819, 2147483648
        %v1826 = vsel %vm1824, %v1811, %v1825
        %vm1827 = vcmp.eq.s32.totalorder %v1822, 2
        %v1828 = vxor.u32 %v1811, 2147483648
        %v1829 = vsel %vm1827, %v1828, %v1819
        %v1830 = vsel %vm1823, %v1826, %v1829
        %v1831 = vsel %vm1820, nan, %v1830
        %v1832 = vand.u32 2147483647, %v273
        %vm1833 = vcmp.le.f32.partialorder %v1832, 0.7853982
        %vm1834 = vcmp.lt.s32.totalorder %v273, 0
        %v1835 = vand.u32 %v273, 2139095040
        %v1836 = vshrl.u32 %v1835, 23
        %v1837 = vsub.s32 %v1836, 127
        %v1838 = vand.u32 2147483647, %v273
        %v1839 = vand.u32 %v1838, 8388607
        %v1840 = vor.u32 %v1839, 8388608
        %v1841 = vsub.s32 0, %v1840
        %v1842 = vadd.s32 %v1837, 1
        %vm1843 = vcmp.gt.s32.totalorder %v1842, 0
        %v1844 = vsel %vm1843, %v1842, 0
        %v1845 = vshrl.u32 %v1844, 5
        %v1846 = vand.u32 %v1844, 31
        %v1847 = vsub.s32 32, %v1846
        %v1848 = vshrl.u32 683565275, %v1847
        %v1849 = vshll.u32 683565275, %v1846
        %v1850 = vshrl.u32 2475754826, %v1847
        %v1851 = vor.u32 %v1849, %v1850
        %v1852 = vshll.u32 2475754826, %v1846
        %v1853 = vshrl.u32 2131351028, %v1847
        %v1854 = vor.u32 %v1852, %v1853
        %v1855 = vshll.u32 2131351028, %v1846
        %v1856 = vshrl.u32 2102212464, %v1847
        %v1857 = vor.u32 %v1855, %v1856
        %v1858 = vshll.u32 2102212464, %v1846
        %v1859 = vshrl.u32 920167782, %v1847
        %v1860 = vor.u32 %v1858, %v1859
        %v1861 = vshll.u32 920167782, %v1846
        %v1862 = vshrl.u32 1326507024, %v1847
        %v1863 = vor.u32 %v1861, %v1862
        %vm1864 = vcmp.lt.s32.totalorder %v1845, 1
        %vm1865 = vcmp.lt.s32.totalorder %v1845, 2
        %vm1866 = vcmp.lt.s32.totalorder %v1845, 3
        %vm1867 = vcmp.lt.s32.totalorder %v1845, 4
        %v1868 = vsel %vm1864, %v1848, %v1851
        %v1869 = vsel %vm1867, %v1857, 2102212464
        %v1870 = vsel %vm1866, %v1854, %v1869
        %v1871 = vsel %vm1865, %v1868, %v1870
        %v1872 = vsel %vm1864, %v1851, %v1854
        %v1873 = vsel %vm1867, %v1860, 920167782
        %v1874 = vsel %vm1866, %v1857, %v1873
        %v1875 = vsel %vm1865, %v1872, %v1874
        %v1876 = vsel %vm1864, %v1854, %v1857
        %v1877 = vsel %vm1867, %v1863, 1326507024
        %v1878 = vsel %vm1866, %v1860, %v1877
        %v1879 = vsel %vm1865, %v1876, %v1878
        %v1880 = vshll.u32 %v1840, 8
        %v1881 = vand.u32 %v1880, 65535
        %v1882 = vshrl.u32 %v1880, 16
        %v1883 = vand.u32 %v1879, 65535
        %v1884 = vshrl.u32 %v1879, 16
        %v1885 = vmul.u32 %v1881, %v1883
        %v1886 = vmul.u32 %v1881, %v1884
        %v1887 = vmul.u32 %v1882, %v1883
        %v1888 = vmul.u32 %v1882, %v1884
        %v1889 = vshll.u32 %v1886, 16
        %v1890 = vshrl.u32 %v1886, 16
        %v1891 = vshll.u32 %v1887, 16
        %v1892 = vshrl.u32 %v1887, 16
        %vm1893 = vc.u32 %v1885, %v1889
        %v1894 = vsel %vm1893, 1, 0
        %v1895 = vadd.s32 %v1885, %v1889
        %v1896 = vadd.s32 %v1888, %v1894
        %vm1897 = vc.u32 %v1895, %v1891
        %v1898 = vsel %vm1897, 1, 0
        %v1899 = vadd.s32 %v1895, %v1891
        %v1900 = vadd.s32 %v1896, %v1898
        %v1901 = vadd.s32 %v1900, %v1890
        %v1902 = vadd.s32 %v1901, %v1892
        %v1903 = vand.u32 %v1880, 65535
        %v1904 = vshrl.u32 %v1880, 16
        %v1905 = vand.u32 %v1875, 65535
        %v1906 = vshrl.u32 %v1875, 16
        %v1907 = vmul.u32 %v1903, %v1905
        %v1908 = vmul.u32 %v1903, %v1906
        %v1909 = vmul.u32 %v1904, %v1905
        %v1910 = vmul.u32 %v1904, %v1906
        %v1911 = vshll.u32 %v1908, 16
        %v1912 = vshrl.u32 %v1908, 16
        %v1913 = vshll.u32 %v1909, 16
        %v1914 = vshrl.u32 %v1909, 16
        %vm1915 = vc.u32 %v1907, %v1911
        %v1916 = vsel %vm1915, 1, 0
        %v1917 = vadd.s32 %v1907, %v1911
        %v1918 = vadd.s32 %v1910, %v1916
        %vm1919 = vc.u32 %v1917, %v1913
        %v1920 = vsel %vm1919, 1, 0
        %v1921 = vadd.s32 %v1917, %v1913
        %v1922 = vadd.s32 %v1918, %v1920
        %v1923 = vadd.s32 %v1922, %v1912
        %v1924 = vadd.s32 %v1923, %v1914
        %v1925 = vmul.u32 %v1880, %v1871
        %v1926 = vadd.s32 %v1902, %v1921
        %vm1927 = vc.u32 %v1902, %v1921
        %v1928 = vadd.s32 %v1924, 1
        %v1929 = vsel %vm1927, %v1928, %v1924
        %v1930 = vadd.s32 %v1925, %v1929
        %v1931 = vadd.s32 %v1930, 536870912
        %v1932 = vshrl.u32 %v1931, 30
        %v1933 = vshll.u32 %v1932, 30
        %v1934 = vsub.s32 %v1930, %v1933
        %vm1935 = vcmp.lt.s32.totalorder %v1934, 0
        %v1936 = vsub.s32 0, %v1934
        %v1937 = vsel %vm1935, %v1936, %v1934
        %v1938 = vclz %v1937
        %v1939 = vsub.s32 %v1938, 2
        %vm1940 = vcmp.gt.s32.totalorder 0, %v1939
        %v1941 = vsel %vm1940, 0, %v1939
        %v1942 = vsub.s32 32, %v1941
        %v1943 = vshll.u32 %v1934, %v1941
        %v1944 = vshrl.u32 %v1926, %v1942
        %v1945 = vor.u32 %v1943, %v1944
        %v1946 = vsub.s32 4294967266, %v1941
        %v1947 = vadd.s32 %v1946, 127
        %v1948 = vshll.u32 %v1947, 23
        %v1949 = vor.u32 4788187, %v1948
        %v1950 = vand.u32 2147483647, %v1949
        %v1952 = vcvt.s32.f32 %v1945
        %v1953 = vmul.f32 %v1952, %v1950
        %v1954 = vxor.u32 %v1953, 2147483648
        %v1955 = vsel %vm1834, %v1954, %v1953
        %v1956 = vsub.s32 4, %v1932
        %v1957 = vsel %vm1834, %v1956, %v1932
        %v1958 = vsel %vm1833, %v273, %v1955
        %v1959 = vsel %vm1833, 0, %v1957
        %v1960 = vmul.f32 %v1958, %v1958
        %v1961 = vmul.f32 %v1960, -0.001358992
        %v1962 = vadd.f32 %v1961, 0.041655596
        %v1963 = vmul.f32 %v1960, %v1962
        %v1964 = vadd.f32 %v1963, -0.4999988
        %v1965 = vmul.f32 %v1960, %v1964
        %v1966 = vadd.f32 1.0, %v1965
        %v1967 = vmul.f32 %v1958, %v1958
        %v1968 = vmul.f32 %v1967, -0.00019511016
        %v1969 = vadd.f32 %v1968, 0.008332121
        %v1970 = vmul.f32 %v1967, %v1969
        %v1971 = vadd.f32 %v1970, -0.16666654
        %v1972 = vmul.f32 %v1967, %v1971
        %v1973 = vadd.f32 %v1972, 1.0
        %v1974 = vmul.f32 %v1973, %v1958
        %vm1975 = vweird.f32 %v273
        %v1976 = vadd.s32 %v1959, 3
        %v1977 = vand.u32 %v1976, 3
        %vm1978 = vcmp.lt.s32.totalorder %v1977, 2
        %vm1979 = vcmp.eq.s32.totalorder %v1977, 0
        %v1980 = vxor.u32 %v1974, 2147483648
        %v1981 = vsel %vm1979, %v1966, %v1980
        %vm1982 = vcmp.eq.s32.totalorder %v1977, 2
        %v1983 = vxor.u32 %v1966, 2147483648
        %v1984 = vsel %vm1982, %v1983, %v1974
        %v1985 = vsel %vm1978, %v1981, %v1984
        %v1986 = vsel %vm1975, nan, %v1985
        %v1987 = vand.u32 2147483647, %v274
        %vm1988 = vcmp.le.f32.partialorder %v1987, 0.7853982
        %vm1989 = vcmp.lt.s32.totalorder %v274, 0
        %v1990 = vand.u32 %v274, 2139095040
        %v1991 = vshrl.u32 %v1990, 23
        %v1992 = vsub.s32 %v1991, 127
        %v1993 = vand.u32 2147483647, %v274
        %v1994 = vand.u32 %v1993, 8388607
        %v1995 = vor.u32 %v1994, 8388608
        %v1996 = vsub.s32 0, %v1995
        %v1997 = vadd.s32 %v1992, 1
        %vm1998 = vcmp.gt.s32.totalorder %v1997, 0
        %v1999 = vsel %vm1998, %v1997, 0
        %v2000 = vshrl.u32 %v1999, 5
        %v2001 = vand.u32 %v1999, 31
        %v2002 = vsub.s32 32, %v2001
        %v2003 = vshrl.u32 683565275, %v2002
        %v2004 = vshll.u32 683565275, %v2001
        %v2005 = vshrl.u32 2475754826, %v2002
        %v2006 = vor.u32 %v2004, %v2005
        %v2007 = vshll.u32 2475754826, %v2001
        %v2008 = vshrl.u32 2131351028, %v2002
        %v2009 = vor.u32 %v2007, %v2008
        %v2010 = vshll.u32 2131351028, %v2001
        %v2011 = vshrl.u32 2102212464, %v2002
        %v2012 = vor.u32 %v2010, %v2011
        %v2013 = vshll.u32 2102212464, %v2001
        %v2014 = vshrl.u32 920167782, %v2002
        %v2015 = vor.u32 %v2013, %v2014
        %v2016 = vshll.u32 920167782, %v2001
        %v2017 = vshrl.u32 1326507024, %v2002
        %v2018 = vor.u32 %v2016, %v2017
        %vm2019 = vcmp.lt.s32.totalorder %v2000, 1
        %vm2020 = vcmp.lt.s32.totalorder %v2000, 2
        %vm2021 = vcmp.lt.s32.totalorder %v2000, 3
        %vm2022 = vcmp.lt.s32.totalorder %v2000, 4
        %v2023 = vsel %vm2019, %v2003, %v2006
        %v2024 = vsel %vm2022, %v2012, 2102212464
        %v2025 = vsel %vm2021, %v2009, %v2024
        %v2026 = vsel %vm2020, %v2023, %v2025
        %v2027 = vsel %vm2019, %v2006, %v2009
        %v2028 = vsel %vm2022, %v2015, 920167782
        %v2029 = vsel %vm2021, %v2012, %v2028
        %v2030 = vsel %vm2020, %v2027, %v2029
        %v2031 = vsel %vm2019, %v2009, %v2012
        %v2032 = vsel %vm2022, %v2018, 1326507024
        %v2033 = vsel %vm2021, %v2015, %v2032
        %v2034 = vsel %vm2020, %v2031, %v2033
        %v2035 = vshll.u32 %v1995, 8
        %v2036 = vand.u32 %v2035, 65535
        %v2037 = vshrl.u32 %v2035, 16
        %v2038 = vand.u32 %v2034, 65535
        %v2039 = vshrl.u32 %v2034, 16
        %v2040 = vmul.u32 %v2036, %v2038
        %v2041 = vmul.u32 %v2036, %v2039
        %v2042 = vmul.u32 %v2037, %v2038
        %v2043 = vmul.u32 %v2037, %v2039
        %v2044 = vshll.u32 %v2041, 16
        %v2045 = vshrl.u32 %v2041, 16
        %v2046 = vshll.u32 %v2042, 16
        %v2047 = vshrl.u32 %v2042, 16
        %vm2048 = vc.u32 %v2040, %v2044
        %v2049 = vsel %vm2048, 1, 0
        %v2050 = vadd.s32 %v2040, %v2044
        %v2051 = vadd.s32 %v2043, %v2049
        %vm2052 = vc.u32 %v2050, %v2046
        %v2053 = vsel %vm2052, 1, 0
        %v2054 = vadd.s32 %v2050, %v2046
        %v2055 = vadd.s32 %v2051, %v2053
        %v2056 = vadd.s32 %v2055, %v2045
        %v2057 = vadd.s32 %v2056, %v2047
        %v2058 = vand.u32 %v2035, 65535
        %v2059 = vshrl.u32 %v2035, 16
        %v2060 = vand.u32 %v2030, 65535
        %v2061 = vshrl.u32 %v2030, 16
        %v2062 = vmul.u32 %v2058, %v2060
        %v2063 = vmul.u32 %v2058, %v2061
        %v2064 = vmul.u32 %v2059, %v2060
        %v2065 = vmul.u32 %v2059, %v2061
        %v2066 = vshll.u32 %v2063, 16
        %v2067 = vshrl.u32 %v2063, 16
        %v2068 = vshll.u32 %v2064, 16
        %v2069 = vshrl.u32 %v2064, 16
        %vm2070 = vc.u32 %v2062, %v2066
        %v2071 = vsel %vm2070, 1, 0
        %v2072 = vadd.s32 %v2062, %v2066
        %v2073 = vadd.s32 %v2065, %v2071
        %vm2074 = vc.u32 %v2072, %v2068
        %v2075 = vsel %vm2074, 1, 0
        %v2076 = vadd.s32 %v2072, %v2068
        %v2077 = vadd.s32 %v2073, %v2075
        %v2078 = vadd.s32 %v2077, %v2067
        %v2079 = vadd.s32 %v2078, %v2069
        %v2080 = vmul.u32 %v2035, %v2026
        %v2081 = vadd.s32 %v2057, %v2076
        %vm2082 = vc.u32 %v2057, %v2076
        %v2083 = vadd.s32 %v2079, 1
        %v2084 = vsel %vm2082, %v2083, %v2079
        %v2085 = vadd.s32 %v2080, %v2084
        %v2086 = vadd.s32 %v2085, 536870912
        %v2087 = vshrl.u32 %v2086, 30
        %v2088 = vshll.u32 %v2087, 30
        %v2089 = vsub.s32 %v2085, %v2088
        %vm2090 = vcmp.lt.s32.totalorder %v2089, 0
        %v2091 = vsub.s32 0, %v2089
        %v2092 = vsel %vm2090, %v2091, %v2089
        %v2093 = vclz %v2092
        %v2094 = vsub.s32 %v2093, 2
        %vm2095 = vcmp.gt.s32.totalorder 0, %v2094
        %v2096 = vsel %vm2095, 0, %v2094
        %v2097 = vsub.s32 32, %v2096
        %v2098 = vshll.u32 %v2089, %v2096
        %v2099 = vshrl.u32 %v2081, %v2097
        %v2100 = vor.u32 %v2098, %v2099
        %v2101 = vsub.s32 4294967266, %v2096
        %v2102 = vadd.s32 %v2101, 127
        %v2103 = vshll.u32 %v2102, 23
        %v2104 = vor.u32 4788187, %v2103
        %v2105 = vand.u32 2147483647, %v2104
        %v2107 = vcvt.s32.f32 %v2100
        %v2108 = vmul.f32 %v2107, %v2105
        %v2109 = vxor.u32 %v2108, 2147483648
        %v2110 = vsel %vm1989, %v2109, %v2108
        %v2111 = vsub.s32 4, %v2087
        %v2112 = vsel %vm1989, %v2111, %v2087
        %v2113 = vsel %vm1988, %v274, %v2110
        %v2114 = vsel %vm1988, 0, %v2112
        %v2115 = vmul.f32 %v2113, %v2113
        %v2116 = vmul.f32 %v2115, -0.001358992
        %v2117 = vadd.f32 %v2116, 0.041655596
        %v2118 = vmul.f32 %v2115, %v2117
        %v2119 = vadd.f32 %v2118, -0.4999988
        %v2120 = vmul.f32 %v2115, %v2119
        %v2121 = vadd.f32 1.0, %v2120
        %v2122 = vmul.f32 %v2113, %v2113
        %v2123 = vmul.f32 %v2122, -0.00019511016
        %v2124 = vadd.f32 %v2123, 0.008332121
        %v2125 = vmul.f32 %v2122, %v2124
        %v2126 = vadd.f32 %v2125, -0.16666654
        %v2127 = vmul.f32 %v2122, %v2126
        %v2128 = vadd.f32 %v2127, 1.0
        %v2129 = vmul.f32 %v2128, %v2113
        %vm2130 = vweird.f32 %v274
        %v2131 = vadd.s32 %v2114, 3
        %v2132 = vand.u32 %v2131, 3
        %vm2133 = vcmp.lt.s32.totalorder %v2132, 2
        %vm2134 = vcmp.eq.s32.totalorder %v2132, 0
        %v2135 = vxor.u32 %v2129, 2147483648
        %v2136 = vsel %vm2134, %v2121, %v2135
        %vm2137 = vcmp.eq.s32.totalorder %v2132, 2
        %v2138 = vxor.u32 %v2121, 2147483648
        %v2139 = vsel %vm2137, %v2138, %v2129
        %v2140 = vsel %vm2133, %v2136, %v2139
        %v2141 = vsel %vm2130, nan, %v2140
        %v2142 = vand.u32 2147483647, %v275
        %vm2143 = vcmp.le.f32.partialorder %v2142, 0.7853982
        %vm2144 = vcmp.lt.s32.totalorder %v275, 0
        %v2145 = vand.u32 %v275, 2139095040
        %v2146 = vshrl.u32 %v2145, 23
        %v2147 = vsub.s32 %v2146, 127
        %v2148 = vand.u32 2147483647, %v275
        %v2149 = vand.u32 %v2148, 8388607
        %v2150 = vor.u32 %v2149, 8388608
        %v2151 = vsub.s32 0, %v2150
        %v2152 = vadd.s32 %v2147, 1
        %vm2153 = vcmp.gt.s32.totalorder %v2152, 0
        %v2154 = vsel %vm2153, %v2152, 0
        %v2155 = vshrl.u32 %v2154, 5
        %v2156 = vand.u32 %v2154, 31
        %v2157 = vsub.s32 32, %v2156
        %v2158 = vshrl.u32 683565275, %v2157
        %v2159 = vshll.u32 683565275, %v2156
        %v2160 = vshrl.u32 2475754826, %v2157
        %v2161 = vor.u32 %v2159, %v2160
        %v2162 = vshll.u32 2475754826, %v2156
        %v2163 = vshrl.u32 2131351028, %v2157
        %v2164 = vor.u32 %v2162, %v2163
        %v2165 = vshll.u32 2131351028, %v2156
        %v2166 = vshrl.u32 2102212464, %v2157
        %v2167 = vor.u32 %v2165, %v2166
        %v2168 = vshll.u32 2102212464, %v2156
        %v2169 = vshrl.u32 920167782, %v2157
        %v2170 = vor.u32 %v2168, %v2169
        %v2171 = vshll.u32 920167782, %v2156
        %v2172 = vshrl.u32 1326507024, %v2157
        %v2173 = vor.u32 %v2171, %v2172
        %vm2174 = vcmp.lt.s32.totalorder %v2155, 1
        %vm2175 = vcmp.lt.s32.totalorder %v2155, 2
        %vm2176 = vcmp.lt.s32.totalorder %v2155, 3
        %vm2177 = vcmp.lt.s32.totalorder %v2155, 4
        %v2178 = vsel %vm2174, %v2158, %v2161
        %v2179 = vsel %vm2177, %v2167, 2102212464
        %v2180 = vsel %vm2176, %v2164, %v2179
        %v2181 = vsel %vm2175, %v2178, %v2180
        %v2182 = vsel %vm2174, %v2161, %v2164
        %v2183 = vsel %vm2177, %v2170, 920167782
        %v2184 = vsel %vm2176, %v2167, %v2183
        %v2185 = vsel %vm2175, %v2182, %v2184
        %v2186 = vsel %vm2174, %v2164, %v2167
        %v2187 = vsel %vm2177, %v2173, 1326507024
        %v2188 = vsel %vm2176, %v2170, %v2187
        %v2189 = vsel %vm2175, %v2186, %v2188
        %v2190 = vshll.u32 %v2150, 8
        %v2191 = vand.u32 %v2190, 65535
        %v2192 = vshrl.u32 %v2190, 16
        %v2193 = vand.u32 %v2189, 65535
        %v2194 = vshrl.u32 %v2189, 16
        %v2195 = vmul.u32 %v2191, %v2193
        %v2196 = vmul.u32 %v2191, %v2194
        %v2197 = vmul.u32 %v2192, %v2193
        %v2198 = vmul.u32 %v2192, %v2194
        %v2199 = vshll.u32 %v2196, 16
        %v2200 = vshrl.u32 %v2196, 16
        %v2201 = vshll.u32 %v2197, 16
        %v2202 = vshrl.u32 %v2197, 16
        %vm2203 = vc.u32 %v2195, %v2199
        %v2204 = vsel %vm2203, 1, 0
        %v2205 = vadd.s32 %v2195, %v2199
        %v2206 = vadd.s32 %v2198, %v2204
        %vm2207 = vc.u32 %v2205, %v2201
        %v2208 = vsel %vm2207, 1, 0
        %v2209 = vadd.s32 %v2205, %v2201
        %v2210 = vadd.s32 %v2206, %v2208
        %v2211 = vadd.s32 %v2210, %v2200
        %v2212 = vadd.s32 %v2211, %v2202
        %v2213 = vand.u32 %v2190, 65535
        %v2214 = vshrl.u32 %v2190, 16
        %v2215 = vand.u32 %v2185, 65535
        %v2216 = vshrl.u32 %v2185, 16
        %v2217 = vmul.u32 %v2213, %v2215
        %v2218 = vmul.u32 %v2213, %v2216
        %v2219 = vmul.u32 %v2214, %v2215
        %v2220 = vmul.u32 %v2214, %v2216
        %v2221 = vshll.u32 %v2218, 16
        %v2222 = vshrl.u32 %v2218, 16
        %v2223 = vshll.u32 %v2219, 16
        %v2224 = vshrl.u32 %v2219, 16
        %vm2225 = vc.u32 %v2217, %v2221
        %v2226 = vsel %vm2225, 1, 0
        %v2227 = vadd.s32 %v2217, %v2221
        %v2228 = vadd.s32 %v2220, %v2226
        %vm2229 = vc.u32 %v2227, %v2223
        %v2230 = vsel %vm2229, 1, 0
        %v2231 = vadd.s32 %v2227, %v2223
        %v2232 = vadd.s32 %v2228, %v2230
        %v2233 = vadd.s32 %v2232, %v2222
        %v2234 = vadd.s32 %v2233, %v2224
        %v2235 = vmul.u32 %v2190, %v2181
        %v2236 = vadd.s32 %v2212, %v2231
        %vm2237 = vc.u32 %v2212, %v2231
        %v2238 = vadd.s32 %v2234, 1
        %v2239 = vsel %vm2237, %v2238, %v2234
        %v2240 = vadd.s32 %v2235, %v2239
        %v2241 = vadd.s32 %v2240, 536870912
        %v2242 = vshrl.u32 %v2241, 30
        %v2243 = vshll.u32 %v2242, 30
        %v2244 = vsub.s32 %v2240, %v2243
        %vm2245 = vcmp.lt.s32.totalorder %v2244, 0
        %v2246 = vsub.s32 0, %v2244
        %v2247 = vsel %vm2245, %v2246, %v2244
        %v2248 = vclz %v2247
        %v2249 = vsub.s32 %v2248, 2
        %vm2250 = vcmp.gt.s32.totalorder 0, %v2249
        %v2251 = vsel %vm2250, 0, %v2249
        %v2252 = vsub.s32 32, %v2251
        %v2253 = vshll.u32 %v2244, %v2251
        %v2254 = vshrl.u32 %v2236, %v2252
        %v2255 = vor.u32 %v2253, %v2254
        %v2256 = vsub.s32 4294967266, %v2251
        %v2257 = vadd.s32 %v2256, 127
        %v2258 = vshll.u32 %v2257, 23
        %v2259 = vor.u32 4788187, %v2258
        %v2260 = vand.u32 2147483647, %v2259
        %v2262 = vcvt.s32.f32 %v2255
        %v2263 = vmul.f32 %v2262, %v2260
        %v2264 = vxor.u32 %v2263, 2147483648
        %v2265 = vsel %vm2144, %v2264, %v2263
        %v2266 = vsub.s32 4, %v2242
        %v2267 = vsel %vm2144, %v2266, %v2242
        %v2268 = vsel %vm2143, %v275, %v2265
        %v2269 = vsel %vm2143, 0, %v2267
        %v2270 = vmul.f32 %v2268, %v2268
        %v2271 = vmul.f32 %v2270, -0.001358992
        %v2272 = vadd.f32 %v2271, 0.041655596
        %v2273 = vmul.f32 %v2270, %v2272
        %v2274 = vadd.f32 %v2273, -0.4999988
        %v2275 = vmul.f32 %v2270, %v2274
        %v2276 = vadd.f32 1.0, %v2275
        %v2277 = vmul.f32 %v2268, %v2268
        %v2278 = vmul.f32 %v2277, -0.00019511016
        %v2279 = vadd.f32 %v2278, 0.008332121
        %v2280 = vmul.f32 %v2277, %v2279
        %v2281 = vadd.f32 %v2280, -0.16666654
        %v2282 = vmul.f32 %v2277, %v2281
        %v2283 = vadd.f32 %v2282, 1.0
        %v2284 = vmul.f32 %v2283, %v2268
        %vm2285 = vweird.f32 %v275
        %v2286 = vadd.s32 %v2269, 3
        %v2287 = vand.u32 %v2286, 3
        %vm2288 = vcmp.lt.s32.totalorder %v2287, 2
        %vm2289 = vcmp.eq.s32.totalorder %v2287, 0
        %v2290 = vxor.u32 %v2284, 2147483648
        %v2291 = vsel %vm2289, %v2276, %v2290
        %vm2292 = vcmp.eq.s32.totalorder %v2287, 2
        %v2293 = vxor.u32 %v2276, 2147483648
        %v2294 = vsel %vm2292, %v2293, %v2284
        %v2295 = vsel %vm2288, %v2291, %v2294
        %v2296 = vsel %vm2285, nan, %v2295
        %v2297 = vand.u32 2147483647, %v276
        %vm2298 = vcmp.le.f32.partialorder %v2297, 0.7853982
        %vm2299 = vcmp.lt.s32.totalorder %v276, 0
        %v2300 = vand.u32 %v276, 2139095040
        %v2301 = vshrl.u32 %v2300, 23
        %v2302 = vsub.s32 %v2301, 127
        %v2303 = vand.u32 2147483647, %v276
        %v2304 = vand.u32 %v2303, 8388607
        %v2305 = vor.u32 %v2304, 8388608
        %v2306 = vsub.s32 0, %v2305
        %v2307 = vadd.s32 %v2302, 1
        %vm2308 = vcmp.gt.s32.totalorder %v2307, 0
        %v2309 = vsel %vm2308, %v2307, 0
        %v2310 = vshrl.u32 %v2309, 5
        %v2311 = vand.u32 %v2309, 31
        %v2312 = vsub.s32 32, %v2311
        %v2313 = vshrl.u32 683565275, %v2312
        %v2314 = vshll.u32 683565275, %v2311
        %v2315 = vshrl.u32 2475754826, %v2312
        %v2316 = vor.u32 %v2314, %v2315
        %v2317 = vshll.u32 2475754826, %v2311
        %v2318 = vshrl.u32 2131351028, %v2312
        %v2319 = vor.u32 %v2317, %v2318
        %v2320 = vshll.u32 2131351028, %v2311
        %v2321 = vshrl.u32 2102212464, %v2312
        %v2322 = vor.u32 %v2320, %v2321
        %v2323 = vshll.u32 2102212464, %v2311
        %v2324 = vshrl.u32 920167782, %v2312
        %v2325 = vor.u32 %v2323, %v2324
        %v2326 = vshll.u32 920167782, %v2311
        %v2327 = vshrl.u32 1326507024, %v2312
        %v2328 = vor.u32 %v2326, %v2327
        %vm2329 = vcmp.lt.s32.totalorder %v2310, 1
        %vm2330 = vcmp.lt.s32.totalorder %v2310, 2
        %vm2331 = vcmp.lt.s32.totalorder %v2310, 3
        %vm2332 = vcmp.lt.s32.totalorder %v2310, 4
        %v2333 = vsel %vm2329, %v2313, %v2316
        %v2334 = vsel %vm2332, %v2322, 2102212464
        %v2335 = vsel %vm2331, %v2319, %v2334
        %v2336 = vsel %vm2330, %v2333, %v2335
        %v2337 = vsel %vm2329, %v2316, %v2319
        %v2338 = vsel %vm2332, %v2325, 920167782
        %v2339 = vsel %vm2331, %v2322, %v2338
        %v2340 = vsel %vm2330, %v2337, %v2339
        %v2341 = vsel %vm2329, %v2319, %v2322
        %v2342 = vsel %vm2332, %v2328, 1326507024
        %v2343 = vsel %vm2331, %v2325, %v2342
        %v2344 = vsel %vm2330, %v2341, %v2343
        %v2345 = vshll.u32 %v2305, 8
        %v2346 = vand.u32 %v2345, 65535
        %v2347 = vshrl.u32 %v2345, 16
        %v2348 = vand.u32 %v2344, 65535
        %v2349 = vshrl.u32 %v2344, 16
        %v2350 = vmul.u32 %v2346, %v2348
        %v2351 = vmul.u32 %v2346, %v2349
        %v2352 = vmul.u32 %v2347, %v2348
        %v2353 = vmul.u32 %v2347, %v2349
        %v2354 = vshll.u32 %v2351, 16
        %v2355 = vshrl.u32 %v2351, 16
        %v2356 = vshll.u32 %v2352, 16
        %v2357 = vshrl.u32 %v2352, 16
        %vm2358 = vc.u32 %v2350, %v2354
        %v2359 = vsel %vm2358, 1, 0
        %v2360 = vadd.s32 %v2350, %v2354
        %v2361 = vadd.s32 %v2353, %v2359
        %vm2362 = vc.u32 %v2360, %v2356
        %v2363 = vsel %vm2362, 1, 0
        %v2364 = vadd.s32 %v2360, %v2356
        %v2365 = vadd.s32 %v2361, %v2363
        %v2366 = vadd.s32 %v2365, %v2355
        %v2367 = vadd.s32 %v2366, %v2357
        %v2368 = vand.u32 %v2345, 65535
        %v2369 = vshrl.u32 %v2345, 16
        %v2370 = vand.u32 %v2340, 65535
        %v2371 = vshrl.u32 %v2340, 16
        %v2372 = vmul.u32 %v2368, %v2370
        %v2373 = vmul.u32 %v2368, %v2371
        %v2374 = vmul.u32 %v2369, %v2370
        %v2375 = vmul.u32 %v2369, %v2371
        %v2376 = vshll.u32 %v2373, 16
        %v2377 = vshrl.u32 %v2373, 16
        %v2378 = vshll.u32 %v2374, 16
        %v2379 = vshrl.u32 %v2374, 16
        %vm2380 = vc.u32 %v2372, %v2376
        %v2381 = vsel %vm2380, 1, 0
        %v2382 = vadd.s32 %v2372, %v2376
        %v2383 = vadd.s32 %v2375, %v2381
        %vm2384 = vc.u32 %v2382, %v2378
        %v2385 = vsel %vm2384, 1, 0
        %v2386 = vadd.s32 %v2382, %v2378
        %v2387 = vadd.s32 %v2383, %v2385
        %v2388 = vadd.s32 %v2387, %v2377
        %v2389 = vadd.s32 %v2388, %v2379
        %v2390 = vmul.u32 %v2345, %v2336
        %v2391 = vadd.s32 %v2367, %v2386
        %vm2392 = vc.u32 %v2367, %v2386
        %v2393 = vadd.s32 %v2389, 1
        %v2394 = vsel %vm2392, %v2393, %v2389
        %v2395 = vadd.s32 %v2390, %v2394
        %v2396 = vadd.s32 %v2395, 536870912
        %v2397 = vshrl.u32 %v2396, 30
        %v2398 = vshll.u32 %v2397, 30
        %v2399 = vsub.s32 %v2395, %v2398
        %vm2400 = vcmp.lt.s32.totalorder %v2399, 0
        %v2401 = vsub.s32 0, %v2399
        %v2402 = vsel %vm2400, %v2401, %v2399
        %v2403 = vclz %v2402
        %v2404 = vsub.s32 %v2403, 2
        %vm2405 = vcmp.gt.s32.totalorder 0, %v2404
        %v2406 = vsel %vm2405, 0, %v2404
        %v2407 = vsub.s32 32, %v2406
        %v2408 = vshll.u32 %v2399, %v2406
        %v2409 = vshrl.u32 %v2391, %v2407
        %v2410 = vor.u32 %v2408, %v2409
        %v2411 = vsub.s32 4294967266, %v2406
        %v2412 = vadd.s32 %v2411, 127
        %v2413 = vshll.u32 %v2412, 23
        %v2414 = vor.u32 4788187, %v2413
        %v2415 = vand.u32 2147483647, %v2414
        %v2417 = vcvt.s32.f32 %v2410
        %v2418 = vmul.f32 %v2417, %v2415
        %v2419 = vxor.u32 %v2418, 2147483648
        %v2420 = vsel %vm2299, %v2419, %v2418
        %v2421 = vsub.s32 4, %v2397
        %v2422 = vsel %vm2299, %v2421, %v2397
        %v2423 = vsel %vm2298, %v276, %v2420
        %v2424 = vsel %vm2298, 0, %v2422
        %v2425 = vmul.f32 %v2423, %v2423
        %v2426 = vmul.f32 %v2425, -0.001358992
        %v2427 = vadd.f32 %v2426, 0.041655596
        %v2428 = vmul.f32 %v2425, %v2427
        %v2429 = vadd.f32 %v2428, -0.4999988
        %v2430 = vmul.f32 %v2425, %v2429
        %v2431 = vadd.f32 1.0, %v2430
        %v2432 = vmul.f32 %v2423, %v2423
        %v2433 = vmul.f32 %v2432, -0.00019511016
        %v2434 = vadd.f32 %v2433, 0.008332121
        %v2435 = vmul.f32 %v2432, %v2434
        %v2436 = vadd.f32 %v2435, -0.16666654
        %v2437 = vmul.f32 %v2432, %v2436
        %v2438 = vadd.f32 %v2437, 1.0
        %v2439 = vmul.f32 %v2438, %v2423
        %vm2440 = vweird.f32 %v276
        %v2441 = vadd.s32 %v2424, 3
        %v2442 = vand.u32 %v2441, 3
        %vm2443 = vcmp.lt.s32.totalorder %v2442, 2
        %vm2444 = vcmp.eq.s32.totalorder %v2442, 0
        %v2445 = vxor.u32 %v2439, 2147483648
        %v2446 = vsel %vm2444, %v2431, %v2445
        %vm2447 = vcmp.eq.s32.totalorder %v2442, 2
        %v2448 = vxor.u32 %v2431, 2147483648
        %v2449 = vsel %vm2447, %v2448, %v2439
        %v2450 = vsel %vm2443, %v2446, %v2449
        %v2451 = vsel %vm2440, nan, %v2450
        %v2452 = vand.u32 2147483647, %v277
        %vm2453 = vcmp.le.f32.partialorder %v2452, 0.7853982
        %vm2454 = vcmp.lt.s32.totalorder %v277, 0
        %v2455 = vand.u32 %v277, 2139095040
        %v2456 = vshrl.u32 %v2455, 23
        %v2457 = vsub.s32 %v2456, 127
        %v2458 = vand.u32 2147483647, %v277
        %v2459 = vand.u32 %v2458, 8388607
        %v2460 = vor.u32 %v2459, 8388608
        %v2461 = vsub.s32 0, %v2460
        %v2462 = vadd.s32 %v2457, 1
        %vm2463 = vcmp.gt.s32.totalorder %v2462, 0
        %v2464 = vsel %vm2463, %v2462, 0
        %v2465 = vshrl.u32 %v2464, 5
        %v2466 = vand.u32 %v2464, 31
        %v2467 = vsub.s32 32, %v2466
        %v2468 = vshrl.u32 683565275, %v2467
        %v2469 = vshll.u32 683565275, %v2466
        %v2470 = vshrl.u32 2475754826, %v2467
        %v2471 = vor.u32 %v2469, %v2470
        %v2472 = vshll.u32 2475754826, %v2466
        %v2473 = vshrl.u32 2131351028, %v2467
        %v2474 = vor.u32 %v2472, %v2473
        %v2475 = vshll.u32 2131351028, %v2466
        %v2476 = vshrl.u32 2102212464, %v2467
        %v2477 = vor.u32 %v2475, %v2476
        %v2478 = vshll.u32 2102212464, %v2466
        %v2479 = vshrl.u32 920167782, %v2467
        %v2480 = vor.u32 %v2478, %v2479
        %v2481 = vshll.u32 920167782, %v2466
        %v2482 = vshrl.u32 1326507024, %v2467
        %v2483 = vor.u32 %v2481, %v2482
        %vm2484 = vcmp.lt.s32.totalorder %v2465, 1
        %vm2485 = vcmp.lt.s32.totalorder %v2465, 2
        %vm2486 = vcmp.lt.s32.totalorder %v2465, 3
        %vm2487 = vcmp.lt.s32.totalorder %v2465, 4
        %v2488 = vsel %vm2484, %v2468, %v2471
        %v2489 = vsel %vm2487, %v2477, 2102212464
        %v2490 = vsel %vm2486, %v2474, %v2489
        %v2491 = vsel %vm2485, %v2488, %v2490
        %v2492 = vsel %vm2484, %v2471, %v2474
        %v2493 = vsel %vm2487, %v2480, 920167782
        %v2494 = vsel %vm2486, %v2477, %v2493
        %v2495 = vsel %vm2485, %v2492, %v2494
        %v2496 = vsel %vm2484, %v2474, %v2477
        %v2497 = vsel %vm2487, %v2483, 1326507024
        %v2498 = vsel %vm2486, %v2480, %v2497
        %v2499 = vsel %vm2485, %v2496, %v2498
        %v2500 = vshll.u32 %v2460, 8
        %v2501 = vand.u32 %v2500, 65535
        %v2502 = vshrl.u32 %v2500, 16
        %v2503 = vand.u32 %v2499, 65535
        %v2504 = vshrl.u32 %v2499, 16
        %v2505 = vmul.u32 %v2501, %v2503
        %v2506 = vmul.u32 %v2501, %v2504
        %v2507 = vmul.u32 %v2502, %v2503
        %v2508 = vmul.u32 %v2502, %v2504
        %v2509 = vshll.u32 %v2506, 16
        %v2510 = vshrl.u32 %v2506, 16
        %v2511 = vshll.u32 %v2507, 16
        %v2512 = vshrl.u32 %v2507, 16
        %vm2513 = vc.u32 %v2505, %v2509
        %v2514 = vsel %vm2513, 1, 0
        %v2515 = vadd.s32 %v2505, %v2509
        %v2516 = vadd.s32 %v2508, %v2514
        %vm2517 = vc.u32 %v2515, %v2511
        %v2518 = vsel %vm2517, 1, 0
        %v2519 = vadd.s32 %v2515, %v2511
        %v2520 = vadd.s32 %v2516, %v2518
        %v2521 = vadd.s32 %v2520, %v2510
        %v2522 = vadd.s32 %v2521, %v2512
        %v2523 = vand.u32 %v2500, 65535
        %v2524 = vshrl.u32 %v2500, 16
        %v2525 = vand.u32 %v2495, 65535
        %v2526 = vshrl.u32 %v2495, 16
        %v2527 = vmul.u32 %v2523, %v2525
        %v2528 = vmul.u32 %v2523, %v2526
        %v2529 = vmul.u32 %v2524, %v2525
        %v2530 = vmul.u32 %v2524, %v2526
        %v2531 = vshll.u32 %v2528, 16
        %v2532 = vshrl.u32 %v2528, 16
        %v2533 = vshll.u32 %v2529, 16
        %v2534 = vshrl.u32 %v2529, 16
        %vm2535 = vc.u32 %v2527, %v2531
        %v2536 = vsel %vm2535, 1, 0
        %v2537 = vadd.s32 %v2527, %v2531
        %v2538 = vadd.s32 %v2530, %v2536
        %vm2539 = vc.u32 %v2537, %v2533
        %v2540 = vsel %vm2539, 1, 0
        %v2541 = vadd.s32 %v2537, %v2533
        %v2542 = vadd.s32 %v2538, %v2540
        %v2543 = vadd.s32 %v2542, %v2532
        %v2544 = vadd.s32 %v2543, %v2534
        %v2545 = vmul.u32 %v2500, %v2491
        %v2546 = vadd.s32 %v2522, %v2541
        %vm2547 = vc.u32 %v2522, %v2541
        %v2548 = vadd.s32 %v2544, 1
        %v2549 = vsel %vm2547, %v2548, %v2544
        %v2550 = vadd.s32 %v2545, %v2549
        %v2551 = vadd.s32 %v2550, 536870912
        %v2552 = vshrl.u32 %v2551, 30
        %v2553 = vshll.u32 %v2552, 30
        %v2554 = vsub.s32 %v2550, %v2553
        %vm2555 = vcmp.lt.s32.totalorder %v2554, 0
        %v2556 = vsub.s32 0, %v2554
        %v2557 = vsel %vm2555, %v2556, %v2554
        %v2558 = vclz %v2557
        %v2559 = vsub.s32 %v2558, 2
        %vm2560 = vcmp.gt.s32.totalorder 0, %v2559
        %v2561 = vsel %vm2560, 0, %v2559
        %v2562 = vsub.s32 32, %v2561
        %v2563 = vshll.u32 %v2554, %v2561
        %v2564 = vshrl.u32 %v2546, %v2562
        %v2565 = vor.u32 %v2563, %v2564
        %v2566 = vsub.s32 4294967266, %v2561
        %v2567 = vadd.s32 %v2566, 127
        %v2568 = vshll.u32 %v2567, 23
        %v2569 = vor.u32 4788187, %v2568
        %v2570 = vand.u32 2147483647, %v2569
        %v2572 = vcvt.s32.f32 %v2565
        %v2573 = vmul.f32 %v2572, %v2570
        %v2574 = vxor.u32 %v2573, 2147483648
        %v2575 = vsel %vm2454, %v2574, %v2573
        %v2576 = vsub.s32 4, %v2552
        %v2577 = vsel %vm2454, %v2576, %v2552
        %v2578 = vsel %vm2453, %v277, %v2575
        %v2579 = vsel %vm2453, 0, %v2577
        %v2580 = vmul.f32 %v2578, %v2578
        %v2581 = vmul.f32 %v2580, -0.001358992
        %v2582 = vadd.f32 %v2581, 0.041655596
        %v2583 = vmul.f32 %v2580, %v2582
        %v2584 = vadd.f32 %v2583, -0.4999988
        %v2585 = vmul.f32 %v2580, %v2584
        %v2586 = vadd.f32 1.0, %v2585
        %v2587 = vmul.f32 %v2578, %v2578
        %v2588 = vmul.f32 %v2587, -0.00019511016
        %v2589 = vadd.f32 %v2588, 0.008332121
        %v2590 = vmul.f32 %v2587, %v2589
        %v2591 = vadd.f32 %v2590, -0.16666654
        %v2592 = vmul.f32 %v2587, %v2591
        %v2593 = vadd.f32 %v2592, 1.0
        %v2594 = vmul.f32 %v2593, %v2578
        %vm2595 = vweird.f32 %v277
        %v2596 = vadd.s32 %v2579, 3
        %v2597 = vand.u32 %v2596, 3
        %vm2598 = vcmp.lt.s32.totalorder %v2597, 2
        %vm2599 = vcmp.eq.s32.totalorder %v2597, 0
        %v2600 = vxor.u32 %v2594, 2147483648
        %v2601 = vsel %vm2599, %v2586, %v2600
        %vm2602 = vcmp.eq.s32.totalorder %v2597, 2
        %v2603 = vxor.u32 %v2586, 2147483648
        %v2604 = vsel %vm2602, %v2603, %v2594
        %v2605 = vsel %vm2598, %v2601, %v2604
        %v2606 = vsel %vm2595, nan, %v2605
        %v2607 = vand.u32 2147483647, %v278
        %vm2608 = vcmp.le.f32.partialorder %v2607, 0.7853982
        %vm2609 = vcmp.lt.s32.totalorder %v278, 0
        %v2610 = vand.u32 %v278, 2139095040
        %v2611 = vshrl.u32 %v2610, 23
        %v2612 = vsub.s32 %v2611, 127
        %v2613 = vand.u32 2147483647, %v278
        %v2614 = vand.u32 %v2613, 8388607
        %v2615 = vor.u32 %v2614, 8388608
        %v2616 = vsub.s32 0, %v2615
        %v2617 = vadd.s32 %v2612, 1
        %vm2618 = vcmp.gt.s32.totalorder %v2617, 0
        %v2619 = vsel %vm2618, %v2617, 0
        %v2620 = vshrl.u32 %v2619, 5
        %v2621 = vand.u32 %v2619, 31
        %v2622 = vsub.s32 32, %v2621
        %v2623 = vshrl.u32 683565275, %v2622
        %v2624 = vshll.u32 683565275, %v2621
        %v2625 = vshrl.u32 2475754826, %v2622
        %v2626 = vor.u32 %v2624, %v2625
        %v2627 = vshll.u32 2475754826, %v2621
        %v2628 = vshrl.u32 2131351028, %v2622
        %v2629 = vor.u32 %v2627, %v2628
        %v2630 = vshll.u32 2131351028, %v2621
        %v2631 = vshrl.u32 2102212464, %v2622
        %v2632 = vor.u32 %v2630, %v2631
        %v2633 = vshll.u32 2102212464, %v2621
        %v2634 = vshrl.u32 920167782, %v2622
        %v2635 = vor.u32 %v2633, %v2634
        %v2636 = vshll.u32 920167782, %v2621
        %v2637 = vshrl.u32 1326507024, %v2622
        %v2638 = vor.u32 %v2636, %v2637
        %vm2639 = vcmp.lt.s32.totalorder %v2620, 1
        %vm2640 = vcmp.lt.s32.totalorder %v2620, 2
        %vm2641 = vcmp.lt.s32.totalorder %v2620, 3
        %vm2642 = vcmp.lt.s32.totalorder %v2620, 4
        %v2643 = vsel %vm2639, %v2623, %v2626
        %v2644 = vsel %vm2642, %v2632, 2102212464
        %v2645 = vsel %vm2641, %v2629, %v2644
        %v2646 = vsel %vm2640, %v2643, %v2645
        %v2647 = vsel %vm2639, %v2626, %v2629
        %v2648 = vsel %vm2642, %v2635, 920167782
        %v2649 = vsel %vm2641, %v2632, %v2648
        %v2650 = vsel %vm2640, %v2647, %v2649
        %v2651 = vsel %vm2639, %v2629, %v2632
        %v2652 = vsel %vm2642, %v2638, 1326507024
        %v2653 = vsel %vm2641, %v2635, %v2652
        %v2654 = vsel %vm2640, %v2651, %v2653
        %v2655 = vshll.u32 %v2615, 8
        %v2656 = vand.u32 %v2655, 65535
        %v2657 = vshrl.u32 %v2655, 16
        %v2658 = vand.u32 %v2654, 65535
        %v2659 = vshrl.u32 %v2654, 16
        %v2660 = vmul.u32 %v2656, %v2658
        %v2661 = vmul.u32 %v2656, %v2659
        %v2662 = vmul.u32 %v2657, %v2658
        %v2663 = vmul.u32 %v2657, %v2659
        %v2664 = vshll.u32 %v2661, 16
        %v2665 = vshrl.u32 %v2661, 16
        %v2666 = vshll.u32 %v2662, 16
        %v2667 = vshrl.u32 %v2662, 16
        %vm2668 = vc.u32 %v2660, %v2664
        %v2669 = vsel %vm2668, 1, 0
        %v2670 = vadd.s32 %v2660, %v2664
        %v2671 = vadd.s32 %v2663, %v2669
        %vm2672 = vc.u32 %v2670, %v2666
        %v2673 = vsel %vm2672, 1, 0
        %v2674 = vadd.s32 %v2670, %v2666
        %v2675 = vadd.s32 %v2671, %v2673
        %v2676 = vadd.s32 %v2675, %v2665
        %v2677 = vadd.s32 %v2676, %v2667
        %v2678 = vand.u32 %v2655, 65535
        %v2679 = vshrl.u32 %v2655, 16
        %v2680 = vand.u32 %v2650, 65535
        %v2681 = vshrl.u32 %v2650, 16
        %v2682 = vmul.u32 %v2678, %v2680
        %v2683 = vmul.u32 %v2678, %v2681
        %v2684 = vmul.u32 %v2679, %v2680
        %v2685 = vmul.u32 %v2679, %v2681
        %v2686 = vshll.u32 %v2683, 16
        %v2687 = vshrl.u32 %v2683, 16
        %v2688 = vshll.u32 %v2684, 16
        %v2689 = vshrl.u32 %v2684, 16
        %vm2690 = vc.u32 %v2682, %v2686
        %v2691 = vsel %vm2690, 1, 0
        %v2692 = vadd.s32 %v2682, %v2686
        %v2693 = vadd.s32 %v2685, %v2691
        %vm2694 = vc.u32 %v2692, %v2688
        %v2695 = vsel %vm2694, 1, 0
        %v2696 = vadd.s32 %v2692, %v2688
        %v2697 = vadd.s32 %v2693, %v2695
        %v2698 = vadd.s32 %v2697, %v2687
        %v2699 = vadd.s32 %v2698, %v2689
        %v2700 = vmul.u32 %v2655, %v2646
        %v2701 = vadd.s32 %v2677, %v2696
        %vm2702 = vc.u32 %v2677, %v2696
        %v2703 = vadd.s32 %v2699, 1
        %v2704 = vsel %vm2702, %v2703, %v2699
        %v2705 = vadd.s32 %v2700, %v2704
        %v2706 = vadd.s32 %v2705, 536870912
        %v2707 = vshrl.u32 %v2706, 30
        %v2708 = vshll.u32 %v2707, 30
        %v2709 = vsub.s32 %v2705, %v2708
        %vm2710 = vcmp.lt.s32.totalorder %v2709, 0
        %v2711 = vsub.s32 0, %v2709
        %v2712 = vsel %vm2710, %v2711, %v2709
        %v2713 = vclz %v2712
        %v2714 = vsub.s32 %v2713, 2
        %vm2715 = vcmp.gt.s32.totalorder 0, %v2714
        %v2716 = vsel %vm2715, 0, %v2714
        %v2717 = vsub.s32 32, %v2716
        %v2718 = vshll.u32 %v2709, %v2716
        %v2719 = vshrl.u32 %v2701, %v2717
        %v2720 = vor.u32 %v2718, %v2719
        %v2721 = vsub.s32 4294967266, %v2716
        %v2722 = vadd.s32 %v2721, 127
        %v2723 = vshll.u32 %v2722, 23
        %v2724 = vor.u32 4788187, %v2723
        %v2725 = vand.u32 2147483647, %v2724
        %v2727 = vcvt.s32.f32 %v2720
        %v2728 = vmul.f32 %v2727, %v2725
        %v2729 = vxor.u32 %v2728, 2147483648
        %v2730 = vsel %vm2609, %v2729, %v2728
        %v2731 = vsub.s32 4, %v2707
        %v2732 = vsel %vm2609, %v2731, %v2707
        %v2733 = vsel %vm2608, %v278, %v2730
        %v2734 = vsel %vm2608, 0, %v2732
        %v2735 = vmul.f32 %v2733, %v2733
        %v2736 = vmul.f32 %v2735, -0.001358992
        %v2737 = vadd.f32 %v2736, 0.041655596
        %v2738 = vmul.f32 %v2735, %v2737
        %v2739 = vadd.f32 %v2738, -0.4999988
        %v2740 = vmul.f32 %v2735, %v2739
        %v2741 = vadd.f32 1.0, %v2740
        %v2742 = vmul.f32 %v2733, %v2733
        %v2743 = vmul.f32 %v2742, -0.00019511016
        %v2744 = vadd.f32 %v2743, 0.008332121
        %v2745 = vmul.f32 %v2742, %v2744
        %v2746 = vadd.f32 %v2745, -0.16666654
        %v2747 = vmul.f32 %v2742, %v2746
        %v2748 = vadd.f32 %v2747, 1.0
        %v2749 = vmul.f32 %v2748, %v2733
        %vm2750 = vweird.f32 %v278
        %v2751 = vadd.s32 %v2734, 3
        %v2752 = vand.u32 %v2751, 3
        %vm2753 = vcmp.lt.s32.totalorder %v2752, 2
        %vm2754 = vcmp.eq.s32.totalorder %v2752, 0
        %v2755 = vxor.u32 %v2749, 2147483648
        %v2756 = vsel %vm2754, %v2741, %v2755
        %vm2757 = vcmp.eq.s32.totalorder %v2752, 2
        %v2758 = vxor.u32 %v2741, 2147483648
        %v2759 = vsel %vm2757, %v2758, %v2749
        %v2760 = vsel %vm2753, %v2756, %v2759
        %v2761 = vsel %vm2750, nan, %v2760
        %v2762 = vand.u32 2147483647, %v279
        %vm2763 = vcmp.le.f32.partialorder %v2762, 0.7853982
        %vm2764 = vcmp.lt.s32.totalorder %v279, 0
        %v2765 = vand.u32 %v279, 2139095040
        %v2766 = vshrl.u32 %v2765, 23
        %v2767 = vsub.s32 %v2766, 127
        %v2768 = vand.u32 2147483647, %v279
        %v2769 = vand.u32 %v2768, 8388607
        %v2770 = vor.u32 %v2769, 8388608
        %v2771 = vsub.s32 0, %v2770
        %v2772 = vadd.s32 %v2767, 1
        %vm2773 = vcmp.gt.s32.totalorder %v2772, 0
        %v2774 = vsel %vm2773, %v2772, 0
        %v2775 = vshrl.u32 %v2774, 5
        %v2776 = vand.u32 %v2774, 31
        %v2777 = vsub.s32 32, %v2776
        %v2778 = vshrl.u32 683565275, %v2777
        %v2779 = vshll.u32 683565275, %v2776
        %v2780 = vshrl.u32 2475754826, %v2777
        %v2781 = vor.u32 %v2779, %v2780
        %v2782 = vshll.u32 2475754826, %v2776
        %v2783 = vshrl.u32 2131351028, %v2777
        %v2784 = vor.u32 %v2782, %v2783
        %v2785 = vshll.u32 2131351028, %v2776
        %v2786 = vshrl.u32 2102212464, %v2777
        %v2787 = vor.u32 %v2785, %v2786
        %v2788 = vshll.u32 2102212464, %v2776
        %v2789 = vshrl.u32 920167782, %v2777
        %v2790 = vor.u32 %v2788, %v2789
        %v2791 = vshll.u32 920167782, %v2776
        %v2792 = vshrl.u32 1326507024, %v2777
        %v2793 = vor.u32 %v2791, %v2792
        %vm2794 = vcmp.lt.s32.totalorder %v2775, 1
        %vm2795 = vcmp.lt.s32.totalorder %v2775, 2
        %vm2796 = vcmp.lt.s32.totalorder %v2775, 3
        %vm2797 = vcmp.lt.s32.totalorder %v2775, 4
        %v2798 = vsel %vm2794, %v2778, %v2781
        %v2799 = vsel %vm2797, %v2787, 2102212464
        %v2800 = vsel %vm2796, %v2784, %v2799
        %v2801 = vsel %vm2795, %v2798, %v2800
        %v2802 = vsel %vm2794, %v2781, %v2784
        %v2803 = vsel %vm2797, %v2790, 920167782
        %v2804 = vsel %vm2796, %v2787, %v2803
        %v2805 = vsel %vm2795, %v2802, %v2804
        %v2806 = vsel %vm2794, %v2784, %v2787
        %v2807 = vsel %vm2797, %v2793, 1326507024
        %v2808 = vsel %vm2796, %v2790, %v2807
        %v2809 = vsel %vm2795, %v2806, %v2808
        %v2810 = vshll.u32 %v2770, 8
        %v2811 = vand.u32 %v2810, 65535
        %v2812 = vshrl.u32 %v2810, 16
        %v2813 = vand.u32 %v2809, 65535
        %v2814 = vshrl.u32 %v2809, 16
        %v2815 = vmul.u32 %v2811, %v2813
        %v2816 = vmul.u32 %v2811, %v2814
        %v2817 = vmul.u32 %v2812, %v2813
        %v2818 = vmul.u32 %v2812, %v2814
        %v2819 = vshll.u32 %v2816, 16
        %v2820 = vshrl.u32 %v2816, 16
        %v2821 = vshll.u32 %v2817, 16
        %v2822 = vshrl.u32 %v2817, 16
        %vm2823 = vc.u32 %v2815, %v2819
        %v2824 = vsel %vm2823, 1, 0
        %v2825 = vadd.s32 %v2815, %v2819
        %v2826 = vadd.s32 %v2818, %v2824
        %vm2827 = vc.u32 %v2825, %v2821
        %v2828 = vsel %vm2827, 1, 0
        %v2829 = vadd.s32 %v2825, %v2821
        %v2830 = vadd.s32 %v2826, %v2828
        %v2831 = vadd.s32 %v2830, %v2820
        %v2832 = vadd.s32 %v2831, %v2822
        %v2833 = vand.u32 %v2810, 65535
        %v2834 = vshrl.u32 %v2810, 16
        %v2835 = vand.u32 %v2805, 65535
        %v2836 = vshrl.u32 %v2805, 16
        %v2837 = vmul.u32 %v2833, %v2835
        %v2838 = vmul.u32 %v2833, %v2836
        %v2839 = vmul.u32 %v2834, %v2835
        %v2840 = vmul.u32 %v2834, %v2836
        %v2841 = vshll.u32 %v2838, 16
        %v2842 = vshrl.u32 %v2838, 16
        %v2843 = vshll.u32 %v2839, 16
        %v2844 = vshrl.u32 %v2839, 16
        %vm2845 = vc.u32 %v2837, %v2841
        %v2846 = vsel %vm2845, 1, 0
        %v2847 = vadd.s32 %v2837, %v2841
        %v2848 = vadd.s32 %v2840, %v2846
        %vm2849 = vc.u32 %v2847, %v2843
        %v2850 = vsel %vm2849, 1, 0
        %v2851 = vadd.s32 %v2847, %v2843
        %v2852 = vadd.s32 %v2848, %v2850
        %v2853 = vadd.s32 %v2852, %v2842
        %v2854 = vadd.s32 %v2853, %v2844
        %v2855 = vmul.u32 %v2810, %v2801
        %v2856 = vadd.s32 %v2832, %v2851
        %vm2857 = vc.u32 %v2832, %v2851
        %v2858 = vadd.s32 %v2854, 1
        %v2859 = vsel %vm2857, %v2858, %v2854
        %v2860 = vadd.s32 %v2855, %v2859
        %v2861 = vadd.s32 %v2860, 536870912
        %v2862 = vshrl.u32 %v2861, 30
        %v2863 = vshll.u32 %v2862, 30
        %v2864 = vsub.s32 %v2860, %v2863
        %vm2865 = vcmp.lt.s32.totalorder %v2864, 0
        %v2866 = vsub.s32 0, %v2864
        %v2867 = vsel %vm2865, %v2866, %v2864
        %v2868 = vclz %v2867
        %v2869 = vsub.s32 %v2868, 2
        %vm2870 = vcmp.gt.s32.totalorder 0, %v2869
        %v2871 = vsel %vm2870, 0, %v2869
        %v2872 = vsub.s32 32, %v2871
        %v2873 = vshll.u32 %v2864, %v2871
        %v2874 = vshrl.u32 %v2856, %v2872
        %v2875 = vor.u32 %v2873, %v2874
        %v2876 = vsub.s32 4294967266, %v2871
        %v2877 = vadd.s32 %v2876, 127
        %v2878 = vshll.u32 %v2877, 23
        %v2879 = vor.u32 4788187, %v2878
        %v2880 = vand.u32 2147483647, %v2879
        %v2882 = vcvt.s32.f32 %v2875
        %v2883 = vmul.f32 %v2882, %v2880
        %v2884 = vxor.u32 %v2883, 2147483648
        %v2885 = vsel %vm2764, %v2884, %v2883
        %v2886 = vsub.s32 4, %v2862
        %v2887 = vsel %vm2764, %v2886, %v2862
        %v2888 = vsel %vm2763, %v279, %v2885
        %v2889 = vsel %vm2763, 0, %v2887
        %v2890 = vmul.f32 %v2888, %v2888
        %v2891 = vmul.f32 %v2890, -0.001358992
        %v2892 = vadd.f32 %v2891, 0.041655596
        %v2893 = vmul.f32 %v2890, %v2892
        %v2894 = vadd.f32 %v2893, -0.4999988
        %v2895 = vmul.f32 %v2890, %v2894
        %v2896 = vadd.f32 1.0, %v2895
        %v2897 = vmul.f32 %v2888, %v2888
        %v2898 = vmul.f32 %v2897, -0.00019511016
        %v2899 = vadd.f32 %v2898, 0.008332121
        %v2900 = vmul.f32 %v2897, %v2899
        %v2901 = vadd.f32 %v2900, -0.16666654
        %v2902 = vmul.f32 %v2897, %v2901
        %v2903 = vadd.f32 %v2902, 1.0
        %v2904 = vmul.f32 %v2903, %v2888
        %vm2905 = vweird.f32 %v279
        %v2906 = vadd.s32 %v2889, 3
        %v2907 = vand.u32 %v2906, 3
        %vm2908 = vcmp.lt.s32.totalorder %v2907, 2
        %vm2909 = vcmp.eq.s32.totalorder %v2907, 0
        %v2910 = vxor.u32 %v2904, 2147483648
        %v2911 = vsel %vm2909, %v2896, %v2910
        %vm2912 = vcmp.eq.s32.totalorder %v2907, 2
        %v2913 = vxor.u32 %v2896, 2147483648
        %v2914 = vsel %vm2912, %v2913, %v2904
        %v2915 = vsel %vm2908, %v2911, %v2914
        %v2916 = vsel %vm2905, nan, %v2915
        %v2917 = vand.u32 2147483647, %v280
        %vm2918 = vcmp.le.f32.partialorder %v2917, 0.7853982
        %vm2919 = vcmp.lt.s32.totalorder %v280, 0
        %v2920 = vand.u32 %v280, 2139095040
        %v2921 = vshrl.u32 %v2920, 23
        %v2922 = vsub.s32 %v2921, 127
        %v2923 = vand.u32 2147483647, %v280
        %v2924 = vand.u32 %v2923, 8388607
        %v2925 = vor.u32 %v2924, 8388608
        %v2926 = vsub.s32 0, %v2925
        %v2927 = vadd.s32 %v2922, 1
        %vm2928 = vcmp.gt.s32.totalorder %v2927, 0
        %v2929 = vsel %vm2928, %v2927, 0
        %v2930 = vshrl.u32 %v2929, 5
        %v2931 = vand.u32 %v2929, 31
        %v2932 = vsub.s32 32, %v2931
        %v2933 = vshrl.u32 683565275, %v2932
        %v2934 = vshll.u32 683565275, %v2931
        %v2935 = vshrl.u32 2475754826, %v2932
        %v2936 = vor.u32 %v2934, %v2935
        %v2937 = vshll.u32 2475754826, %v2931
        %v2938 = vshrl.u32 2131351028, %v2932
        %v2939 = vor.u32 %v2937, %v2938
        %v2940 = vshll.u32 2131351028, %v2931
        %v2941 = vshrl.u32 2102212464, %v2932
        %v2942 = vor.u32 %v2940, %v2941
        %v2943 = vshll.u32 2102212464, %v2931
        %v2944 = vshrl.u32 920167782, %v2932
        %v2945 = vor.u32 %v2943, %v2944
        %v2946 = vshll.u32 920167782, %v2931
        %v2947 = vshrl.u32 1326507024, %v2932
        %v2948 = vor.u32 %v2946, %v2947
        %vm2949 = vcmp.lt.s32.totalorder %v2930, 1
        %vm2950 = vcmp.lt.s32.totalorder %v2930, 2
        %vm2951 = vcmp.lt.s32.totalorder %v2930, 3
        %vm2952 = vcmp.lt.s32.totalorder %v2930, 4
        %v2953 = vsel %vm2949, %v2933, %v2936
        %v2954 = vsel %vm2952, %v2942, 2102212464
        %v2955 = vsel %vm2951, %v2939, %v2954
        %v2956 = vsel %vm2950, %v2953, %v2955
        %v2957 = vsel %vm2949, %v2936, %v2939
        %v2958 = vsel %vm2952, %v2945, 920167782
        %v2959 = vsel %vm2951, %v2942, %v2958
        %v2960 = vsel %vm2950, %v2957, %v2959
        %v2961 = vsel %vm2949, %v2939, %v2942
        %v2962 = vsel %vm2952, %v2948, 1326507024
        %v2963 = vsel %vm2951, %v2945, %v2962
        %v2964 = vsel %vm2950, %v2961, %v2963
        %v2965 = vshll.u32 %v2925, 8
        %v2966 = vand.u32 %v2965, 65535
        %v2967 = vshrl.u32 %v2965, 16
        %v2968 = vand.u32 %v2964, 65535
        %v2969 = vshrl.u32 %v2964, 16
        %v2970 = vmul.u32 %v2966, %v2968
        %v2971 = vmul.u32 %v2966, %v2969
        %v2972 = vmul.u32 %v2967, %v2968
        %v2973 = vmul.u32 %v2967, %v2969
        %v2974 = vshll.u32 %v2971, 16
        %v2975 = vshrl.u32 %v2971, 16
        %v2976 = vshll.u32 %v2972, 16
        %v2977 = vshrl.u32 %v2972, 16
        %vm2978 = vc.u32 %v2970, %v2974
        %v2979 = vsel %vm2978, 1, 0
        %v2980 = vadd.s32 %v2970, %v2974
        %v2981 = vadd.s32 %v2973, %v2979
        %vm2982 = vc.u32 %v2980, %v2976
        %v2983 = vsel %vm2982, 1, 0
        %v2984 = vadd.s32 %v2980, %v2976
        %v2985 = vadd.s32 %v2981, %v2983
        %v2986 = vadd.s32 %v2985, %v2975
        %v2987 = vadd.s32 %v2986, %v2977
        %v2988 = vand.u32 %v2965, 65535
        %v2989 = vshrl.u32 %v2965, 16
        %v2990 = vand.u32 %v2960, 65535
        %v2991 = vshrl.u32 %v2960, 16
        %v2992 = vmul.u32 %v2988, %v2990
        %v2993 = vmul.u32 %v2988, %v2991
        %v2994 = vmul.u32 %v2989, %v2990
        %v2995 = vmul.u32 %v2989, %v2991
        %v2996 = vshll.u32 %v2993, 16
        %v2997 = vshrl.u32 %v2993, 16
        %v2998 = vshll.u32 %v2994, 16
        %v2999 = vshrl.u32 %v2994, 16
        %vm3000 = vc.u32 %v2992, %v2996
        %v3001 = vsel %vm3000, 1, 0
        %v3002 = vadd.s32 %v2992, %v2996
        %v3003 = vadd.s32 %v2995, %v3001
        %vm3004 = vc.u32 %v3002, %v2998
        %v3005 = vsel %vm3004, 1, 0
        %v3006 = vadd.s32 %v3002, %v2998
        %v3007 = vadd.s32 %v3003, %v3005
        %v3008 = vadd.s32 %v3007, %v2997
        %v3009 = vadd.s32 %v3008, %v2999
        %v3010 = vmul.u32 %v2965, %v2956
        %v3011 = vadd.s32 %v2987, %v3006
        %vm3012 = vc.u32 %v2987, %v3006
        %v3013 = vadd.s32 %v3009, 1
        %v3014 = vsel %vm3012, %v3013, %v3009
        %v3015 = vadd.s32 %v3010, %v3014
        %v3016 = vadd.s32 %v3015, 536870912
        %v3017 = vshrl.u32 %v3016, 30
        %v3018 = vshll.u32 %v3017, 30
        %v3019 = vsub.s32 %v3015, %v3018
        %vm3020 = vcmp.lt.s32.totalorder %v3019, 0
        %v3021 = vsub.s32 0, %v3019
        %v3022 = vsel %vm3020, %v3021, %v3019
        %v3023 = vclz %v3022
        %v3024 = vsub.s32 %v3023, 2
        %vm3025 = vcmp.gt.s32.totalorder 0, %v3024
        %v3026 = vsel %vm3025, 0, %v3024
        %v3027 = vsub.s32 32, %v3026
        %v3028 = vshll.u32 %v3019, %v3026
        %v3029 = vshrl.u32 %v3011, %v3027
        %v3030 = vor.u32 %v3028, %v3029
        %v3031 = vsub.s32 4294967266, %v3026
        %v3032 = vadd.s32 %v3031, 127
        %v3033 = vshll.u32 %v3032, 23
        %v3034 = vor.u32 4788187, %v3033
        %v3035 = vand.u32 2147483647, %v3034
        %v3037 = vcvt.s32.f32 %v3030
        %v3038 = vmul.f32 %v3037, %v3035
        %v3039 = vxor.u32 %v3038, 2147483648
        %v3040 = vsel %vm2919, %v3039, %v3038
        %v3041 = vsub.s32 4, %v3017
        %v3042 = vsel %vm2919, %v3041, %v3017
        %v3043 = vsel %vm2918, %v280, %v3040
        %v3044 = vsel %vm2918, 0, %v3042
        %v3045 = vmul.f32 %v3043, %v3043
        %v3046 = vmul.f32 %v3045, -0.001358992
        %v3047 = vadd.f32 %v3046, 0.041655596
        %v3048 = vmul.f32 %v3045, %v3047
        %v3049 = vadd.f32 %v3048, -0.4999988
        %v3050 = vmul.f32 %v3045, %v3049
        %v3051 = vadd.f32 1.0, %v3050
        %v3052 = vmul.f32 %v3043, %v3043
        %v3053 = vmul.f32 %v3052, -0.00019511016
        %v3054 = vadd.f32 %v3053, 0.008332121
        %v3055 = vmul.f32 %v3052, %v3054
        %v3056 = vadd.f32 %v3055, -0.16666654
        %v3057 = vmul.f32 %v3052, %v3056
        %v3058 = vadd.f32 %v3057, 1.0
        %v3059 = vmul.f32 %v3058, %v3043
        %vm3060 = vweird.f32 %v280
        %v3061 = vadd.s32 %v3044, 3
        %v3062 = vand.u32 %v3061, 3
        %vm3063 = vcmp.lt.s32.totalorder %v3062, 2
        %vm3064 = vcmp.eq.s32.totalorder %v3062, 0
        %v3065 = vxor.u32 %v3059, 2147483648
        %v3066 = vsel %vm3064, %v3051, %v3065
        %vm3067 = vcmp.eq.s32.totalorder %v3062, 2
        %v3068 = vxor.u32 %v3051, 2147483648
        %v3069 = vsel %vm3067, %v3068, %v3059
        %v3070 = vsel %vm3063, %v3066, %v3069
        %v3071 = vsel %vm3060, nan, %v3070
        %v3072 = vand.u32 2147483647, %v281
        %vm3073 = vcmp.le.f32.partialorder %v3072, 0.7853982
        %vm3074 = vcmp.lt.s32.totalorder %v281, 0
        %v3075 = vand.u32 %v281, 2139095040
        %v3076 = vshrl.u32 %v3075, 23
        %v3077 = vsub.s32 %v3076, 127
        %v3078 = vand.u32 2147483647, %v281
        %v3079 = vand.u32 %v3078, 8388607
        %v3080 = vor.u32 %v3079, 8388608
        %v3081 = vsub.s32 0, %v3080
        %v3082 = vadd.s32 %v3077, 1
        %vm3083 = vcmp.gt.s32.totalorder %v3082, 0
        %v3084 = vsel %vm3083, %v3082, 0
        %v3085 = vshrl.u32 %v3084, 5
        %v3086 = vand.u32 %v3084, 31
        %v3087 = vsub.s32 32, %v3086
        %v3088 = vshrl.u32 683565275, %v3087
        %v3089 = vshll.u32 683565275, %v3086
        %v3090 = vshrl.u32 2475754826, %v3087
        %v3091 = vor.u32 %v3089, %v3090
        %v3092 = vshll.u32 2475754826, %v3086
        %v3093 = vshrl.u32 2131351028, %v3087
        %v3094 = vor.u32 %v3092, %v3093
        %v3095 = vshll.u32 2131351028, %v3086
        %v3096 = vshrl.u32 2102212464, %v3087
        %v3097 = vor.u32 %v3095, %v3096
        %v3098 = vshll.u32 2102212464, %v3086
        %v3099 = vshrl.u32 920167782, %v3087
        %v3100 = vor.u32 %v3098, %v3099
        %v3101 = vshll.u32 920167782, %v3086
        %v3102 = vshrl.u32 1326507024, %v3087
        %v3103 = vor.u32 %v3101, %v3102
        %vm3104 = vcmp.lt.s32.totalorder %v3085, 1
        %vm3105 = vcmp.lt.s32.totalorder %v3085, 2
        %vm3106 = vcmp.lt.s32.totalorder %v3085, 3
        %vm3107 = vcmp.lt.s32.totalorder %v3085, 4
        %v3108 = vsel %vm3104, %v3088, %v3091
        %v3109 = vsel %vm3107, %v3097, 2102212464
        %v3110 = vsel %vm3106, %v3094, %v3109
        %v3111 = vsel %vm3105, %v3108, %v3110
        %v3112 = vsel %vm3104, %v3091, %v3094
        %v3113 = vsel %vm3107, %v3100, 920167782
        %v3114 = vsel %vm3106, %v3097, %v3113
        %v3115 = vsel %vm3105, %v3112, %v3114
        %v3116 = vsel %vm3104, %v3094, %v3097
        %v3117 = vsel %vm3107, %v3103, 1326507024
        %v3118 = vsel %vm3106, %v3100, %v3117
        %v3119 = vsel %vm3105, %v3116, %v3118
        %v3120 = vshll.u32 %v3080, 8
        %v3121 = vand.u32 %v3120, 65535
        %v3122 = vshrl.u32 %v3120, 16
        %v3123 = vand.u32 %v3119, 65535
        %v3124 = vshrl.u32 %v3119, 16
        %v3125 = vmul.u32 %v3121, %v3123
        %v3126 = vmul.u32 %v3121, %v3124
        %v3127 = vmul.u32 %v3122, %v3123
        %v3128 = vmul.u32 %v3122, %v3124
        %v3129 = vshll.u32 %v3126, 16
        %v3130 = vshrl.u32 %v3126, 16
        %v3131 = vshll.u32 %v3127, 16
        %v3132 = vshrl.u32 %v3127, 16
        %vm3133 = vc.u32 %v3125, %v3129
        %v3134 = vsel %vm3133, 1, 0
        %v3135 = vadd.s32 %v3125, %v3129
        %v3136 = vadd.s32 %v3128, %v3134
        %vm3137 = vc.u32 %v3135, %v3131
        %v3138 = vsel %vm3137, 1, 0
        %v3139 = vadd.s32 %v3135, %v3131
        %v3140 = vadd.s32 %v3136, %v3138
        %v3141 = vadd.s32 %v3140, %v3130
        %v3142 = vadd.s32 %v3141, %v3132
        %v3143 = vand.u32 %v3120, 65535
        %v3144 = vshrl.u32 %v3120, 16
        %v3145 = vand.u32 %v3115, 65535
        %v3146 = vshrl.u32 %v3115, 16
        %v3147 = vmul.u32 %v3143, %v3145
        %v3148 = vmul.u32 %v3143, %v3146
        %v3149 = vmul.u32 %v3144, %v3145
        %v3150 = vmul.u32 %v3144, %v3146
        %v3151 = vshll.u32 %v3148, 16
        %v3152 = vshrl.u32 %v3148, 16
        %v3153 = vshll.u32 %v3149, 16
        %v3154 = vshrl.u32 %v3149, 16
        %vm3155 = vc.u32 %v3147, %v3151
        %v3156 = vsel %vm3155, 1, 0
        %v3157 = vadd.s32 %v3147, %v3151
        %v3158 = vadd.s32 %v3150, %v3156
        %vm3159 = vc.u32 %v3157, %v3153
        %v3160 = vsel %vm3159, 1, 0
        %v3161 = vadd.s32 %v3157, %v3153
        %v3162 = vadd.s32 %v3158, %v3160
        %v3163 = vadd.s32 %v3162, %v3152
        %v3164 = vadd.s32 %v3163, %v3154
        %v3165 = vmul.u32 %v3120, %v3111
        %v3166 = vadd.s32 %v3142, %v3161
        %vm3167 = vc.u32 %v3142, %v3161
        %v3168 = vadd.s32 %v3164, 1
        %v3169 = vsel %vm3167, %v3168, %v3164
        %v3170 = vadd.s32 %v3165, %v3169
        %v3171 = vadd.s32 %v3170, 536870912
        %v3172 = vshrl.u32 %v3171, 30
        %v3173 = vshll.u32 %v3172, 30
        %v3174 = vsub.s32 %v3170, %v3173
        %vm3175 = vcmp.lt.s32.totalorder %v3174, 0
        %v3176 = vsub.s32 0, %v3174
        %v3177 = vsel %vm3175, %v3176, %v3174
        %v3178 = vclz %v3177
        %v3179 = vsub.s32 %v3178, 2
        %vm3180 = vcmp.gt.s32.totalorder 0, %v3179
        %v3181 = vsel %vm3180, 0, %v3179
        %v3182 = vsub.s32 32, %v3181
        %v3183 = vshll.u32 %v3174, %v3181
        %v3184 = vshrl.u32 %v3166, %v3182
        %v3185 = vor.u32 %v3183, %v3184
        %v3186 = vsub.s32 4294967266, %v3181
        %v3187 = vadd.s32 %v3186, 127
        %v3188 = vshll.u32 %v3187, 23
        %v3189 = vor.u32 4788187, %v3188
        %v3190 = vand.u32 2147483647, %v3189
        %v3192 = vcvt.s32.f32 %v3185
        %v3193 = vmul.f32 %v3192, %v3190
        %v3194 = vxor.u32 %v3193, 2147483648
        %v3195 = vsel %vm3074, %v3194, %v3193
        %v3196 = vsub.s32 4, %v3172
        %v3197 = vsel %vm3074, %v3196, %v3172
        %v3198 = vsel %vm3073, %v281, %v3195
        %v3199 = vsel %vm3073, 0, %v3197
        %v3200 = vmul.f32 %v3198, %v3198
        %v3201 = vmul.f32 %v3200, -0.001358992
        %v3202 = vadd.f32 %v3201, 0.041655596
        %v3203 = vmul.f32 %v3200, %v3202
        %v3204 = vadd.f32 %v3203, -0.4999988
        %v3205 = vmul.f32 %v3200, %v3204
        %v3206 = vadd.f32 1.0, %v3205
        %v3207 = vmul.f32 %v3198, %v3198
        %v3208 = vmul.f32 %v3207, -0.00019511016
        %v3209 = vadd.f32 %v3208, 0.008332121
        %v3210 = vmul.f32 %v3207, %v3209
        %v3211 = vadd.f32 %v3210, -0.16666654
        %v3212 = vmul.f32 %v3207, %v3211
        %v3213 = vadd.f32 %v3212, 1.0
        %v3214 = vmul.f32 %v3213, %v3198
        %vm3215 = vweird.f32 %v281
        %v3216 = vadd.s32 %v3199, 3
        %v3217 = vand.u32 %v3216, 3
        %vm3218 = vcmp.lt.s32.totalorder %v3217, 2
        %vm3219 = vcmp.eq.s32.totalorder %v3217, 0
        %v3220 = vxor.u32 %v3214, 2147483648
        %v3221 = vsel %vm3219, %v3206, %v3220
        %vm3222 = vcmp.eq.s32.totalorder %v3217, 2
        %v3223 = vxor.u32 %v3206, 2147483648
        %v3224 = vsel %vm3222, %v3223, %v3214
        %v3225 = vsel %vm3218, %v3221, %v3224
        %v3226 = vsel %vm3215, nan, %v3225
        %3227 = vst [vmem:[%s137] sm:$0xff] %v436
        %3228 = vst [vmem:[%s137 + $0x10] sm:$0xff] %v591
        %3229 = vst [vmem:[%s137 + $0x20] sm:$0xff] %v746
        %3230 = vst [vmem:[%s137 + $0x30] sm:$0xff] %v901
        %3231 = vst [vmem:[%s137 + $0x40] sm:$0xff] %v1056
        %3232 = vst [vmem:[%s137 + $0x50] sm:$0xff] %v1211
        %3233 = vst [vmem:[%s137 + $0x60] sm:$0xff] %v1366
        %3234 = vst [vmem:[%s137 + $0x70] sm:$0xff] %v1521
        %3235 = vst [vmem:[%s137 + $0x80] sm:$0xff] %v1676
        %3236 = vst [vmem:[%s137 + $0x90] sm:$0xff] %v1831
        %3237 = vst [vmem:[%s137 + $0xa0] sm:$0xff] %v1986
        %3238 = vst [vmem:[%s137 + $0xb0] sm:$0xff] %v2141
        %3239 = vst [vmem:[%s137 + $0xc0] sm:$0xff] %v2296
        %3240 = vst [vmem:[%s137 + $0xd0] sm:$0xff] %v2451
        %3241 = vst [vmem:[%s137 + $0xe0] sm:$0xff] %v2606
        %3242 = vst [vmem:[%s137 + $0xf0] sm:$0xff] %v2761
        %3243 = vst [vmem:[%s137 + $0x100] sm:$0xff] %v2916
        %3244 = vst [vmem:[%s137 + $0x110] sm:$0xff] %v3071
        %3245 = vst [vmem:[%s137 + $0x120] sm:$0xff] %v3226
        %v3246 = vand.u32 2147483647, %v263
        %vm3247 = vcmp.le.f32.partialorder %v3246, 0.7853982
        %vm3248 = vcmp.lt.s32.totalorder %v263, 0
        %v3249 = vand.u32 %v263, 2139095040
        %v3250 = vshrl.u32 %v3249, 23
        %v3251 = vsub.s32 %v3250, 127
        %v3252 = vand.u32 2147483647, %v263
        %v3253 = vand.u32 %v3252, 8388607
        %v3254 = vor.u32 %v3253, 8388608
        %v3255 = vsub.s32 0, %v3254
        %v3256 = vadd.s32 %v3251, 1
        %vm3257 = vcmp.gt.s32.totalorder %v3256, 0
        %v3258 = vsel %vm3257, %v3256, 0
        %v3259 = vshrl.u32 %v3258, 5
        %v3260 = vand.u32 %v3258, 31
        %v3261 = vsub.s32 32, %v3260
        %v3262 = vshrl.u32 683565275, %v3261
        %v3263 = vshll.u32 683565275, %v3260
        %v3264 = vshrl.u32 2475754826, %v3261
        %v3265 = vor.u32 %v3263, %v3264
        %v3266 = vshll.u32 2475754826, %v3260
        %v3267 = vshrl.u32 2131351028, %v3261
        %v3268 = vor.u32 %v3266, %v3267
        %v3269 = vshll.u32 2131351028, %v3260
        %v3270 = vshrl.u32 2102212464, %v3261
        %v3271 = vor.u32 %v3269, %v3270
        %v3272 = vshll.u32 2102212464, %v3260
        %v3273 = vshrl.u32 920167782, %v3261
        %v3274 = vor.u32 %v3272, %v3273
        %v3275 = vshll.u32 920167782, %v3260
        %v3276 = vshrl.u32 1326507024, %v3261
        %v3277 = vor.u32 %v3275, %v3276
        %vm3278 = vcmp.lt.s32.totalorder %v3259, 1
        %vm3279 = vcmp.lt.s32.totalorder %v3259, 2
        %vm3280 = vcmp.lt.s32.totalorder %v3259, 3
        %vm3281 = vcmp.lt.s32.totalorder %v3259, 4
        %v3282 = vsel %vm3278, %v3262, %v3265
        %v3283 = vsel %vm3281, %v3271, 2102212464
        %v3284 = vsel %vm3280, %v3268, %v3283
        %v3285 = vsel %vm3279, %v3282, %v3284
        %v3286 = vsel %vm3278, %v3265, %v3268
        %v3287 = vsel %vm3281, %v3274, 920167782
        %v3288 = vsel %vm3280, %v3271, %v3287
        %v3289 = vsel %vm3279, %v3286, %v3288
        %v3290 = vsel %vm3278, %v3268, %v3271
        %v3291 = vsel %vm3281, %v3277, 1326507024
        %v3292 = vsel %vm3280, %v3274, %v3291
        %v3293 = vsel %vm3279, %v3290, %v3292
        %v3294 = vshll.u32 %v3254, 8
        %v3295 = vand.u32 %v3294, 65535
        %v3296 = vshrl.u32 %v3294, 16
        %v3297 = vand.u32 %v3293, 65535
        %v3298 = vshrl.u32 %v3293, 16
        %v3299 = vmul.u32 %v3295, %v3297
        %v3300 = vmul.u32 %v3295, %v3298
        %v3301 = vmul.u32 %v3296, %v3297
        %v3302 = vmul.u32 %v3296, %v3298
        %v3303 = vshll.u32 %v3300, 16
        %v3304 = vshrl.u32 %v3300, 16
        %v3305 = vshll.u32 %v3301, 16
        %v3306 = vshrl.u32 %v3301, 16
        %vm3307 = vc.u32 %v3299, %v3303
        %v3308 = vsel %vm3307, 1, 0
        %v3309 = vadd.s32 %v3299, %v3303
        %v3310 = vadd.s32 %v3302, %v3308
        %vm3311 = vc.u32 %v3309, %v3305
        %v3312 = vsel %vm3311, 1, 0
        %v3313 = vadd.s32 %v3309, %v3305
        %v3314 = vadd.s32 %v3310, %v3312
        %v3315 = vadd.s32 %v3314, %v3304
        %v3316 = vadd.s32 %v3315, %v3306
        %v3317 = vand.u32 %v3294, 65535
        %v3318 = vshrl.u32 %v3294, 16
        %v3319 = vand.u32 %v3289, 65535
        %v3320 = vshrl.u32 %v3289, 16
        %v3321 = vmul.u32 %v3317, %v3319
        %v3322 = vmul.u32 %v3317, %v3320
        %v3323 = vmul.u32 %v3318, %v3319
        %v3324 = vmul.u32 %v3318, %v3320
        %v3325 = vshll.u32 %v3322, 16
        %v3326 = vshrl.u32 %v3322, 16
        %v3327 = vshll.u32 %v3323, 16
        %v3328 = vshrl.u32 %v3323, 16
        %vm3329 = vc.u32 %v3321, %v3325
        %v3330 = vsel %vm3329, 1, 0
        %v3331 = vadd.s32 %v3321, %v3325
        %v3332 = vadd.s32 %v3324, %v3330
        %vm3333 = vc.u32 %v3331, %v3327
        %v3334 = vsel %vm3333, 1, 0
        %v3335 = vadd.s32 %v3331, %v3327
        %v3336 = vadd.s32 %v3332, %v3334
        %v3337 = vadd.s32 %v3336, %v3326
        %v3338 = vadd.s32 %v3337, %v3328
        %v3339 = vmul.u32 %v3294, %v3285
        %v3340 = vadd.s32 %v3316, %v3335
        %vm3341 = vc.u32 %v3316, %v3335
        %v3342 = vadd.s32 %v3338, 1
        %v3343 = vsel %vm3341, %v3342, %v3338
        %v3344 = vadd.s32 %v3339, %v3343
        %v3345 = vadd.s32 %v3344, 536870912
        %v3346 = vshrl.u32 %v3345, 30
        %v3347 = vshll.u32 %v3346, 30
        %v3348 = vsub.s32 %v3344, %v3347
        %vm3349 = vcmp.lt.s32.totalorder %v3348, 0
        %v3350 = vsub.s32 0, %v3348
        %v3351 = vsel %vm3349, %v3350, %v3348
        %v3352 = vclz %v3351
        %v3353 = vsub.s32 %v3352, 2
        %vm3354 = vcmp.gt.s32.totalorder 0, %v3353
        %v3355 = vsel %vm3354, 0, %v3353
        %v3356 = vsub.s32 32, %v3355
        %v3357 = vshll.u32 %v3348, %v3355
        %v3358 = vshrl.u32 %v3340, %v3356
        %v3359 = vor.u32 %v3357, %v3358
        %v3360 = vsub.s32 4294967266, %v3355
        %v3361 = vadd.s32 %v3360, 127
        %v3362 = vshll.u32 %v3361, 23
        %v3363 = vor.u32 4788187, %v3362
        %v3364 = vand.u32 2147483647, %v3363
        %v3366 = vcvt.s32.f32 %v3359
        %v3367 = vmul.f32 %v3366, %v3364
        %v3368 = vxor.u32 %v3367, 2147483648
        %v3369 = vsel %vm3248, %v3368, %v3367
        %v3370 = vsub.s32 4, %v3346
        %v3371 = vsel %vm3248, %v3370, %v3346
        %v3372 = vsel %vm3247, %v263, %v3369
        %v3373 = vsel %vm3247, 0, %v3371
        %v3374 = vmul.f32 %v3372, %v3372
        %v3375 = vmul.f32 %v3374, -0.001358992
        %v3376 = vadd.f32 %v3375, 0.041655596
        %v3377 = vmul.f32 %v3374, %v3376
        %v3378 = vadd.f32 %v3377, -0.4999988
        %v3379 = vmul.f32 %v3374, %v3378
        %v3380 = vadd.f32 1.0, %v3379
        %v3381 = vmul.f32 %v3372, %v3372
        %v3382 = vmul.f32 %v3381, -0.00019511016
        %v3383 = vadd.f32 %v3382, 0.008332121
        %v3384 = vmul.f32 %v3381, %v3383
        %v3385 = vadd.f32 %v3384, -0.16666654
        %v3386 = vmul.f32 %v3381, %v3385
        %v3387 = vadd.f32 %v3386, 1.0
        %v3388 = vmul.f32 %v3387, %v3372
        %vm3389 = vweird.f32 %v263
        %v3390 = vand.u32 %v3373, 3
        %vm3391 = vcmp.lt.s32.totalorder %v3390, 2
        %vm3392 = vcmp.eq.s32.totalorder %v3390, 0
        %v3393 = vxor.u32 %v3388, 2147483648
        %v3394 = vsel %vm3392, %v3380, %v3393
        %vm3395 = vcmp.eq.s32.totalorder %v3390, 2
        %v3396 = vxor.u32 %v3380, 2147483648
        %v3397 = vsel %vm3395, %v3396, %v3388
        %v3398 = vsel %vm3391, %v3394, %v3397
        %v3399 = vsel %vm3389, nan, %v3398
        %v3400 = vand.u32 2147483647, %v264
        %vm3401 = vcmp.le.f32.partialorder %v3400, 0.7853982
        %vm3402 = vcmp.lt.s32.totalorder %v264, 0
        %v3403 = vand.u32 %v264, 2139095040
        %v3404 = vshrl.u32 %v3403, 23
        %v3405 = vsub.s32 %v3404, 127
        %v3406 = vand.u32 2147483647, %v264
        %v3407 = vand.u32 %v3406, 8388607
        %v3408 = vor.u32 %v3407, 8388608
        %v3409 = vsub.s32 0, %v3408
        %v3410 = vadd.s32 %v3405, 1
        %vm3411 = vcmp.gt.s32.totalorder %v3410, 0
        %v3412 = vsel %vm3411, %v3410, 0
        %v3413 = vshrl.u32 %v3412, 5
        %v3414 = vand.u32 %v3412, 31
        %v3415 = vsub.s32 32, %v3414
        %v3416 = vshrl.u32 683565275, %v3415
        %v3417 = vshll.u32 683565275, %v3414
        %v3418 = vshrl.u32 2475754826, %v3415
        %v3419 = vor.u32 %v3417, %v3418
        %v3420 = vshll.u32 2475754826, %v3414
        %v3421 = vshrl.u32 2131351028, %v3415
        %v3422 = vor.u32 %v3420, %v3421
        %v3423 = vshll.u32 2131351028, %v3414
        %v3424 = vshrl.u32 2102212464, %v3415
        %v3425 = vor.u32 %v3423, %v3424
        %v3426 = vshll.u32 2102212464, %v3414
        %v3427 = vshrl.u32 920167782, %v3415
        %v3428 = vor.u32 %v3426, %v3427
        %v3429 = vshll.u32 920167782, %v3414
        %v3430 = vshrl.u32 1326507024, %v3415
        %v3431 = vor.u32 %v3429, %v3430
        %vm3432 = vcmp.lt.s32.totalorder %v3413, 1
        %vm3433 = vcmp.lt.s32.totalorder %v3413, 2
        %vm3434 = vcmp.lt.s32.totalorder %v3413, 3
        %vm3435 = vcmp.lt.s32.totalorder %v3413, 4
        %v3436 = vsel %vm3432, %v3416, %v3419
        %v3437 = vsel %vm3435, %v3425, 2102212464
        %v3438 = vsel %vm3434, %v3422, %v3437
        %v3439 = vsel %vm3433, %v3436, %v3438
        %v3440 = vsel %vm3432, %v3419, %v3422
        %v3441 = vsel %vm3435, %v3428, 920167782
        %v3442 = vsel %vm3434, %v3425, %v3441
        %v3443 = vsel %vm3433, %v3440, %v3442
        %v3444 = vsel %vm3432, %v3422, %v3425
        %v3445 = vsel %vm3435, %v3431, 1326507024
        %v3446 = vsel %vm3434, %v3428, %v3445
        %v3447 = vsel %vm3433, %v3444, %v3446
        %v3448 = vshll.u32 %v3408, 8
        %v3449 = vand.u32 %v3448, 65535
        %v3450 = vshrl.u32 %v3448, 16
        %v3451 = vand.u32 %v3447, 65535
        %v3452 = vshrl.u32 %v3447, 16
        %v3453 = vmul.u32 %v3449, %v3451
        %v3454 = vmul.u32 %v3449, %v3452
        %v3455 = vmul.u32 %v3450, %v3451
        %v3456 = vmul.u32 %v3450, %v3452
        %v3457 = vshll.u32 %v3454, 16
        %v3458 = vshrl.u32 %v3454, 16
        %v3459 = vshll.u32 %v3455, 16
        %v3460 = vshrl.u32 %v3455, 16
        %vm3461 = vc.u32 %v3453, %v3457
        %v3462 = vsel %vm3461, 1, 0
        %v3463 = vadd.s32 %v3453, %v3457
        %v3464 = vadd.s32 %v3456, %v3462
        %vm3465 = vc.u32 %v3463, %v3459
        %v3466 = vsel %vm3465, 1, 0
        %v3467 = vadd.s32 %v3463, %v3459
        %v3468 = vadd.s32 %v3464, %v3466
        %v3469 = vadd.s32 %v3468, %v3458
        %v3470 = vadd.s32 %v3469, %v3460
        %v3471 = vand.u32 %v3448, 65535
        %v3472 = vshrl.u32 %v3448, 16
        %v3473 = vand.u32 %v3443, 65535
        %v3474 = vshrl.u32 %v3443, 16
        %v3475 = vmul.u32 %v3471, %v3473
        %v3476 = vmul.u32 %v3471, %v3474
        %v3477 = vmul.u32 %v3472, %v3473
        %v3478 = vmul.u32 %v3472, %v3474
        %v3479 = vshll.u32 %v3476, 16
        %v3480 = vshrl.u32 %v3476, 16
        %v3481 = vshll.u32 %v3477, 16
        %v3482 = vshrl.u32 %v3477, 16
        %vm3483 = vc.u32 %v3475, %v3479
        %v3484 = vsel %vm3483, 1, 0
        %v3485 = vadd.s32 %v3475, %v3479
        %v3486 = vadd.s32 %v3478, %v3484
        %vm3487 = vc.u32 %v3485, %v3481
        %v3488 = vsel %vm3487, 1, 0
        %v3489 = vadd.s32 %v3485, %v3481
        %v3490 = vadd.s32 %v3486, %v3488
        %v3491 = vadd.s32 %v3490, %v3480
        %v3492 = vadd.s32 %v3491, %v3482
        %v3493 = vmul.u32 %v3448, %v3439
        %v3494 = vadd.s32 %v3470, %v3489
        %vm3495 = vc.u32 %v3470, %v3489
        %v3496 = vadd.s32 %v3492, 1
        %v3497 = vsel %vm3495, %v3496, %v3492
        %v3498 = vadd.s32 %v3493, %v3497
        %v3499 = vadd.s32 %v3498, 536870912
        %v3500 = vshrl.u32 %v3499, 30
        %v3501 = vshll.u32 %v3500, 30
        %v3502 = vsub.s32 %v3498, %v3501
        %vm3503 = vcmp.lt.s32.totalorder %v3502, 0
        %v3504 = vsub.s32 0, %v3502
        %v3505 = vsel %vm3503, %v3504, %v3502
        %v3506 = vclz %v3505
        %v3507 = vsub.s32 %v3506, 2
        %vm3508 = vcmp.gt.s32.totalorder 0, %v3507
        %v3509 = vsel %vm3508, 0, %v3507
        %v3510 = vsub.s32 32, %v3509
        %v3511 = vshll.u32 %v3502, %v3509
        %v3512 = vshrl.u32 %v3494, %v3510
        %v3513 = vor.u32 %v3511, %v3512
        %v3514 = vsub.s32 4294967266, %v3509
        %v3515 = vadd.s32 %v3514, 127
        %v3516 = vshll.u32 %v3515, 23
        %v3517 = vor.u32 4788187, %v3516
        %v3518 = vand.u32 2147483647, %v3517
        %v3520 = vcvt.s32.f32 %v3513
        %v3521 = vmul.f32 %v3520, %v3518
        %v3522 = vxor.u32 %v3521, 2147483648
        %v3523 = vsel %vm3402, %v3522, %v3521
        %v3524 = vsub.s32 4, %v3500
        %v3525 = vsel %vm3402, %v3524, %v3500
        %v3526 = vsel %vm3401, %v264, %v3523
        %v3527 = vsel %vm3401, 0, %v3525
        %v3528 = vmul.f32 %v3526, %v3526
        %v3529 = vmul.f32 %v3528, -0.001358992
        %v3530 = vadd.f32 %v3529, 0.041655596
        %v3531 = vmul.f32 %v3528, %v3530
        %v3532 = vadd.f32 %v3531, -0.4999988
        %v3533 = vmul.f32 %v3528, %v3532
        %v3534 = vadd.f32 1.0, %v3533
        %v3535 = vmul.f32 %v3526, %v3526
        %v3536 = vmul.f32 %v3535, -0.00019511016
        %v3537 = vadd.f32 %v3536, 0.008332121
        %v3538 = vmul.f32 %v3535, %v3537
        %v3539 = vadd.f32 %v3538, -0.16666654
        %v3540 = vmul.f32 %v3535, %v3539
        %v3541 = vadd.f32 %v3540, 1.0
        %v3542 = vmul.f32 %v3541, %v3526
        %vm3543 = vweird.f32 %v264
        %v3544 = vand.u32 %v3527, 3
        %vm3545 = vcmp.lt.s32.totalorder %v3544, 2
        %vm3546 = vcmp.eq.s32.totalorder %v3544, 0
        %v3547 = vxor.u32 %v3542, 2147483648
        %v3548 = vsel %vm3546, %v3534, %v3547
        %vm3549 = vcmp.eq.s32.totalorder %v3544, 2
        %v3550 = vxor.u32 %v3534, 2147483648
        %v3551 = vsel %vm3549, %v3550, %v3542
        %v3552 = vsel %vm3545, %v3548, %v3551
        %v3553 = vsel %vm3543, nan, %v3552
        %v3554 = vand.u32 2147483647, %v265
        %vm3555 = vcmp.le.f32.partialorder %v3554, 0.7853982
        %vm3556 = vcmp.lt.s32.totalorder %v265, 0
        %v3557 = vand.u32 %v265, 2139095040
        %v3558 = vshrl.u32 %v3557, 23
        %v3559 = vsub.s32 %v3558, 127
        %v3560 = vand.u32 2147483647, %v265
        %v3561 = vand.u32 %v3560, 8388607
        %v3562 = vor.u32 %v3561, 8388608
        %v3563 = vsub.s32 0, %v3562
        %v3564 = vadd.s32 %v3559, 1
        %vm3565 = vcmp.gt.s32.totalorder %v3564, 0
        %v3566 = vsel %vm3565, %v3564, 0
        %v3567 = vshrl.u32 %v3566, 5
        %v3568 = vand.u32 %v3566, 31
        %v3569 = vsub.s32 32, %v3568
        %v3570 = vshrl.u32 683565275, %v3569
        %v3571 = vshll.u32 683565275, %v3568
        %v3572 = vshrl.u32 2475754826, %v3569
        %v3573 = vor.u32 %v3571, %v3572
        %v3574 = vshll.u32 2475754826, %v3568
        %v3575 = vshrl.u32 2131351028, %v3569
        %v3576 = vor.u32 %v3574, %v3575
        %v3577 = vshll.u32 2131351028, %v3568
        %v3578 = vshrl.u32 2102212464, %v3569
        %v3579 = vor.u32 %v3577, %v3578
        %v3580 = vshll.u32 2102212464, %v3568
        %v3581 = vshrl.u32 920167782, %v3569
        %v3582 = vor.u32 %v3580, %v3581
        %v3583 = vshll.u32 920167782, %v3568
        %v3584 = vshrl.u32 1326507024, %v3569
        %v3585 = vor.u32 %v3583, %v3584
        %vm3586 = vcmp.lt.s32.totalorder %v3567, 1
        %vm3587 = vcmp.lt.s32.totalorder %v3567, 2
        %vm3588 = vcmp.lt.s32.totalorder %v3567, 3
        %vm3589 = vcmp.lt.s32.totalorder %v3567, 4
        %v3590 = vsel %vm3586, %v3570, %v3573
        %v3591 = vsel %vm3589, %v3579, 2102212464
        %v3592 = vsel %vm3588, %v3576, %v3591
        %v3593 = vsel %vm3587, %v3590, %v3592
        %v3594 = vsel %vm3586, %v3573, %v3576
        %v3595 = vsel %vm3589, %v3582, 920167782
        %v3596 = vsel %vm3588, %v3579, %v3595
        %v3597 = vsel %vm3587, %v3594, %v3596
        %v3598 = vsel %vm3586, %v3576, %v3579
        %v3599 = vsel %vm3589, %v3585, 1326507024
        %v3600 = vsel %vm3588, %v3582, %v3599
        %v3601 = vsel %vm3587, %v3598, %v3600
        %v3602 = vshll.u32 %v3562, 8
        %v3603 = vand.u32 %v3602, 65535
        %v3604 = vshrl.u32 %v3602, 16
        %v3605 = vand.u32 %v3601, 65535
        %v3606 = vshrl.u32 %v3601, 16
        %v3607 = vmul.u32 %v3603, %v3605
        %v3608 = vmul.u32 %v3603, %v3606
        %v3609 = vmul.u32 %v3604, %v3605
        %v3610 = vmul.u32 %v3604, %v3606
        %v3611 = vshll.u32 %v3608, 16
        %v3612 = vshrl.u32 %v3608, 16
        %v3613 = vshll.u32 %v3609, 16
        %v3614 = vshrl.u32 %v3609, 16
        %vm3615 = vc.u32 %v3607, %v3611
        %v3616 = vsel %vm3615, 1, 0
        %v3617 = vadd.s32 %v3607, %v3611
        %v3618 = vadd.s32 %v3610, %v3616
        %vm3619 = vc.u32 %v3617, %v3613
        %v3620 = vsel %vm3619, 1, 0
        %v3621 = vadd.s32 %v3617, %v3613
        %v3622 = vadd.s32 %v3618, %v3620
        %v3623 = vadd.s32 %v3622, %v3612
        %v3624 = vadd.s32 %v3623, %v3614
        %v3625 = vand.u32 %v3602, 65535
        %v3626 = vshrl.u32 %v3602, 16
        %v3627 = vand.u32 %v3597, 65535
        %v3628 = vshrl.u32 %v3597, 16
        %v3629 = vmul.u32 %v3625, %v3627
        %v3630 = vmul.u32 %v3625, %v3628
        %v3631 = vmul.u32 %v3626, %v3627
        %v3632 = vmul.u32 %v3626, %v3628
        %v3633 = vshll.u32 %v3630, 16
        %v3634 = vshrl.u32 %v3630, 16
        %v3635 = vshll.u32 %v3631, 16
        %v3636 = vshrl.u32 %v3631, 16
        %vm3637 = vc.u32 %v3629, %v3633
        %v3638 = vsel %vm3637, 1, 0
        %v3639 = vadd.s32 %v3629, %v3633
        %v3640 = vadd.s32 %v3632, %v3638
        %vm3641 = vc.u32 %v3639, %v3635
        %v3642 = vsel %vm3641, 1, 0
        %v3643 = vadd.s32 %v3639, %v3635
        %v3644 = vadd.s32 %v3640, %v3642
        %v3645 = vadd.s32 %v3644, %v3634
        %v3646 = vadd.s32 %v3645, %v3636
        %v3647 = vmul.u32 %v3602, %v3593
        %v3648 = vadd.s32 %v3624, %v3643
        %vm3649 = vc.u32 %v3624, %v3643
        %v3650 = vadd.s32 %v3646, 1
        %v3651 = vsel %vm3649, %v3650, %v3646
        %v3652 = vadd.s32 %v3647, %v3651
        %v3653 = vadd.s32 %v3652, 536870912
        %v3654 = vshrl.u32 %v3653, 30
        %v3655 = vshll.u32 %v3654, 30
        %v3656 = vsub.s32 %v3652, %v3655
        %vm3657 = vcmp.lt.s32.totalorder %v3656, 0
        %v3658 = vsub.s32 0, %v3656
        %v3659 = vsel %vm3657, %v3658, %v3656
        %v3660 = vclz %v3659
        %v3661 = vsub.s32 %v3660, 2
        %vm3662 = vcmp.gt.s32.totalorder 0, %v3661
        %v3663 = vsel %vm3662, 0, %v3661
        %v3664 = vsub.s32 32, %v3663
        %v3665 = vshll.u32 %v3656, %v3663
        %v3666 = vshrl.u32 %v3648, %v3664
        %v3667 = vor.u32 %v3665, %v3666
        %v3668 = vsub.s32 4294967266, %v3663
        %v3669 = vadd.s32 %v3668, 127
        %v3670 = vshll.u32 %v3669, 23
        %v3671 = vor.u32 4788187, %v3670
        %v3672 = vand.u32 2147483647, %v3671
        %v3674 = vcvt.s32.f32 %v3667
        %v3675 = vmul.f32 %v3674, %v3672
        %v3676 = vxor.u32 %v3675, 2147483648
        %v3677 = vsel %vm3556, %v3676, %v3675
        %v3678 = vsub.s32 4, %v3654
        %v3679 = vsel %vm3556, %v3678, %v3654
        %v3680 = vsel %vm3555, %v265, %v3677
        %v3681 = vsel %vm3555, 0, %v3679
        %v3682 = vmul.f32 %v3680, %v3680
        %v3683 = vmul.f32 %v3682, -0.001358992
        %v3684 = vadd.f32 %v3683, 0.041655596
        %v3685 = vmul.f32 %v3682, %v3684
        %v3686 = vadd.f32 %v3685, -0.4999988
        %v3687 = vmul.f32 %v3682, %v3686
        %v3688 = vadd.f32 1.0, %v3687
        %v3689 = vmul.f32 %v3680, %v3680
        %v3690 = vmul.f32 %v3689, -0.00019511016
        %v3691 = vadd.f32 %v3690, 0.008332121
        %v3692 = vmul.f32 %v3689, %v3691
        %v3693 = vadd.f32 %v3692, -0.16666654
        %v3694 = vmul.f32 %v3689, %v3693
        %v3695 = vadd.f32 %v3694, 1.0
        %v3696 = vmul.f32 %v3695, %v3680
        %vm3697 = vweird.f32 %v265
        %v3698 = vand.u32 %v3681, 3
        %vm3699 = vcmp.lt.s32.totalorder %v3698, 2
        %vm3700 = vcmp.eq.s32.totalorder %v3698, 0
        %v3701 = vxor.u32 %v3696, 2147483648
        %v3702 = vsel %vm3700, %v3688, %v3701
        %vm3703 = vcmp.eq.s32.totalorder %v3698, 2
        %v3704 = vxor.u32 %v3688, 2147483648
        %v3705 = vsel %vm3703, %v3704, %v3696
        %v3706 = vsel %vm3699, %v3702, %v3705
        %v3707 = vsel %vm3697, nan, %v3706
        %v3708 = vand.u32 2147483647, %v266
        %vm3709 = vcmp.le.f32.partialorder %v3708, 0.7853982
        %vm3710 = vcmp.lt.s32.totalorder %v266, 0
        %v3711 = vand.u32 %v266, 2139095040
        %v3712 = vshrl.u32 %v3711, 23
        %v3713 = vsub.s32 %v3712, 127
        %v3714 = vand.u32 2147483647, %v266
        %v3715 = vand.u32 %v3714, 8388607
        %v3716 = vor.u32 %v3715, 8388608
        %v3717 = vsub.s32 0, %v3716
        %v3718 = vadd.s32 %v3713, 1
        %vm3719 = vcmp.gt.s32.totalorder %v3718, 0
        %v3720 = vsel %vm3719, %v3718, 0
        %v3721 = vshrl.u32 %v3720, 5
        %v3722 = vand.u32 %v3720, 31
        %v3723 = vsub.s32 32, %v3722
        %v3724 = vshrl.u32 683565275, %v3723
        %v3725 = vshll.u32 683565275, %v3722
        %v3726 = vshrl.u32 2475754826, %v3723
        %v3727 = vor.u32 %v3725, %v3726
        %v3728 = vshll.u32 2475754826, %v3722
        %v3729 = vshrl.u32 2131351028, %v3723
        %v3730 = vor.u32 %v3728, %v3729
        %v3731 = vshll.u32 2131351028, %v3722
        %v3732 = vshrl.u32 2102212464, %v3723
        %v3733 = vor.u32 %v3731, %v3732
        %v3734 = vshll.u32 2102212464, %v3722
        %v3735 = vshrl.u32 920167782, %v3723
        %v3736 = vor.u32 %v3734, %v3735
        %v3737 = vshll.u32 920167782, %v3722
        %v3738 = vshrl.u32 1326507024, %v3723
        %v3739 = vor.u32 %v3737, %v3738
        %vm3740 = vcmp.lt.s32.totalorder %v3721, 1
        %vm3741 = vcmp.lt.s32.totalorder %v3721, 2
        %vm3742 = vcmp.lt.s32.totalorder %v3721, 3
        %vm3743 = vcmp.lt.s32.totalorder %v3721, 4
        %v3744 = vsel %vm3740, %v3724, %v3727
        %v3745 = vsel %vm3743, %v3733, 2102212464
        %v3746 = vsel %vm3742, %v3730, %v3745
        %v3747 = vsel %vm3741, %v3744, %v3746
        %v3748 = vsel %vm3740, %v3727, %v3730
        %v3749 = vsel %vm3743, %v3736, 920167782
        %v3750 = vsel %vm3742, %v3733, %v3749
        %v3751 = vsel %vm3741, %v3748, %v3750
        %v3752 = vsel %vm3740, %v3730, %v3733
        %v3753 = vsel %vm3743, %v3739, 1326507024
        %v3754 = vsel %vm3742, %v3736, %v3753
        %v3755 = vsel %vm3741, %v3752, %v3754
        %v3756 = vshll.u32 %v3716, 8
        %v3757 = vand.u32 %v3756, 65535
        %v3758 = vshrl.u32 %v3756, 16
        %v3759 = vand.u32 %v3755, 65535
        %v3760 = vshrl.u32 %v3755, 16
        %v3761 = vmul.u32 %v3757, %v3759
        %v3762 = vmul.u32 %v3757, %v3760
        %v3763 = vmul.u32 %v3758, %v3759
        %v3764 = vmul.u32 %v3758, %v3760
        %v3765 = vshll.u32 %v3762, 16
        %v3766 = vshrl.u32 %v3762, 16
        %v3767 = vshll.u32 %v3763, 16
        %v3768 = vshrl.u32 %v3763, 16
        %vm3769 = vc.u32 %v3761, %v3765
        %v3770 = vsel %vm3769, 1, 0
        %v3771 = vadd.s32 %v3761, %v3765
        %v3772 = vadd.s32 %v3764, %v3770
        %vm3773 = vc.u32 %v3771, %v3767
        %v3774 = vsel %vm3773, 1, 0
        %v3775 = vadd.s32 %v3771, %v3767
        %v3776 = vadd.s32 %v3772, %v3774
        %v3777 = vadd.s32 %v3776, %v3766
        %v3778 = vadd.s32 %v3777, %v3768
        %v3779 = vand.u32 %v3756, 65535
        %v3780 = vshrl.u32 %v3756, 16
        %v3781 = vand.u32 %v3751, 65535
        %v3782 = vshrl.u32 %v3751, 16
        %v3783 = vmul.u32 %v3779, %v3781
        %v3784 = vmul.u32 %v3779, %v3782
        %v3785 = vmul.u32 %v3780, %v3781
        %v3786 = vmul.u32 %v3780, %v3782
        %v3787 = vshll.u32 %v3784, 16
        %v3788 = vshrl.u32 %v3784, 16
        %v3789 = vshll.u32 %v3785, 16
        %v3790 = vshrl.u32 %v3785, 16
        %vm3791 = vc.u32 %v3783, %v3787
        %v3792 = vsel %vm3791, 1, 0
        %v3793 = vadd.s32 %v3783, %v3787
        %v3794 = vadd.s32 %v3786, %v3792
        %vm3795 = vc.u32 %v3793, %v3789
        %v3796 = vsel %vm3795, 1, 0
        %v3797 = vadd.s32 %v3793, %v3789
        %v3798 = vadd.s32 %v3794, %v3796
        %v3799 = vadd.s32 %v3798, %v3788
        %v3800 = vadd.s32 %v3799, %v3790
        %v3801 = vmul.u32 %v3756, %v3747
        %v3802 = vadd.s32 %v3778, %v3797
        %vm3803 = vc.u32 %v3778, %v3797
        %v3804 = vadd.s32 %v3800, 1
        %v3805 = vsel %vm3803, %v3804, %v3800
        %v3806 = vadd.s32 %v3801, %v3805
        %v3807 = vadd.s32 %v3806, 536870912
        %v3808 = vshrl.u32 %v3807, 30
        %v3809 = vshll.u32 %v3808, 30
        %v3810 = vsub.s32 %v3806, %v3809
        %vm3811 = vcmp.lt.s32.totalorder %v3810, 0
        %v3812 = vsub.s32 0, %v3810
        %v3813 = vsel %vm3811, %v3812, %v3810
        %v3814 = vclz %v3813
        %v3815 = vsub.s32 %v3814, 2
        %vm3816 = vcmp.gt.s32.totalorder 0, %v3815
        %v3817 = vsel %vm3816, 0, %v3815
        %v3818 = vsub.s32 32, %v3817
        %v3819 = vshll.u32 %v3810, %v3817
        %v3820 = vshrl.u32 %v3802, %v3818
        %v3821 = vor.u32 %v3819, %v3820
        %v3822 = vsub.s32 4294967266, %v3817
        %v3823 = vadd.s32 %v3822, 127
        %v3824 = vshll.u32 %v3823, 23
        %v3825 = vor.u32 4788187, %v3824
        %v3826 = vand.u32 2147483647, %v3825
        %v3828 = vcvt.s32.f32 %v3821
        %v3829 = vmul.f32 %v3828, %v3826
        %v3830 = vxor.u32 %v3829, 2147483648
        %v3831 = vsel %vm3710, %v3830, %v3829
        %v3832 = vsub.s32 4, %v3808
        %v3833 = vsel %vm3710, %v3832, %v3808
        %v3834 = vsel %vm3709, %v266, %v3831
        %v3835 = vsel %vm3709, 0, %v3833
        %v3836 = vmul.f32 %v3834, %v3834
        %v3837 = vmul.f32 %v3836, -0.001358992
        %v3838 = vadd.f32 %v3837, 0.041655596
        %v3839 = vmul.f32 %v3836, %v3838
        %v3840 = vadd.f32 %v3839, -0.4999988
        %v3841 = vmul.f32 %v3836, %v3840
        %v3842 = vadd.f32 1.0, %v3841
        %v3843 = vmul.f32 %v3834, %v3834
        %v3844 = vmul.f32 %v3843, -0.00019511016
        %v3845 = vadd.f32 %v3844, 0.008332121
        %v3846 = vmul.f32 %v3843, %v3845
        %v3847 = vadd.f32 %v3846, -0.16666654
        %v3848 = vmul.f32 %v3843, %v3847
        %v3849 = vadd.f32 %v3848, 1.0
        %v3850 = vmul.f32 %v3849, %v3834
        %vm3851 = vweird.f32 %v266
        %v3852 = vand.u32 %v3835, 3
        %vm3853 = vcmp.lt.s32.totalorder %v3852, 2
        %vm3854 = vcmp.eq.s32.totalorder %v3852, 0
        %v3855 = vxor.u32 %v3850, 2147483648
        %v3856 = vsel %vm3854, %v3842, %v3855
        %vm3857 = vcmp.eq.s32.totalorder %v3852, 2
        %v3858 = vxor.u32 %v3842, 2147483648
        %v3859 = vsel %vm3857, %v3858, %v3850
        %v3860 = vsel %vm3853, %v3856, %v3859
        %v3861 = vsel %vm3851, nan, %v3860
        %v3862 = vand.u32 2147483647, %v267
        %vm3863 = vcmp.le.f32.partialorder %v3862, 0.7853982
        %vm3864 = vcmp.lt.s32.totalorder %v267, 0
        %v3865 = vand.u32 %v267, 2139095040
        %v3866 = vshrl.u32 %v3865, 23
        %v3867 = vsub.s32 %v3866, 127
        %v3868 = vand.u32 2147483647, %v267
        %v3869 = vand.u32 %v3868, 8388607
        %v3870 = vor.u32 %v3869, 8388608
        %v3871 = vsub.s32 0, %v3870
        %v3872 = vadd.s32 %v3867, 1
        %vm3873 = vcmp.gt.s32.totalorder %v3872, 0
        %v3874 = vsel %vm3873, %v3872, 0
        %v3875 = vshrl.u32 %v3874, 5
        %v3876 = vand.u32 %v3874, 31
        %v3877 = vsub.s32 32, %v3876
        %v3878 = vshrl.u32 683565275, %v3877
        %v3879 = vshll.u32 683565275, %v3876
        %v3880 = vshrl.u32 2475754826, %v3877
        %v3881 = vor.u32 %v3879, %v3880
        %v3882 = vshll.u32 2475754826, %v3876
        %v3883 = vshrl.u32 2131351028, %v3877
        %v3884 = vor.u32 %v3882, %v3883
        %v3885 = vshll.u32 2131351028, %v3876
        %v3886 = vshrl.u32 2102212464, %v3877
        %v3887 = vor.u32 %v3885, %v3886
        %v3888 = vshll.u32 2102212464, %v3876
        %v3889 = vshrl.u32 920167782, %v3877
        %v3890 = vor.u32 %v3888, %v3889
        %v3891 = vshll.u32 920167782, %v3876
        %v3892 = vshrl.u32 1326507024, %v3877
        %v3893 = vor.u32 %v3891, %v3892
        %vm3894 = vcmp.lt.s32.totalorder %v3875, 1
        %vm3895 = vcmp.lt.s32.totalorder %v3875, 2
        %vm3896 = vcmp.lt.s32.totalorder %v3875, 3
        %vm3897 = vcmp.lt.s32.totalorder %v3875, 4
        %v3898 = vsel %vm3894, %v3878, %v3881
        %v3899 = vsel %vm3897, %v3887, 2102212464
        %v3900 = vsel %vm3896, %v3884, %v3899
        %v3901 = vsel %vm3895, %v3898, %v3900
        %v3902 = vsel %vm3894, %v3881, %v3884
        %v3903 = vsel %vm3897, %v3890, 920167782
        %v3904 = vsel %vm3896, %v3887, %v3903
        %v3905 = vsel %vm3895, %v3902, %v3904
        %v3906 = vsel %vm3894, %v3884, %v3887
        %v3907 = vsel %vm3897, %v3893, 1326507024
        %v3908 = vsel %vm3896, %v3890, %v3907
        %v3909 = vsel %vm3895, %v3906, %v3908
        %v3910 = vshll.u32 %v3870, 8
        %v3911 = vand.u32 %v3910, 65535
        %v3912 = vshrl.u32 %v3910, 16
        %v3913 = vand.u32 %v3909, 65535
        %v3914 = vshrl.u32 %v3909, 16
        %v3915 = vmul.u32 %v3911, %v3913
        %v3916 = vmul.u32 %v3911, %v3914
        %v3917 = vmul.u32 %v3912, %v3913
        %v3918 = vmul.u32 %v3912, %v3914
        %v3919 = vshll.u32 %v3916, 16
        %v3920 = vshrl.u32 %v3916, 16
        %v3921 = vshll.u32 %v3917, 16
        %v3922 = vshrl.u32 %v3917, 16
        %vm3923 = vc.u32 %v3915, %v3919
        %v3924 = vsel %vm3923, 1, 0
        %v3925 = vadd.s32 %v3915, %v3919
        %v3926 = vadd.s32 %v3918, %v3924
        %vm3927 = vc.u32 %v3925, %v3921
        %v3928 = vsel %vm3927, 1, 0
        %v3929 = vadd.s32 %v3925, %v3921
        %v3930 = vadd.s32 %v3926, %v3928
        %v3931 = vadd.s32 %v3930, %v3920
        %v3932 = vadd.s32 %v3931, %v3922
        %v3933 = vand.u32 %v3910, 65535
        %v3934 = vshrl.u32 %v3910, 16
        %v3935 = vand.u32 %v3905, 65535
        %v3936 = vshrl.u32 %v3905, 16
        %v3937 = vmul.u32 %v3933, %v3935
        %v3938 = vmul.u32 %v3933, %v3936
        %v3939 = vmul.u32 %v3934, %v3935
        %v3940 = vmul.u32 %v3934, %v3936
        %v3941 = vshll.u32 %v3938, 16
        %v3942 = vshrl.u32 %v3938, 16
        %v3943 = vshll.u32 %v3939, 16
        %v3944 = vshrl.u32 %v3939, 16
        %vm3945 = vc.u32 %v3937, %v3941
        %v3946 = vsel %vm3945, 1, 0
        %v3947 = vadd.s32 %v3937, %v3941
        %v3948 = vadd.s32 %v3940, %v3946
        %vm3949 = vc.u32 %v3947, %v3943
        %v3950 = vsel %vm3949, 1, 0
        %v3951 = vadd.s32 %v3947, %v3943
        %v3952 = vadd.s32 %v3948, %v3950
        %v3953 = vadd.s32 %v3952, %v3942
        %v3954 = vadd.s32 %v3953, %v3944
        %v3955 = vmul.u32 %v3910, %v3901
        %v3956 = vadd.s32 %v3932, %v3951
        %vm3957 = vc.u32 %v3932, %v3951
        %v3958 = vadd.s32 %v3954, 1
        %v3959 = vsel %vm3957, %v3958, %v3954
        %v3960 = vadd.s32 %v3955, %v3959
        %v3961 = vadd.s32 %v3960, 536870912
        %v3962 = vshrl.u32 %v3961, 30
        %v3963 = vshll.u32 %v3962, 30
        %v3964 = vsub.s32 %v3960, %v3963
        %vm3965 = vcmp.lt.s32.totalorder %v3964, 0
        %v3966 = vsub.s32 0, %v3964
        %v3967 = vsel %vm3965, %v3966, %v3964
        %v3968 = vclz %v3967
        %v3969 = vsub.s32 %v3968, 2
        %vm3970 = vcmp.gt.s32.totalorder 0, %v3969
        %v3971 = vsel %vm3970, 0, %v3969
        %v3972 = vsub.s32 32, %v3971
        %v3973 = vshll.u32 %v3964, %v3971
        %v3974 = vshrl.u32 %v3956, %v3972
        %v3975 = vor.u32 %v3973, %v3974
        %v3976 = vsub.s32 4294967266, %v3971
        %v3977 = vadd.s32 %v3976, 127
        %v3978 = vshll.u32 %v3977, 23
        %v3979 = vor.u32 4788187, %v3978
        %v3980 = vand.u32 2147483647, %v3979
        %v3982 = vcvt.s32.f32 %v3975
        %v3983 = vmul.f32 %v3982, %v3980
        %v3984 = vxor.u32 %v3983, 2147483648
        %v3985 = vsel %vm3864, %v3984, %v3983
        %v3986 = vsub.s32 4, %v3962
        %v3987 = vsel %vm3864, %v3986, %v3962
        %v3988 = vsel %vm3863, %v267, %v3985
        %v3989 = vsel %vm3863, 0, %v3987
        %v3990 = vmul.f32 %v3988, %v3988
        %v3991 = vmul.f32 %v3990, -0.001358992
        %v3992 = vadd.f32 %v3991, 0.041655596
        %v3993 = vmul.f32 %v3990, %v3992
        %v3994 = vadd.f32 %v3993, -0.4999988
        %v3995 = vmul.f32 %v3990, %v3994
        %v3996 = vadd.f32 1.0, %v3995
        %v3997 = vmul.f32 %v3988, %v3988
        %v3998 = vmul.f32 %v3997, -0.00019511016
        %v3999 = vadd.f32 %v3998, 0.008332121
        %v4000 = vmul.f32 %v3997, %v3999
        %v4001 = vadd.f32 %v4000, -0.16666654
        %v4002 = vmul.f32 %v3997, %v4001
        %v4003 = vadd.f32 %v4002, 1.0
        %v4004 = vmul.f32 %v4003, %v3988
        %vm4005 = vweird.f32 %v267
        %v4006 = vand.u32 %v3989, 3
        %vm4007 = vcmp.lt.s32.totalorder %v4006, 2
        %vm4008 = vcmp.eq.s32.totalorder %v4006, 0
        %v4009 = vxor.u32 %v4004, 2147483648
        %v4010 = vsel %vm4008, %v3996, %v4009
        %vm4011 = vcmp.eq.s32.totalorder %v4006, 2
        %v4012 = vxor.u32 %v3996, 2147483648
        %v4013 = vsel %vm4011, %v4012, %v4004
        %v4014 = vsel %vm4007, %v4010, %v4013
        %v4015 = vsel %vm4005, nan, %v4014
        %v4016 = vand.u32 2147483647, %v268
        %vm4017 = vcmp.le.f32.partialorder %v4016, 0.7853982
        %vm4018 = vcmp.lt.s32.totalorder %v268, 0
        %v4019 = vand.u32 %v268, 2139095040
        %v4020 = vshrl.u32 %v4019, 23
        %v4021 = vsub.s32 %v4020, 127
        %v4022 = vand.u32 2147483647, %v268
        %v4023 = vand.u32 %v4022, 8388607
        %v4024 = vor.u32 %v4023, 8388608
        %v4025 = vsub.s32 0, %v4024
        %v4026 = vadd.s32 %v4021, 1
        %vm4027 = vcmp.gt.s32.totalorder %v4026, 0
        %v4028 = vsel %vm4027, %v4026, 0
        %v4029 = vshrl.u32 %v4028, 5
        %v4030 = vand.u32 %v4028, 31
        %v4031 = vsub.s32 32, %v4030
        %v4032 = vshrl.u32 683565275, %v4031
        %v4033 = vshll.u32 683565275, %v4030
        %v4034 = vshrl.u32 2475754826, %v4031
        %v4035 = vor.u32 %v4033, %v4034
        %v4036 = vshll.u32 2475754826, %v4030
        %v4037 = vshrl.u32 2131351028, %v4031
        %v4038 = vor.u32 %v4036, %v4037
        %v4039 = vshll.u32 2131351028, %v4030
        %v4040 = vshrl.u32 2102212464, %v4031
        %v4041 = vor.u32 %v4039, %v4040
        %v4042 = vshll.u32 2102212464, %v4030
        %v4043 = vshrl.u32 920167782, %v4031
        %v4044 = vor.u32 %v4042, %v4043
        %v4045 = vshll.u32 920167782, %v4030
        %v4046 = vshrl.u32 1326507024, %v4031
        %v4047 = vor.u32 %v4045, %v4046
        %vm4048 = vcmp.lt.s32.totalorder %v4029, 1
        %vm4049 = vcmp.lt.s32.totalorder %v4029, 2
        %vm4050 = vcmp.lt.s32.totalorder %v4029, 3
        %vm4051 = vcmp.lt.s32.totalorder %v4029, 4
        %v4052 = vsel %vm4048, %v4032, %v4035
        %v4053 = vsel %vm4051, %v4041, 2102212464
        %v4054 = vsel %vm4050, %v4038, %v4053
        %v4055 = vsel %vm4049, %v4052, %v4054
        %v4056 = vsel %vm4048, %v4035, %v4038
        %v4057 = vsel %vm4051, %v4044, 920167782
        %v4058 = vsel %vm4050, %v4041, %v4057
        %v4059 = vsel %vm4049, %v4056, %v4058
        %v4060 = vsel %vm4048, %v4038, %v4041
        %v4061 = vsel %vm4051, %v4047, 1326507024
        %v4062 = vsel %vm4050, %v4044, %v4061
        %v4063 = vsel %vm4049, %v4060, %v4062
        %v4064 = vshll.u32 %v4024, 8
        %v4065 = vand.u32 %v4064, 65535
        %v4066 = vshrl.u32 %v4064, 16
        %v4067 = vand.u32 %v4063, 65535
        %v4068 = vshrl.u32 %v4063, 16
        %v4069 = vmul.u32 %v4065, %v4067
        %v4070 = vmul.u32 %v4065, %v4068
        %v4071 = vmul.u32 %v4066, %v4067
        %v4072 = vmul.u32 %v4066, %v4068
        %v4073 = vshll.u32 %v4070, 16
        %v4074 = vshrl.u32 %v4070, 16
        %v4075 = vshll.u32 %v4071, 16
        %v4076 = vshrl.u32 %v4071, 16
        %vm4077 = vc.u32 %v4069, %v4073
        %v4078 = vsel %vm4077, 1, 0
        %v4079 = vadd.s32 %v4069, %v4073
        %v4080 = vadd.s32 %v4072, %v4078
        %vm4081 = vc.u32 %v4079, %v4075
        %v4082 = vsel %vm4081, 1, 0
        %v4083 = vadd.s32 %v4079, %v4075
        %v4084 = vadd.s32 %v4080, %v4082
        %v4085 = vadd.s32 %v4084, %v4074
        %v4086 = vadd.s32 %v4085, %v4076
        %v4087 = vand.u32 %v4064, 65535
        %v4088 = vshrl.u32 %v4064, 16
        %v4089 = vand.u32 %v4059, 65535
        %v4090 = vshrl.u32 %v4059, 16
        %v4091 = vmul.u32 %v4087, %v4089
        %v4092 = vmul.u32 %v4087, %v4090
        %v4093 = vmul.u32 %v4088, %v4089
        %v4094 = vmul.u32 %v4088, %v4090
        %v4095 = vshll.u32 %v4092, 16
        %v4096 = vshrl.u32 %v4092, 16
        %v4097 = vshll.u32 %v4093, 16
        %v4098 = vshrl.u32 %v4093, 16
        %vm4099 = vc.u32 %v4091, %v4095
        %v4100 = vsel %vm4099, 1, 0
        %v4101 = vadd.s32 %v4091, %v4095
        %v4102 = vadd.s32 %v4094, %v4100
        %vm4103 = vc.u32 %v4101, %v4097
        %v4104 = vsel %vm4103, 1, 0
        %v4105 = vadd.s32 %v4101, %v4097
        %v4106 = vadd.s32 %v4102, %v4104
        %v4107 = vadd.s32 %v4106, %v4096
        %v4108 = vadd.s32 %v4107, %v4098
        %v4109 = vmul.u32 %v4064, %v4055
        %v4110 = vadd.s32 %v4086, %v4105
        %vm4111 = vc.u32 %v4086, %v4105
        %v4112 = vadd.s32 %v4108, 1
        %v4113 = vsel %vm4111, %v4112, %v4108
        %v4114 = vadd.s32 %v4109, %v4113
        %v4115 = vadd.s32 %v4114, 536870912
        %v4116 = vshrl.u32 %v4115, 30
        %v4117 = vshll.u32 %v4116, 30
        %v4118 = vsub.s32 %v4114, %v4117
        %vm4119 = vcmp.lt.s32.totalorder %v4118, 0
        %v4120 = vsub.s32 0, %v4118
        %v4121 = vsel %vm4119, %v4120, %v4118
        %v4122 = vclz %v4121
        %v4123 = vsub.s32 %v4122, 2
        %vm4124 = vcmp.gt.s32.totalorder 0, %v4123
        %v4125 = vsel %vm4124, 0, %v4123
        %v4126 = vsub.s32 32, %v4125
        %v4127 = vshll.u32 %v4118, %v4125
        %v4128 = vshrl.u32 %v4110, %v4126
        %v4129 = vor.u32 %v4127, %v4128
        %v4130 = vsub.s32 4294967266, %v4125
        %v4131 = vadd.s32 %v4130, 127
        %v4132 = vshll.u32 %v4131, 23
        %v4133 = vor.u32 4788187, %v4132
        %v4134 = vand.u32 2147483647, %v4133
        %v4136 = vcvt.s32.f32 %v4129
        %v4137 = vmul.f32 %v4136, %v4134
        %v4138 = vxor.u32 %v4137, 2147483648
        %v4139 = vsel %vm4018, %v4138, %v4137
        %v4140 = vsub.s32 4, %v4116
        %v4141 = vsel %vm4018, %v4140, %v4116
        %v4142 = vsel %vm4017, %v268, %v4139
        %v4143 = vsel %vm4017, 0, %v4141
        %v4144 = vmul.f32 %v4142, %v4142
        %v4145 = vmul.f32 %v4144, -0.001358992
        %v4146 = vadd.f32 %v4145, 0.041655596
        %v4147 = vmul.f32 %v4144, %v4146
        %v4148 = vadd.f32 %v4147, -0.4999988
        %v4149 = vmul.f32 %v4144, %v4148
        %v4150 = vadd.f32 1.0, %v4149
        %v4151 = vmul.f32 %v4142, %v4142
        %v4152 = vmul.f32 %v4151, -0.00019511016
        %v4153 = vadd.f32 %v4152, 0.008332121
        %v4154 = vmul.f32 %v4151, %v4153
        %v4155 = vadd.f32 %v4154, -0.16666654
        %v4156 = vmul.f32 %v4151, %v4155
        %v4157 = vadd.f32 %v4156, 1.0
        %v4158 = vmul.f32 %v4157, %v4142
        %vm4159 = vweird.f32 %v268
        %v4160 = vand.u32 %v4143, 3
        %vm4161 = vcmp.lt.s32.totalorder %v4160, 2
        %vm4162 = vcmp.eq.s32.totalorder %v4160, 0
        %v4163 = vxor.u32 %v4158, 2147483648
        %v4164 = vsel %vm4162, %v4150, %v4163
        %vm4165 = vcmp.eq.s32.totalorder %v4160, 2
        %v4166 = vxor.u32 %v4150, 2147483648
        %v4167 = vsel %vm4165, %v4166, %v4158
        %v4168 = vsel %vm4161, %v4164, %v4167
        %v4169 = vsel %vm4159, nan, %v4168
        %v4170 = vand.u32 2147483647, %v269
        %vm4171 = vcmp.le.f32.partialorder %v4170, 0.7853982
        %vm4172 = vcmp.lt.s32.totalorder %v269, 0
        %v4173 = vand.u32 %v269, 2139095040
        %v4174 = vshrl.u32 %v4173, 23
        %v4175 = vsub.s32 %v4174, 127
        %v4176 = vand.u32 2147483647, %v269
        %v4177 = vand.u32 %v4176, 8388607
        %v4178 = vor.u32 %v4177, 8388608
        %v4179 = vsub.s32 0, %v4178
        %v4180 = vadd.s32 %v4175, 1
        %vm4181 = vcmp.gt.s32.totalorder %v4180, 0
        %v4182 = vsel %vm4181, %v4180, 0
        %v4183 = vshrl.u32 %v4182, 5
        %v4184 = vand.u32 %v4182, 31
        %v4185 = vsub.s32 32, %v4184
        %v4186 = vshrl.u32 683565275, %v4185
        %v4187 = vshll.u32 683565275, %v4184
        %v4188 = vshrl.u32 2475754826, %v4185
        %v4189 = vor.u32 %v4187, %v4188
        %v4190 = vshll.u32 2475754826, %v4184
        %v4191 = vshrl.u32 2131351028, %v4185
        %v4192 = vor.u32 %v4190, %v4191
        %v4193 = vshll.u32 2131351028, %v4184
        %v4194 = vshrl.u32 2102212464, %v4185
        %v4195 = vor.u32 %v4193, %v4194
        %v4196 = vshll.u32 2102212464, %v4184
        %v4197 = vshrl.u32 920167782, %v4185
        %v4198 = vor.u32 %v4196, %v4197
        %v4199 = vshll.u32 920167782, %v4184
        %v4200 = vshrl.u32 1326507024, %v4185
        %v4201 = vor.u32 %v4199, %v4200
        %vm4202 = vcmp.lt.s32.totalorder %v4183, 1
        %vm4203 = vcmp.lt.s32.totalorder %v4183, 2
        %vm4204 = vcmp.lt.s32.totalorder %v4183, 3
        %vm4205 = vcmp.lt.s32.totalorder %v4183, 4
        %v4206 = vsel %vm4202, %v4186, %v4189
        %v4207 = vsel %vm4205, %v4195, 2102212464
        %v4208 = vsel %vm4204, %v4192, %v4207
        %v4209 = vsel %vm4203, %v4206, %v4208
        %v4210 = vsel %vm4202, %v4189, %v4192
        %v4211 = vsel %vm4205, %v4198, 920167782
        %v4212 = vsel %vm4204, %v4195, %v4211
        %v4213 = vsel %vm4203, %v4210, %v4212
        %v4214 = vsel %vm4202, %v4192, %v4195
        %v4215 = vsel %vm4205, %v4201, 1326507024
        %v4216 = vsel %vm4204, %v4198, %v4215
        %v4217 = vsel %vm4203, %v4214, %v4216
        %v4218 = vshll.u32 %v4178, 8
        %v4219 = vand.u32 %v4218, 65535
        %v4220 = vshrl.u32 %v4218, 16
        %v4221 = vand.u32 %v4217, 65535
        %v4222 = vshrl.u32 %v4217, 16
        %v4223 = vmul.u32 %v4219, %v4221
        %v4224 = vmul.u32 %v4219, %v4222
        %v4225 = vmul.u32 %v4220, %v4221
        %v4226 = vmul.u32 %v4220, %v4222
        %v4227 = vshll.u32 %v4224, 16
        %v4228 = vshrl.u32 %v4224, 16
        %v4229 = vshll.u32 %v4225, 16
        %v4230 = vshrl.u32 %v4225, 16
        %vm4231 = vc.u32 %v4223, %v4227
        %v4232 = vsel %vm4231, 1, 0
        %v4233 = vadd.s32 %v4223, %v4227
        %v4234 = vadd.s32 %v4226, %v4232
        %vm4235 = vc.u32 %v4233, %v4229
        %v4236 = vsel %vm4235, 1, 0
        %v4237 = vadd.s32 %v4233, %v4229
        %v4238 = vadd.s32 %v4234, %v4236
        %v4239 = vadd.s32 %v4238, %v4228
        %v4240 = vadd.s32 %v4239, %v4230
        %v4241 = vand.u32 %v4218, 65535
        %v4242 = vshrl.u32 %v4218, 16
        %v4243 = vand.u32 %v4213, 65535
        %v4244 = vshrl.u32 %v4213, 16
        %v4245 = vmul.u32 %v4241, %v4243
        %v4246 = vmul.u32 %v4241, %v4244
        %v4247 = vmul.u32 %v4242, %v4243
        %v4248 = vmul.u32 %v4242, %v4244
        %v4249 = vshll.u32 %v4246, 16
        %v4250 = vshrl.u32 %v4246, 16
        %v4251 = vshll.u32 %v4247, 16
        %v4252 = vshrl.u32 %v4247, 16
        %vm4253 = vc.u32 %v4245, %v4249
        %v4254 = vsel %vm4253, 1, 0
        %v4255 = vadd.s32 %v4245, %v4249
        %v4256 = vadd.s32 %v4248, %v4254
        %vm4257 = vc.u32 %v4255, %v4251
        %v4258 = vsel %vm4257, 1, 0
        %v4259 = vadd.s32 %v4255, %v4251
        %v4260 = vadd.s32 %v4256, %v4258
        %v4261 = vadd.s32 %v4260, %v4250
        %v4262 = vadd.s32 %v4261, %v4252
        %v4263 = vmul.u32 %v4218, %v4209
        %v4264 = vadd.s32 %v4240, %v4259
        %vm4265 = vc.u32 %v4240, %v4259
        %v4266 = vadd.s32 %v4262, 1
        %v4267 = vsel %vm4265, %v4266, %v4262
        %v4268 = vadd.s32 %v4263, %v4267
        %v4269 = vadd.s32 %v4268, 536870912
        %v4270 = vshrl.u32 %v4269, 30
        %v4271 = vshll.u32 %v4270, 30
        %v4272 = vsub.s32 %v4268, %v4271
        %vm4273 = vcmp.lt.s32.totalorder %v4272, 0
        %v4274 = vsub.s32 0, %v4272
        %v4275 = vsel %vm4273, %v4274, %v4272
        %v4276 = vclz %v4275
        %v4277 = vsub.s32 %v4276, 2
        %vm4278 = vcmp.gt.s32.totalorder 0, %v4277
        %v4279 = vsel %vm4278, 0, %v4277
        %v4280 = vsub.s32 32, %v4279
        %v4281 = vshll.u32 %v4272, %v4279
        %v4282 = vshrl.u32 %v4264, %v4280
        %v4283 = vor.u32 %v4281, %v4282
        %v4284 = vsub.s32 4294967266, %v4279
        %v4285 = vadd.s32 %v4284, 127
        %v4286 = vshll.u32 %v4285, 23
        %v4287 = vor.u32 4788187, %v4286
        %v4288 = vand.u32 2147483647, %v4287
        %v4290 = vcvt.s32.f32 %v4283
        %v4291 = vmul.f32 %v4290, %v4288
        %v4292 = vxor.u32 %v4291, 2147483648
        %v4293 = vsel %vm4172, %v4292, %v4291
        %v4294 = vsub.s32 4, %v4270
        %v4295 = vsel %vm4172, %v4294, %v4270
        %v4296 = vsel %vm4171, %v269, %v4293
        %v4297 = vsel %vm4171, 0, %v4295
        %v4298 = vmul.f32 %v4296, %v4296
        %v4299 = vmul.f32 %v4298, -0.001358992
        %v4300 = vadd.f32 %v4299, 0.041655596
        %v4301 = vmul.f32 %v4298, %v4300
        %v4302 = vadd.f32 %v4301, -0.4999988
        %v4303 = vmul.f32 %v4298, %v4302
        %v4304 = vadd.f32 1.0, %v4303
        %v4305 = vmul.f32 %v4296, %v4296
        %v4306 = vmul.f32 %v4305, -0.00019511016
        %v4307 = vadd.f32 %v4306, 0.008332121
        %v4308 = vmul.f32 %v4305, %v4307
        %v4309 = vadd.f32 %v4308, -0.16666654
        %v4310 = vmul.f32 %v4305, %v4309
        %v4311 = vadd.f32 %v4310, 1.0
        %v4312 = vmul.f32 %v4311, %v4296
        %vm4313 = vweird.f32 %v269
        %v4314 = vand.u32 %v4297, 3
        %vm4315 = vcmp.lt.s32.totalorder %v4314, 2
        %vm4316 = vcmp.eq.s32.totalorder %v4314, 0
        %v4317 = vxor.u32 %v4312, 2147483648
        %v4318 = vsel %vm4316, %v4304, %v4317
        %vm4319 = vcmp.eq.s32.totalorder %v4314, 2
        %v4320 = vxor.u32 %v4304, 2147483648
        %v4321 = vsel %vm4319, %v4320, %v4312
        %v4322 = vsel %vm4315, %v4318, %v4321
        %v4323 = vsel %vm4313, nan, %v4322
        %v4324 = vand.u32 2147483647, %v270
        %vm4325 = vcmp.le.f32.partialorder %v4324, 0.7853982
        %vm4326 = vcmp.lt.s32.totalorder %v270, 0
        %v4327 = vand.u32 %v270, 2139095040
        %v4328 = vshrl.u32 %v4327, 23
        %v4329 = vsub.s32 %v4328, 127
        %v4330 = vand.u32 2147483647, %v270
        %v4331 = vand.u32 %v4330, 8388607
        %v4332 = vor.u32 %v4331, 8388608
        %v4333 = vsub.s32 0, %v4332
        %v4334 = vadd.s32 %v4329, 1
        %vm4335 = vcmp.gt.s32.totalorder %v4334, 0
        %v4336 = vsel %vm4335, %v4334, 0
        %v4337 = vshrl.u32 %v4336, 5
        %v4338 = vand.u32 %v4336, 31
        %v4339 = vsub.s32 32, %v4338
        %v4340 = vshrl.u32 683565275, %v4339
        %v4341 = vshll.u32 683565275, %v4338
        %v4342 = vshrl.u32 2475754826, %v4339
        %v4343 = vor.u32 %v4341, %v4342
        %v4344 = vshll.u32 2475754826, %v4338
        %v4345 = vshrl.u32 2131351028, %v4339
        %v4346 = vor.u32 %v4344, %v4345
        %v4347 = vshll.u32 2131351028, %v4338
        %v4348 = vshrl.u32 2102212464, %v4339
        %v4349 = vor.u32 %v4347, %v4348
        %v4350 = vshll.u32 2102212464, %v4338
        %v4351 = vshrl.u32 920167782, %v4339
        %v4352 = vor.u32 %v4350, %v4351
        %v4353 = vshll.u32 920167782, %v4338
        %v4354 = vshrl.u32 1326507024, %v4339
        %v4355 = vor.u32 %v4353, %v4354
        %vm4356 = vcmp.lt.s32.totalorder %v4337, 1
        %vm4357 = vcmp.lt.s32.totalorder %v4337, 2
        %vm4358 = vcmp.lt.s32.totalorder %v4337, 3
        %vm4359 = vcmp.lt.s32.totalorder %v4337, 4
        %v4360 = vsel %vm4356, %v4340, %v4343
        %v4361 = vsel %vm4359, %v4349, 2102212464
        %v4362 = vsel %vm4358, %v4346, %v4361
        %v4363 = vsel %vm4357, %v4360, %v4362
        %v4364 = vsel %vm4356, %v4343, %v4346
        %v4365 = vsel %vm4359, %v4352, 920167782
        %v4366 = vsel %vm4358, %v4349, %v4365
        %v4367 = vsel %vm4357, %v4364, %v4366
        %v4368 = vsel %vm4356, %v4346, %v4349
        %v4369 = vsel %vm4359, %v4355, 1326507024
        %v4370 = vsel %vm4358, %v4352, %v4369
        %v4371 = vsel %vm4357, %v4368, %v4370
        %v4372 = vshll.u32 %v4332, 8
        %v4373 = vand.u32 %v4372, 65535
        %v4374 = vshrl.u32 %v4372, 16
        %v4375 = vand.u32 %v4371, 65535
        %v4376 = vshrl.u32 %v4371, 16
        %v4377 = vmul.u32 %v4373, %v4375
        %v4378 = vmul.u32 %v4373, %v4376
        %v4379 = vmul.u32 %v4374, %v4375
        %v4380 = vmul.u32 %v4374, %v4376
        %v4381 = vshll.u32 %v4378, 16
        %v4382 = vshrl.u32 %v4378, 16
        %v4383 = vshll.u32 %v4379, 16
        %v4384 = vshrl.u32 %v4379, 16
        %vm4385 = vc.u32 %v4377, %v4381
        %v4386 = vsel %vm4385, 1, 0
        %v4387 = vadd.s32 %v4377, %v4381
        %v4388 = vadd.s32 %v4380, %v4386
        %vm4389 = vc.u32 %v4387, %v4383
        %v4390 = vsel %vm4389, 1, 0
        %v4391 = vadd.s32 %v4387, %v4383
        %v4392 = vadd.s32 %v4388, %v4390
        %v4393 = vadd.s32 %v4392, %v4382
        %v4394 = vadd.s32 %v4393, %v4384
        %v4395 = vand.u32 %v4372, 65535
        %v4396 = vshrl.u32 %v4372, 16
        %v4397 = vand.u32 %v4367, 65535
        %v4398 = vshrl.u32 %v4367, 16
        %v4399 = vmul.u32 %v4395, %v4397
        %v4400 = vmul.u32 %v4395, %v4398
        %v4401 = vmul.u32 %v4396, %v4397
        %v4402 = vmul.u32 %v4396, %v4398
        %v4403 = vshll.u32 %v4400, 16
        %v4404 = vshrl.u32 %v4400, 16
        %v4405 = vshll.u32 %v4401, 16
        %v4406 = vshrl.u32 %v4401, 16
        %vm4407 = vc.u32 %v4399, %v4403
        %v4408 = vsel %vm4407, 1, 0
        %v4409 = vadd.s32 %v4399, %v4403
        %v4410 = vadd.s32 %v4402, %v4408
        %vm4411 = vc.u32 %v4409, %v4405
        %v4412 = vsel %vm4411, 1, 0
        %v4413 = vadd.s32 %v4409, %v4405
        %v4414 = vadd.s32 %v4410, %v4412
        %v4415 = vadd.s32 %v4414, %v4404
        %v4416 = vadd.s32 %v4415, %v4406
        %v4417 = vmul.u32 %v4372, %v4363
        %v4418 = vadd.s32 %v4394, %v4413
        %vm4419 = vc.u32 %v4394, %v4413
        %v4420 = vadd.s32 %v4416, 1
        %v4421 = vsel %vm4419, %v4420, %v4416
        %v4422 = vadd.s32 %v4417, %v4421
        %v4423 = vadd.s32 %v4422, 536870912
        %v4424 = vshrl.u32 %v4423, 30
        %v4425 = vshll.u32 %v4424, 30
        %v4426 = vsub.s32 %v4422, %v4425
        %vm4427 = vcmp.lt.s32.totalorder %v4426, 0
        %v4428 = vsub.s32 0, %v4426
        %v4429 = vsel %vm4427, %v4428, %v4426
        %v4430 = vclz %v4429
        %v4431 = vsub.s32 %v4430, 2
        %vm4432 = vcmp.gt.s32.totalorder 0, %v4431
        %v4433 = vsel %vm4432, 0, %v4431
        %v4434 = vsub.s32 32, %v4433
        %v4435 = vshll.u32 %v4426, %v4433
        %v4436 = vshrl.u32 %v4418, %v4434
        %v4437 = vor.u32 %v4435, %v4436
        %v4438 = vsub.s32 4294967266, %v4433
        %v4439 = vadd.s32 %v4438, 127
        %v4440 = vshll.u32 %v4439, 23
        %v4441 = vor.u32 4788187, %v4440
        %v4442 = vand.u32 2147483647, %v4441
        %v4444 = vcvt.s32.f32 %v4437
        %v4445 = vmul.f32 %v4444, %v4442
        %v4446 = vxor.u32 %v4445, 2147483648
        %v4447 = vsel %vm4326, %v4446, %v4445
        %v4448 = vsub.s32 4, %v4424
        %v4449 = vsel %vm4326, %v4448, %v4424
        %v4450 = vsel %vm4325, %v270, %v4447
        %v4451 = vsel %vm4325, 0, %v4449
        %v4452 = vmul.f32 %v4450, %v4450
        %v4453 = vmul.f32 %v4452, -0.001358992
        %v4454 = vadd.f32 %v4453, 0.041655596
        %v4455 = vmul.f32 %v4452, %v4454
        %v4456 = vadd.f32 %v4455, -0.4999988
        %v4457 = vmul.f32 %v4452, %v4456
        %v4458 = vadd.f32 1.0, %v4457
        %v4459 = vmul.f32 %v4450, %v4450
        %v4460 = vmul.f32 %v4459, -0.00019511016
        %v4461 = vadd.f32 %v4460, 0.008332121
        %v4462 = vmul.f32 %v4459, %v4461
        %v4463 = vadd.f32 %v4462, -0.16666654
        %v4464 = vmul.f32 %v4459, %v4463
        %v4465 = vadd.f32 %v4464, 1.0
        %v4466 = vmul.f32 %v4465, %v4450
        %vm4467 = vweird.f32 %v270
        %v4468 = vand.u32 %v4451, 3
        %vm4469 = vcmp.lt.s32.totalorder %v4468, 2
        %vm4470 = vcmp.eq.s32.totalorder %v4468, 0
        %v4471 = vxor.u32 %v4466, 2147483648
        %v4472 = vsel %vm4470, %v4458, %v4471
        %vm4473 = vcmp.eq.s32.totalorder %v4468, 2
        %v4474 = vxor.u32 %v4458, 2147483648
        %v4475 = vsel %vm4473, %v4474, %v4466
        %v4476 = vsel %vm4469, %v4472, %v4475
        %v4477 = vsel %vm4467, nan, %v4476
        %v4478 = vand.u32 2147483647, %v271
        %vm4479 = vcmp.le.f32.partialorder %v4478, 0.7853982
        %vm4480 = vcmp.lt.s32.totalorder %v271, 0
        %v4481 = vand.u32 %v271, 2139095040
        %v4482 = vshrl.u32 %v4481, 23
        %v4483 = vsub.s32 %v4482, 127
        %v4484 = vand.u32 2147483647, %v271
        %v4485 = vand.u32 %v4484, 8388607
        %v4486 = vor.u32 %v4485, 8388608
        %v4487 = vsub.s32 0, %v4486
        %v4488 = vadd.s32 %v4483, 1
        %vm4489 = vcmp.gt.s32.totalorder %v4488, 0
        %v4490 = vsel %vm4489, %v4488, 0
        %v4491 = vshrl.u32 %v4490, 5
        %v4492 = vand.u32 %v4490, 31
        %v4493 = vsub.s32 32, %v4492
        %v4494 = vshrl.u32 683565275, %v4493
        %v4495 = vshll.u32 683565275, %v4492
        %v4496 = vshrl.u32 2475754826, %v4493
        %v4497 = vor.u32 %v4495, %v4496
        %v4498 = vshll.u32 2475754826, %v4492
        %v4499 = vshrl.u32 2131351028, %v4493
        %v4500 = vor.u32 %v4498, %v4499
        %v4501 = vshll.u32 2131351028, %v4492
        %v4502 = vshrl.u32 2102212464, %v4493
        %v4503 = vor.u32 %v4501, %v4502
        %v4504 = vshll.u32 2102212464, %v4492
        %v4505 = vshrl.u32 920167782, %v4493
        %v4506 = vor.u32 %v4504, %v4505
        %v4507 = vshll.u32 920167782, %v4492
        %v4508 = vshrl.u32 1326507024, %v4493
        %v4509 = vor.u32 %v4507, %v4508
        %vm4510 = vcmp.lt.s32.totalorder %v4491, 1
        %vm4511 = vcmp.lt.s32.totalorder %v4491, 2
        %vm4512 = vcmp.lt.s32.totalorder %v4491, 3
        %vm4513 = vcmp.lt.s32.totalorder %v4491, 4
        %v4514 = vsel %vm4510, %v4494, %v4497
        %v4515 = vsel %vm4513, %v4503, 2102212464
        %v4516 = vsel %vm4512, %v4500, %v4515
        %v4517 = vsel %vm4511, %v4514, %v4516
        %v4518 = vsel %vm4510, %v4497, %v4500
        %v4519 = vsel %vm4513, %v4506, 920167782
        %v4520 = vsel %vm4512, %v4503, %v4519
        %v4521 = vsel %vm4511, %v4518, %v4520
        %v4522 = vsel %vm4510, %v4500, %v4503
        %v4523 = vsel %vm4513, %v4509, 1326507024
        %v4524 = vsel %vm4512, %v4506, %v4523
        %v4525 = vsel %vm4511, %v4522, %v4524
        %v4526 = vshll.u32 %v4486, 8
        %v4527 = vand.u32 %v4526, 65535
        %v4528 = vshrl.u32 %v4526, 16
        %v4529 = vand.u32 %v4525, 65535
        %v4530 = vshrl.u32 %v4525, 16
        %v4531 = vmul.u32 %v4527, %v4529
        %v4532 = vmul.u32 %v4527, %v4530
        %v4533 = vmul.u32 %v4528, %v4529
        %v4534 = vmul.u32 %v4528, %v4530
        %v4535 = vshll.u32 %v4532, 16
        %v4536 = vshrl.u32 %v4532, 16
        %v4537 = vshll.u32 %v4533, 16
        %v4538 = vshrl.u32 %v4533, 16
        %vm4539 = vc.u32 %v4531, %v4535
        %v4540 = vsel %vm4539, 1, 0
        %v4541 = vadd.s32 %v4531, %v4535
        %v4542 = vadd.s32 %v4534, %v4540
        %vm4543 = vc.u32 %v4541, %v4537
        %v4544 = vsel %vm4543, 1, 0
        %v4545 = vadd.s32 %v4541, %v4537
        %v4546 = vadd.s32 %v4542, %v4544
        %v4547 = vadd.s32 %v4546, %v4536
        %v4548 = vadd.s32 %v4547, %v4538
        %v4549 = vand.u32 %v4526, 65535
        %v4550 = vshrl.u32 %v4526, 16
        %v4551 = vand.u32 %v4521, 65535
        %v4552 = vshrl.u32 %v4521, 16
        %v4553 = vmul.u32 %v4549, %v4551
        %v4554 = vmul.u32 %v4549, %v4552
        %v4555 = vmul.u32 %v4550, %v4551
        %v4556 = vmul.u32 %v4550, %v4552
        %v4557 = vshll.u32 %v4554, 16
        %v4558 = vshrl.u32 %v4554, 16
        %v4559 = vshll.u32 %v4555, 16
        %v4560 = vshrl.u32 %v4555, 16
        %vm4561 = vc.u32 %v4553, %v4557
        %v4562 = vsel %vm4561, 1, 0
        %v4563 = vadd.s32 %v4553, %v4557
        %v4564 = vadd.s32 %v4556, %v4562
        %vm4565 = vc.u32 %v4563, %v4559
        %v4566 = vsel %vm4565, 1, 0
        %v4567 = vadd.s32 %v4563, %v4559
        %v4568 = vadd.s32 %v4564, %v4566
        %v4569 = vadd.s32 %v4568, %v4558
        %v4570 = vadd.s32 %v4569, %v4560
        %v4571 = vmul.u32 %v4526, %v4517
        %v4572 = vadd.s32 %v4548, %v4567
        %vm4573 = vc.u32 %v4548, %v4567
        %v4574 = vadd.s32 %v4570, 1
        %v4575 = vsel %vm4573, %v4574, %v4570
        %v4576 = vadd.s32 %v4571, %v4575
        %v4577 = vadd.s32 %v4576, 536870912
        %v4578 = vshrl.u32 %v4577, 30
        %v4579 = vshll.u32 %v4578, 30
        %v4580 = vsub.s32 %v4576, %v4579
        %vm4581 = vcmp.lt.s32.totalorder %v4580, 0
        %v4582 = vsub.s32 0, %v4580
        %v4583 = vsel %vm4581, %v4582, %v4580
        %v4584 = vclz %v4583
        %v4585 = vsub.s32 %v4584, 2
        %vm4586 = vcmp.gt.s32.totalorder 0, %v4585
        %v4587 = vsel %vm4586, 0, %v4585
        %v4588 = vsub.s32 32, %v4587
        %v4589 = vshll.u32 %v4580, %v4587
        %v4590 = vshrl.u32 %v4572, %v4588
        %v4591 = vor.u32 %v4589, %v4590
        %v4592 = vsub.s32 4294967266, %v4587
        %v4593 = vadd.s32 %v4592, 127
        %v4594 = vshll.u32 %v4593, 23
        %v4595 = vor.u32 4788187, %v4594
        %v4596 = vand.u32 2147483647, %v4595
        %v4598 = vcvt.s32.f32 %v4591
        %v4599 = vmul.f32 %v4598, %v4596
        %v4600 = vxor.u32 %v4599, 2147483648
        %v4601 = vsel %vm4480, %v4600, %v4599
        %v4602 = vsub.s32 4, %v4578
        %v4603 = vsel %vm4480, %v4602, %v4578
        %v4604 = vsel %vm4479, %v271, %v4601
        %v4605 = vsel %vm4479, 0, %v4603
        %v4606 = vmul.f32 %v4604, %v4604
        %v4607 = vmul.f32 %v4606, -0.001358992
        %v4608 = vadd.f32 %v4607, 0.041655596
        %v4609 = vmul.f32 %v4606, %v4608
        %v4610 = vadd.f32 %v4609, -0.4999988
        %v4611 = vmul.f32 %v4606, %v4610
        %v4612 = vadd.f32 1.0, %v4611
        %v4613 = vmul.f32 %v4604, %v4604
        %v4614 = vmul.f32 %v4613, -0.00019511016
        %v4615 = vadd.f32 %v4614, 0.008332121
        %v4616 = vmul.f32 %v4613, %v4615
        %v4617 = vadd.f32 %v4616, -0.16666654
        %v4618 = vmul.f32 %v4613, %v4617
        %v4619 = vadd.f32 %v4618, 1.0
        %v4620 = vmul.f32 %v4619, %v4604
        %vm4621 = vweird.f32 %v271
        %v4622 = vand.u32 %v4605, 3
        %vm4623 = vcmp.lt.s32.totalorder %v4622, 2
        %vm4624 = vcmp.eq.s32.totalorder %v4622, 0
        %v4625 = vxor.u32 %v4620, 2147483648
        %v4626 = vsel %vm4624, %v4612, %v4625
        %vm4627 = vcmp.eq.s32.totalorder %v4622, 2
        %v4628 = vxor.u32 %v4612, 2147483648
        %v4629 = vsel %vm4627, %v4628, %v4620
        %v4630 = vsel %vm4623, %v4626, %v4629
        %v4631 = vsel %vm4621, nan, %v4630
        %v4632 = vand.u32 2147483647, %v272
        %vm4633 = vcmp.le.f32.partialorder %v4632, 0.7853982
        %vm4634 = vcmp.lt.s32.totalorder %v272, 0
        %v4635 = vand.u32 %v272, 2139095040
        %v4636 = vshrl.u32 %v4635, 23
        %v4637 = vsub.s32 %v4636, 127
        %v4638 = vand.u32 2147483647, %v272
        %v4639 = vand.u32 %v4638, 8388607
        %v4640 = vor.u32 %v4639, 8388608
        %v4641 = vsub.s32 0, %v4640
        %v4642 = vadd.s32 %v4637, 1
        %vm4643 = vcmp.gt.s32.totalorder %v4642, 0
        %v4644 = vsel %vm4643, %v4642, 0
        %v4645 = vshrl.u32 %v4644, 5
        %v4646 = vand.u32 %v4644, 31
        %v4647 = vsub.s32 32, %v4646
        %v4648 = vshrl.u32 683565275, %v4647
        %v4649 = vshll.u32 683565275, %v4646
        %v4650 = vshrl.u32 2475754826, %v4647
        %v4651 = vor.u32 %v4649, %v4650
        %v4652 = vshll.u32 2475754826, %v4646
        %v4653 = vshrl.u32 2131351028, %v4647
        %v4654 = vor.u32 %v4652, %v4653
        %v4655 = vshll.u32 2131351028, %v4646
        %v4656 = vshrl.u32 2102212464, %v4647
        %v4657 = vor.u32 %v4655, %v4656
        %v4658 = vshll.u32 2102212464, %v4646
        %v4659 = vshrl.u32 920167782, %v4647
        %v4660 = vor.u32 %v4658, %v4659
        %v4661 = vshll.u32 920167782, %v4646
        %v4662 = vshrl.u32 1326507024, %v4647
        %v4663 = vor.u32 %v4661, %v4662
        %vm4664 = vcmp.lt.s32.totalorder %v4645, 1
        %vm4665 = vcmp.lt.s32.totalorder %v4645, 2
        %vm4666 = vcmp.lt.s32.totalorder %v4645, 3
        %vm4667 = vcmp.lt.s32.totalorder %v4645, 4
        %v4668 = vsel %vm4664, %v4648, %v4651
        %v4669 = vsel %vm4667, %v4657, 2102212464
        %v4670 = vsel %vm4666, %v4654, %v4669
        %v4671 = vsel %vm4665, %v4668, %v4670
        %v4672 = vsel %vm4664, %v4651, %v4654
        %v4673 = vsel %vm4667, %v4660, 920167782
        %v4674 = vsel %vm4666, %v4657, %v4673
        %v4675 = vsel %vm4665, %v4672, %v4674
        %v4676 = vsel %vm4664, %v4654, %v4657
        %v4677 = vsel %vm4667, %v4663, 1326507024
        %v4678 = vsel %vm4666, %v4660, %v4677
        %v4679 = vsel %vm4665, %v4676, %v4678
        %v4680 = vshll.u32 %v4640, 8
        %v4681 = vand.u32 %v4680, 65535
        %v4682 = vshrl.u32 %v4680, 16
        %v4683 = vand.u32 %v4679, 65535
        %v4684 = vshrl.u32 %v4679, 16
        %v4685 = vmul.u32 %v4681, %v4683
        %v4686 = vmul.u32 %v4681, %v4684
        %v4687 = vmul.u32 %v4682, %v4683
        %v4688 = vmul.u32 %v4682, %v4684
        %v4689 = vshll.u32 %v4686, 16
        %v4690 = vshrl.u32 %v4686, 16
        %v4691 = vshll.u32 %v4687, 16
        %v4692 = vshrl.u32 %v4687, 16
        %vm4693 = vc.u32 %v4685, %v4689
        %v4694 = vsel %vm4693, 1, 0
        %v4695 = vadd.s32 %v4685, %v4689
        %v4696 = vadd.s32 %v4688, %v4694
        %vm4697 = vc.u32 %v4695, %v4691
        %v4698 = vsel %vm4697, 1, 0
        %v4699 = vadd.s32 %v4695, %v4691
        %v4700 = vadd.s32 %v4696, %v4698
        %v4701 = vadd.s32 %v4700, %v4690
        %v4702 = vadd.s32 %v4701, %v4692
        %v4703 = vand.u32 %v4680, 65535
        %v4704 = vshrl.u32 %v4680, 16
        %v4705 = vand.u32 %v4675, 65535
        %v4706 = vshrl.u32 %v4675, 16
        %v4707 = vmul.u32 %v4703, %v4705
        %v4708 = vmul.u32 %v4703, %v4706
        %v4709 = vmul.u32 %v4704, %v4705
        %v4710 = vmul.u32 %v4704, %v4706
        %v4711 = vshll.u32 %v4708, 16
        %v4712 = vshrl.u32 %v4708, 16
        %v4713 = vshll.u32 %v4709, 16
        %v4714 = vshrl.u32 %v4709, 16
        %vm4715 = vc.u32 %v4707, %v4711
        %v4716 = vsel %vm4715, 1, 0
        %v4717 = vadd.s32 %v4707, %v4711
        %v4718 = vadd.s32 %v4710, %v4716
        %vm4719 = vc.u32 %v4717, %v4713
        %v4720 = vsel %vm4719, 1, 0
        %v4721 = vadd.s32 %v4717, %v4713
        %v4722 = vadd.s32 %v4718, %v4720
        %v4723 = vadd.s32 %v4722, %v4712
        %v4724 = vadd.s32 %v4723, %v4714
        %v4725 = vmul.u32 %v4680, %v4671
        %v4726 = vadd.s32 %v4702, %v4721
        %vm4727 = vc.u32 %v4702, %v4721
        %v4728 = vadd.s32 %v4724, 1
        %v4729 = vsel %vm4727, %v4728, %v4724
        %v4730 = vadd.s32 %v4725, %v4729
        %v4731 = vadd.s32 %v4730, 536870912
        %v4732 = vshrl.u32 %v4731, 30
        %v4733 = vshll.u32 %v4732, 30
        %v4734 = vsub.s32 %v4730, %v4733
        %vm4735 = vcmp.lt.s32.totalorder %v4734, 0
        %v4736 = vsub.s32 0, %v4734
        %v4737 = vsel %vm4735, %v4736, %v4734
        %v4738 = vclz %v4737
        %v4739 = vsub.s32 %v4738, 2
        %vm4740 = vcmp.gt.s32.totalorder 0, %v4739
        %v4741 = vsel %vm4740, 0, %v4739
        %v4742 = vsub.s32 32, %v4741
        %v4743 = vshll.u32 %v4734, %v4741
        %v4744 = vshrl.u32 %v4726, %v4742
        %v4745 = vor.u32 %v4743, %v4744
        %v4746 = vsub.s32 4294967266, %v4741
        %v4747 = vadd.s32 %v4746, 127
        %v4748 = vshll.u32 %v4747, 23
        %v4749 = vor.u32 4788187, %v4748
        %v4750 = vand.u32 2147483647, %v4749
        %v4752 = vcvt.s32.f32 %v4745
        %v4753 = vmul.f32 %v4752, %v4750
        %v4754 = vxor.u32 %v4753, 2147483648
        %v4755 = vsel %vm4634, %v4754, %v4753
        %v4756 = vsub.s32 4, %v4732
        %v4757 = vsel %vm4634, %v4756, %v4732
        %v4758 = vsel %vm4633, %v272, %v4755
        %v4759 = vsel %vm4633, 0, %v4757
        %v4760 = vmul.f32 %v4758, %v4758
        %v4761 = vmul.f32 %v4760, -0.001358992
        %v4762 = vadd.f32 %v4761, 0.041655596
        %v4763 = vmul.f32 %v4760, %v4762
        %v4764 = vadd.f32 %v4763, -0.4999988
        %v4765 = vmul.f32 %v4760, %v4764
        %v4766 = vadd.f32 1.0, %v4765
        %v4767 = vmul.f32 %v4758, %v4758
        %v4768 = vmul.f32 %v4767, -0.00019511016
        %v4769 = vadd.f32 %v4768, 0.008332121
        %v4770 = vmul.f32 %v4767, %v4769
        %v4771 = vadd.f32 %v4770, -0.16666654
        %v4772 = vmul.f32 %v4767, %v4771
        %v4773 = vadd.f32 %v4772, 1.0
        %v4774 = vmul.f32 %v4773, %v4758
        %vm4775 = vweird.f32 %v272
        %v4776 = vand.u32 %v4759, 3
        %vm4777 = vcmp.lt.s32.totalorder %v4776, 2
        %vm4778 = vcmp.eq.s32.totalorder %v4776, 0
        %v4779 = vxor.u32 %v4774, 2147483648
        %v4780 = vsel %vm4778, %v4766, %v4779
        %vm4781 = vcmp.eq.s32.totalorder %v4776, 2
        %v4782 = vxor.u32 %v4766, 2147483648
        %v4783 = vsel %vm4781, %v4782, %v4774
        %v4784 = vsel %vm4777, %v4780, %v4783
        %v4785 = vsel %vm4775, nan, %v4784
        %v4786 = vand.u32 2147483647, %v273
        %vm4787 = vcmp.le.f32.partialorder %v4786, 0.7853982
        %vm4788 = vcmp.lt.s32.totalorder %v273, 0
        %v4789 = vand.u32 %v273, 2139095040
        %v4790 = vshrl.u32 %v4789, 23
        %v4791 = vsub.s32 %v4790, 127
        %v4792 = vand.u32 2147483647, %v273
        %v4793 = vand.u32 %v4792, 8388607
        %v4794 = vor.u32 %v4793, 8388608
        %v4795 = vsub.s32 0, %v4794
        %v4796 = vadd.s32 %v4791, 1
        %vm4797 = vcmp.gt.s32.totalorder %v4796, 0
        %v4798 = vsel %vm4797, %v4796, 0
        %v4799 = vshrl.u32 %v4798, 5
        %v4800 = vand.u32 %v4798, 31
        %v4801 = vsub.s32 32, %v4800
        %v4802 = vshrl.u32 683565275, %v4801
        %v4803 = vshll.u32 683565275, %v4800
        %v4804 = vshrl.u32 2475754826, %v4801
        %v4805 = vor.u32 %v4803, %v4804
        %v4806 = vshll.u32 2475754826, %v4800
        %v4807 = vshrl.u32 2131351028, %v4801
        %v4808 = vor.u32 %v4806, %v4807
        %v4809 = vshll.u32 2131351028, %v4800
        %v4810 = vshrl.u32 2102212464, %v4801
        %v4811 = vor.u32 %v4809, %v4810
        %v4812 = vshll.u32 2102212464, %v4800
        %v4813 = vshrl.u32 920167782, %v4801
        %v4814 = vor.u32 %v4812, %v4813
        %v4815 = vshll.u32 920167782, %v4800
        %v4816 = vshrl.u32 1326507024, %v4801
        %v4817 = vor.u32 %v4815, %v4816
        %vm4818 = vcmp.lt.s32.totalorder %v4799, 1
        %vm4819 = vcmp.lt.s32.totalorder %v4799, 2
        %vm4820 = vcmp.lt.s32.totalorder %v4799, 3
        %vm4821 = vcmp.lt.s32.totalorder %v4799, 4
        %v4822 = vsel %vm4818, %v4802, %v4805
        %v4823 = vsel %vm4821, %v4811, 2102212464
        %v4824 = vsel %vm4820, %v4808, %v4823
        %v4825 = vsel %vm4819, %v4822, %v4824
        %v4826 = vsel %vm4818, %v4805, %v4808
        %v4827 = vsel %vm4821, %v4814, 920167782
        %v4828 = vsel %vm4820, %v4811, %v4827
        %v4829 = vsel %vm4819, %v4826, %v4828
        %v4830 = vsel %vm4818, %v4808, %v4811
        %v4831 = vsel %vm4821, %v4817, 1326507024
        %v4832 = vsel %vm4820, %v4814, %v4831
        %v4833 = vsel %vm4819, %v4830, %v4832
        %v4834 = vshll.u32 %v4794, 8
        %v4835 = vand.u32 %v4834, 65535
        %v4836 = vshrl.u32 %v4834, 16
        %v4837 = vand.u32 %v4833, 65535
        %v4838 = vshrl.u32 %v4833, 16
        %v4839 = vmul.u32 %v4835, %v4837
        %v4840 = vmul.u32 %v4835, %v4838
        %v4841 = vmul.u32 %v4836, %v4837
        %v4842 = vmul.u32 %v4836, %v4838
        %v4843 = vshll.u32 %v4840, 16
        %v4844 = vshrl.u32 %v4840, 16
        %v4845 = vshll.u32 %v4841, 16
        %v4846 = vshrl.u32 %v4841, 16
        %vm4847 = vc.u32 %v4839, %v4843
        %v4848 = vsel %vm4847, 1, 0
        %v4849 = vadd.s32 %v4839, %v4843
        %v4850 = vadd.s32 %v4842, %v4848
        %vm4851 = vc.u32 %v4849, %v4845
        %v4852 = vsel %vm4851, 1, 0
        %v4853 = vadd.s32 %v4849, %v4845
        %v4854 = vadd.s32 %v4850, %v4852
        %v4855 = vadd.s32 %v4854, %v4844
        %v4856 = vadd.s32 %v4855, %v4846
        %v4857 = vand.u32 %v4834, 65535
        %v4858 = vshrl.u32 %v4834, 16
        %v4859 = vand.u32 %v4829, 65535
        %v4860 = vshrl.u32 %v4829, 16
        %v4861 = vmul.u32 %v4857, %v4859
        %v4862 = vmul.u32 %v4857, %v4860
        %v4863 = vmul.u32 %v4858, %v4859
        %v4864 = vmul.u32 %v4858, %v4860
        %v4865 = vshll.u32 %v4862, 16
        %v4866 = vshrl.u32 %v4862, 16
        %v4867 = vshll.u32 %v4863, 16
        %v4868 = vshrl.u32 %v4863, 16
        %vm4869 = vc.u32 %v4861, %v4865
        %v4870 = vsel %vm4869, 1, 0
        %v4871 = vadd.s32 %v4861, %v4865
        %v4872 = vadd.s32 %v4864, %v4870
        %vm4873 = vc.u32 %v4871, %v4867
        %v4874 = vsel %vm4873, 1, 0
        %v4875 = vadd.s32 %v4871, %v4867
        %v4876 = vadd.s32 %v4872, %v4874
        %v4877 = vadd.s32 %v4876, %v4866
        %v4878 = vadd.s32 %v4877, %v4868
        %v4879 = vmul.u32 %v4834, %v4825
        %v4880 = vadd.s32 %v4856, %v4875
        %vm4881 = vc.u32 %v4856, %v4875
        %v4882 = vadd.s32 %v4878, 1
        %v4883 = vsel %vm4881, %v4882, %v4878
        %v4884 = vadd.s32 %v4879, %v4883
        %v4885 = vadd.s32 %v4884, 536870912
        %v4886 = vshrl.u32 %v4885, 30
        %v4887 = vshll.u32 %v4886, 30
        %v4888 = vsub.s32 %v4884, %v4887
        %vm4889 = vcmp.lt.s32.totalorder %v4888, 0
        %v4890 = vsub.s32 0, %v4888
        %v4891 = vsel %vm4889, %v4890, %v4888
        %v4892 = vclz %v4891
        %v4893 = vsub.s32 %v4892, 2
        %vm4894 = vcmp.gt.s32.totalorder 0, %v4893
        %v4895 = vsel %vm4894, 0, %v4893
        %v4896 = vsub.s32 32, %v4895
        %v4897 = vshll.u32 %v4888, %v4895
        %v4898 = vshrl.u32 %v4880, %v4896
        %v4899 = vor.u32 %v4897, %v4898
        %v4900 = vsub.s32 4294967266, %v4895
        %v4901 = vadd.s32 %v4900, 127
        %v4902 = vshll.u32 %v4901, 23
        %v4903 = vor.u32 4788187, %v4902
        %v4904 = vand.u32 2147483647, %v4903
        %v4906 = vcvt.s32.f32 %v4899
        %v4907 = vmul.f32 %v4906, %v4904
        %v4908 = vxor.u32 %v4907, 2147483648
        %v4909 = vsel %vm4788, %v4908, %v4907
        %v4910 = vsub.s32 4, %v4886
        %v4911 = vsel %vm4788, %v4910, %v4886
        %v4912 = vsel %vm4787, %v273, %v4909
        %v4913 = vsel %vm4787, 0, %v4911
        %v4914 = vmul.f32 %v4912, %v4912
        %v4915 = vmul.f32 %v4914, -0.001358992
        %v4916 = vadd.f32 %v4915, 0.041655596
        %v4917 = vmul.f32 %v4914, %v4916
        %v4918 = vadd.f32 %v4917, -0.4999988
        %v4919 = vmul.f32 %v4914, %v4918
        %v4920 = vadd.f32 1.0, %v4919
        %v4921 = vmul.f32 %v4912, %v4912
        %v4922 = vmul.f32 %v4921, -0.00019511016
        %v4923 = vadd.f32 %v4922, 0.008332121
        %v4924 = vmul.f32 %v4921, %v4923
        %v4925 = vadd.f32 %v4924, -0.16666654
        %v4926 = vmul.f32 %v4921, %v4925
        %v4927 = vadd.f32 %v4926, 1.0
        %v4928 = vmul.f32 %v4927, %v4912
        %vm4929 = vweird.f32 %v273
        %v4930 = vand.u32 %v4913, 3
        %vm4931 = vcmp.lt.s32.totalorder %v4930, 2
        %vm4932 = vcmp.eq.s32.totalorder %v4930, 0
        %v4933 = vxor.u32 %v4928, 2147483648
        %v4934 = vsel %vm4932, %v4920, %v4933
        %vm4935 = vcmp.eq.s32.totalorder %v4930, 2
        %v4936 = vxor.u32 %v4920, 2147483648
        %v4937 = vsel %vm4935, %v4936, %v4928
        %v4938 = vsel %vm4931, %v4934, %v4937
        %v4939 = vsel %vm4929, nan, %v4938
        %v4940 = vand.u32 2147483647, %v274
        %vm4941 = vcmp.le.f32.partialorder %v4940, 0.7853982
        %vm4942 = vcmp.lt.s32.totalorder %v274, 0
        %v4943 = vand.u32 %v274, 2139095040
        %v4944 = vshrl.u32 %v4943, 23
        %v4945 = vsub.s32 %v4944, 127
        %v4946 = vand.u32 2147483647, %v274
        %v4947 = vand.u32 %v4946, 8388607
        %v4948 = vor.u32 %v4947, 8388608
        %v4949 = vsub.s32 0, %v4948
        %v4950 = vadd.s32 %v4945, 1
        %vm4951 = vcmp.gt.s32.totalorder %v4950, 0
        %v4952 = vsel %vm4951, %v4950, 0
        %v4953 = vshrl.u32 %v4952, 5
        %v4954 = vand.u32 %v4952, 31
        %v4955 = vsub.s32 32, %v4954
        %v4956 = vshrl.u32 683565275, %v4955
        %v4957 = vshll.u32 683565275, %v4954
        %v4958 = vshrl.u32 2475754826, %v4955
        %v4959 = vor.u32 %v4957, %v4958
        %v4960 = vshll.u32 2475754826, %v4954
        %v4961 = vshrl.u32 2131351028, %v4955
        %v4962 = vor.u32 %v4960, %v4961
        %v4963 = vshll.u32 2131351028, %v4954
        %v4964 = vshrl.u32 2102212464, %v4955
        %v4965 = vor.u32 %v4963, %v4964
        %v4966 = vshll.u32 2102212464, %v4954
        %v4967 = vshrl.u32 920167782, %v4955
        %v4968 = vor.u32 %v4966, %v4967
        %v4969 = vshll.u32 920167782, %v4954
        %v4970 = vshrl.u32 1326507024, %v4955
        %v4971 = vor.u32 %v4969, %v4970
        %vm4972 = vcmp.lt.s32.totalorder %v4953, 1
        %vm4973 = vcmp.lt.s32.totalorder %v4953, 2
        %vm4974 = vcmp.lt.s32.totalorder %v4953, 3
        %vm4975 = vcmp.lt.s32.totalorder %v4953, 4
        %v4976 = vsel %vm4972, %v4956, %v4959
        %v4977 = vsel %vm4975, %v4965, 2102212464
        %v4978 = vsel %vm4974, %v4962, %v4977
        %v4979 = vsel %vm4973, %v4976, %v4978
        %v4980 = vsel %vm4972, %v4959, %v4962
        %v4981 = vsel %vm4975, %v4968, 920167782
        %v4982 = vsel %vm4974, %v4965, %v4981
        %v4983 = vsel %vm4973, %v4980, %v4982
        %v4984 = vsel %vm4972, %v4962, %v4965
        %v4985 = vsel %vm4975, %v4971, 1326507024
        %v4986 = vsel %vm4974, %v4968, %v4985
        %v4987 = vsel %vm4973, %v4984, %v4986
        %v4988 = vshll.u32 %v4948, 8
        %v4989 = vand.u32 %v4988, 65535
        %v4990 = vshrl.u32 %v4988, 16
        %v4991 = vand.u32 %v4987, 65535
        %v4992 = vshrl.u32 %v4987, 16
        %v4993 = vmul.u32 %v4989, %v4991
        %v4994 = vmul.u32 %v4989, %v4992
        %v4995 = vmul.u32 %v4990, %v4991
        %v4996 = vmul.u32 %v4990, %v4992
        %v4997 = vshll.u32 %v4994, 16
        %v4998 = vshrl.u32 %v4994, 16
        %v4999 = vshll.u32 %v4995, 16
        %v5000 = vshrl.u32 %v4995, 16
        %vm5001 = vc.u32 %v4993, %v4997
        %v5002 = vsel %vm5001, 1, 0
        %v5003 = vadd.s32 %v4993, %v4997
        %v5004 = vadd.s32 %v4996, %v5002
        %vm5005 = vc.u32 %v5003, %v4999
        %v5006 = vsel %vm5005, 1, 0
        %v5007 = vadd.s32 %v5003, %v4999
        %v5008 = vadd.s32 %v5004, %v5006
        %v5009 = vadd.s32 %v5008, %v4998
        %v5010 = vadd.s32 %v5009, %v5000
        %v5011 = vand.u32 %v4988, 65535
        %v5012 = vshrl.u32 %v4988, 16
        %v5013 = vand.u32 %v4983, 65535
        %v5014 = vshrl.u32 %v4983, 16
        %v5015 = vmul.u32 %v5011, %v5013
        %v5016 = vmul.u32 %v5011, %v5014
        %v5017 = vmul.u32 %v5012, %v5013
        %v5018 = vmul.u32 %v5012, %v5014
        %v5019 = vshll.u32 %v5016, 16
        %v5020 = vshrl.u32 %v5016, 16
        %v5021 = vshll.u32 %v5017, 16
        %v5022 = vshrl.u32 %v5017, 16
        %vm5023 = vc.u32 %v5015, %v5019
        %v5024 = vsel %vm5023, 1, 0
        %v5025 = vadd.s32 %v5015, %v5019
        %v5026 = vadd.s32 %v5018, %v5024
        %vm5027 = vc.u32 %v5025, %v5021
        %v5028 = vsel %vm5027, 1, 0
        %v5029 = vadd.s32 %v5025, %v5021
        %v5030 = vadd.s32 %v5026, %v5028
        %v5031 = vadd.s32 %v5030, %v5020
        %v5032 = vadd.s32 %v5031, %v5022
        %v5033 = vmul.u32 %v4988, %v4979
        %v5034 = vadd.s32 %v5010, %v5029
        %vm5035 = vc.u32 %v5010, %v5029
        %v5036 = vadd.s32 %v5032, 1
        %v5037 = vsel %vm5035, %v5036, %v5032
        %v5038 = vadd.s32 %v5033, %v5037
        %v5039 = vadd.s32 %v5038, 536870912
        %v5040 = vshrl.u32 %v5039, 30
        %v5041 = vshll.u32 %v5040, 30
        %v5042 = vsub.s32 %v5038, %v5041
        %vm5043 = vcmp.lt.s32.totalorder %v5042, 0
        %v5044 = vsub.s32 0, %v5042
        %v5045 = vsel %vm5043, %v5044, %v5042
        %v5046 = vclz %v5045
        %v5047 = vsub.s32 %v5046, 2
        %vm5048 = vcmp.gt.s32.totalorder 0, %v5047
        %v5049 = vsel %vm5048, 0, %v5047
        %v5050 = vsub.s32 32, %v5049
        %v5051 = vshll.u32 %v5042, %v5049
        %v5052 = vshrl.u32 %v5034, %v5050
        %v5053 = vor.u32 %v5051, %v5052
        %v5054 = vsub.s32 4294967266, %v5049
        %v5055 = vadd.s32 %v5054, 127
        %v5056 = vshll.u32 %v5055, 23
        %v5057 = vor.u32 4788187, %v5056
        %v5058 = vand.u32 2147483647, %v5057
        %v5060 = vcvt.s32.f32 %v5053
        %v5061 = vmul.f32 %v5060, %v5058
        %v5062 = vxor.u32 %v5061, 2147483648
        %v5063 = vsel %vm4942, %v5062, %v5061
        %v5064 = vsub.s32 4, %v5040
        %v5065 = vsel %vm4942, %v5064, %v5040
        %v5066 = vsel %vm4941, %v274, %v5063
        %v5067 = vsel %vm4941, 0, %v5065
        %v5068 = vmul.f32 %v5066, %v5066
        %v5069 = vmul.f32 %v5068, -0.001358992
        %v5070 = vadd.f32 %v5069, 0.041655596
        %v5071 = vmul.f32 %v5068, %v5070
        %v5072 = vadd.f32 %v5071, -0.4999988
        %v5073 = vmul.f32 %v5068, %v5072
        %v5074 = vadd.f32 1.0, %v5073
        %v5075 = vmul.f32 %v5066, %v5066
        %v5076 = vmul.f32 %v5075, -0.00019511016
        %v5077 = vadd.f32 %v5076, 0.008332121
        %v5078 = vmul.f32 %v5075, %v5077
        %v5079 = vadd.f32 %v5078, -0.16666654
        %v5080 = vmul.f32 %v5075, %v5079
        %v5081 = vadd.f32 %v5080, 1.0
        %v5082 = vmul.f32 %v5081, %v5066
        %vm5083 = vweird.f32 %v274
        %v5084 = vand.u32 %v5067, 3
        %vm5085 = vcmp.lt.s32.totalorder %v5084, 2
        %vm5086 = vcmp.eq.s32.totalorder %v5084, 0
        %v5087 = vxor.u32 %v5082, 2147483648
        %v5088 = vsel %vm5086, %v5074, %v5087
        %vm5089 = vcmp.eq.s32.totalorder %v5084, 2
        %v5090 = vxor.u32 %v5074, 2147483648
        %v5091 = vsel %vm5089, %v5090, %v5082
        %v5092 = vsel %vm5085, %v5088, %v5091
        %v5093 = vsel %vm5083, nan, %v5092
        %v5094 = vand.u32 2147483647, %v275
        %vm5095 = vcmp.le.f32.partialorder %v5094, 0.7853982
        %vm5096 = vcmp.lt.s32.totalorder %v275, 0
        %v5097 = vand.u32 %v275, 2139095040
        %v5098 = vshrl.u32 %v5097, 23
        %v5099 = vsub.s32 %v5098, 127
        %v5100 = vand.u32 2147483647, %v275
        %v5101 = vand.u32 %v5100, 8388607
        %v5102 = vor.u32 %v5101, 8388608
        %v5103 = vsub.s32 0, %v5102
        %v5104 = vadd.s32 %v5099, 1
        %vm5105 = vcmp.gt.s32.totalorder %v5104, 0
        %v5106 = vsel %vm5105, %v5104, 0
        %v5107 = vshrl.u32 %v5106, 5
        %v5108 = vand.u32 %v5106, 31
        %v5109 = vsub.s32 32, %v5108
        %v5110 = vshrl.u32 683565275, %v5109
        %v5111 = vshll.u32 683565275, %v5108
        %v5112 = vshrl.u32 2475754826, %v5109
        %v5113 = vor.u32 %v5111, %v5112
        %v5114 = vshll.u32 2475754826, %v5108
        %v5115 = vshrl.u32 2131351028, %v5109
        %v5116 = vor.u32 %v5114, %v5115
        %v5117 = vshll.u32 2131351028, %v5108
        %v5118 = vshrl.u32 2102212464, %v5109
        %v5119 = vor.u32 %v5117, %v5118
        %v5120 = vshll.u32 2102212464, %v5108
        %v5121 = vshrl.u32 920167782, %v5109
        %v5122 = vor.u32 %v5120, %v5121
        %v5123 = vshll.u32 920167782, %v5108
        %v5124 = vshrl.u32 1326507024, %v5109
        %v5125 = vor.u32 %v5123, %v5124
        %vm5126 = vcmp.lt.s32.totalorder %v5107, 1
        %vm5127 = vcmp.lt.s32.totalorder %v5107, 2
        %vm5128 = vcmp.lt.s32.totalorder %v5107, 3
        %vm5129 = vcmp.lt.s32.totalorder %v5107, 4
        %v5130 = vsel %vm5126, %v5110, %v5113
        %v5131 = vsel %vm5129, %v5119, 2102212464
        %v5132 = vsel %vm5128, %v5116, %v5131
        %v5133 = vsel %vm5127, %v5130, %v5132
        %v5134 = vsel %vm5126, %v5113, %v5116
        %v5135 = vsel %vm5129, %v5122, 920167782
        %v5136 = vsel %vm5128, %v5119, %v5135
        %v5137 = vsel %vm5127, %v5134, %v5136
        %v5138 = vsel %vm5126, %v5116, %v5119
        %v5139 = vsel %vm5129, %v5125, 1326507024
        %v5140 = vsel %vm5128, %v5122, %v5139
        %v5141 = vsel %vm5127, %v5138, %v5140
        %v5142 = vshll.u32 %v5102, 8
        %v5143 = vand.u32 %v5142, 65535
        %v5144 = vshrl.u32 %v5142, 16
        %v5145 = vand.u32 %v5141, 65535
        %v5146 = vshrl.u32 %v5141, 16
        %v5147 = vmul.u32 %v5143, %v5145
        %v5148 = vmul.u32 %v5143, %v5146
        %v5149 = vmul.u32 %v5144, %v5145
        %v5150 = vmul.u32 %v5144, %v5146
        %v5151 = vshll.u32 %v5148, 16
        %v5152 = vshrl.u32 %v5148, 16
        %v5153 = vshll.u32 %v5149, 16
        %v5154 = vshrl.u32 %v5149, 16
        %vm5155 = vc.u32 %v5147, %v5151
        %v5156 = vsel %vm5155, 1, 0
        %v5157 = vadd.s32 %v5147, %v5151
        %v5158 = vadd.s32 %v5150, %v5156
        %vm5159 = vc.u32 %v5157, %v5153
        %v5160 = vsel %vm5159, 1, 0
        %v5161 = vadd.s32 %v5157, %v5153
        %v5162 = vadd.s32 %v5158, %v5160
        %v5163 = vadd.s32 %v5162, %v5152
        %v5164 = vadd.s32 %v5163, %v5154
        %v5165 = vand.u32 %v5142, 65535
        %v5166 = vshrl.u32 %v5142, 16
        %v5167 = vand.u32 %v5137, 65535
        %v5168 = vshrl.u32 %v5137, 16
        %v5169 = vmul.u32 %v5165, %v5167
        %v5170 = vmul.u32 %v5165, %v5168
        %v5171 = vmul.u32 %v5166, %v5167
        %v5172 = vmul.u32 %v5166, %v5168
        %v5173 = vshll.u32 %v5170, 16
        %v5174 = vshrl.u32 %v5170, 16
        %v5175 = vshll.u32 %v5171, 16
        %v5176 = vshrl.u32 %v5171, 16
        %vm5177 = vc.u32 %v5169, %v5173
        %v5178 = vsel %vm5177, 1, 0
        %v5179 = vadd.s32 %v5169, %v5173
        %v5180 = vadd.s32 %v5172, %v5178
        %vm5181 = vc.u32 %v5179, %v5175
        %v5182 = vsel %vm5181, 1, 0
        %v5183 = vadd.s32 %v5179, %v5175
        %v5184 = vadd.s32 %v5180, %v5182
        %v5185 = vadd.s32 %v5184, %v5174
        %v5186 = vadd.s32 %v5185, %v5176
        %v5187 = vmul.u32 %v5142, %v5133
        %v5188 = vadd.s32 %v5164, %v5183
        %vm5189 = vc.u32 %v5164, %v5183
        %v5190 = vadd.s32 %v5186, 1
        %v5191 = vsel %vm5189, %v5190, %v5186
        %v5192 = vadd.s32 %v5187, %v5191
        %v5193 = vadd.s32 %v5192, 536870912
        %v5194 = vshrl.u32 %v5193, 30
        %v5195 = vshll.u32 %v5194, 30
        %v5196 = vsub.s32 %v5192, %v5195
        %vm5197 = vcmp.lt.s32.totalorder %v5196, 0
        %v5198 = vsub.s32 0, %v5196
        %v5199 = vsel %vm5197, %v5198, %v5196
        %v5200 = vclz %v5199
        %v5201 = vsub.s32 %v5200, 2
        %vm5202 = vcmp.gt.s32.totalorder 0, %v5201
        %v5203 = vsel %vm5202, 0, %v5201
        %v5204 = vsub.s32 32, %v5203
        %v5205 = vshll.u32 %v5196, %v5203
        %v5206 = vshrl.u32 %v5188, %v5204
        %v5207 = vor.u32 %v5205, %v5206
        %v5208 = vsub.s32 4294967266, %v5203
        %v5209 = vadd.s32 %v5208, 127
        %v5210 = vshll.u32 %v5209, 23
        %v5211 = vor.u32 4788187, %v5210
        %v5212 = vand.u32 2147483647, %v5211
        %v5214 = vcvt.s32.f32 %v5207
        %v5215 = vmul.f32 %v5214, %v5212
        %v5216 = vxor.u32 %v5215, 2147483648
        %v5217 = vsel %vm5096, %v5216, %v5215
        %v5218 = vsub.s32 4, %v5194
        %v5219 = vsel %vm5096, %v5218, %v5194
        %v5220 = vsel %vm5095, %v275, %v5217
        %v5221 = vsel %vm5095, 0, %v5219
        %v5222 = vmul.f32 %v5220, %v5220
        %v5223 = vmul.f32 %v5222, -0.001358992
        %v5224 = vadd.f32 %v5223, 0.041655596
        %v5225 = vmul.f32 %v5222, %v5224
        %v5226 = vadd.f32 %v5225, -0.4999988
        %v5227 = vmul.f32 %v5222, %v5226
        %v5228 = vadd.f32 1.0, %v5227
        %v5229 = vmul.f32 %v5220, %v5220
        %v5230 = vmul.f32 %v5229, -0.00019511016
        %v5231 = vadd.f32 %v5230, 0.008332121
        %v5232 = vmul.f32 %v5229, %v5231
        %v5233 = vadd.f32 %v5232, -0.16666654
        %v5234 = vmul.f32 %v5229, %v5233
        %v5235 = vadd.f32 %v5234, 1.0
        %v5236 = vmul.f32 %v5235, %v5220
        %vm5237 = vweird.f32 %v275
        %v5238 = vand.u32 %v5221, 3
        %vm5239 = vcmp.lt.s32.totalorder %v5238, 2
        %vm5240 = vcmp.eq.s32.totalorder %v5238, 0
        %v5241 = vxor.u32 %v5236, 2147483648
        %v5242 = vsel %vm5240, %v5228, %v5241
        %vm5243 = vcmp.eq.s32.totalorder %v5238, 2
        %v5244 = vxor.u32 %v5228, 2147483648
        %v5245 = vsel %vm5243, %v5244, %v5236
        %v5246 = vsel %vm5239, %v5242, %v5245
        %v5247 = vsel %vm5237, nan, %v5246
        %v5248 = vand.u32 2147483647, %v276
        %vm5249 = vcmp.le.f32.partialorder %v5248, 0.7853982
        %vm5250 = vcmp.lt.s32.totalorder %v276, 0
        %v5251 = vand.u32 %v276, 2139095040
        %v5252 = vshrl.u32 %v5251, 23
        %v5253 = vsub.s32 %v5252, 127
        %v5254 = vand.u32 2147483647, %v276
        %v5255 = vand.u32 %v5254, 8388607
        %v5256 = vor.u32 %v5255, 8388608
        %v5257 = vsub.s32 0, %v5256
        %v5258 = vadd.s32 %v5253, 1
        %vm5259 = vcmp.gt.s32.totalorder %v5258, 0
        %v5260 = vsel %vm5259, %v5258, 0
        %v5261 = vshrl.u32 %v5260, 5
        %v5262 = vand.u32 %v5260, 31
        %v5263 = vsub.s32 32, %v5262
        %v5264 = vshrl.u32 683565275, %v5263
        %v5265 = vshll.u32 683565275, %v5262
        %v5266 = vshrl.u32 2475754826, %v5263
        %v5267 = vor.u32 %v5265, %v5266
        %v5268 = vshll.u32 2475754826, %v5262
        %v5269 = vshrl.u32 2131351028, %v5263
        %v5270 = vor.u32 %v5268, %v5269
        %v5271 = vshll.u32 2131351028, %v5262
        %v5272 = vshrl.u32 2102212464, %v5263
        %v5273 = vor.u32 %v5271, %v5272
        %v5274 = vshll.u32 2102212464, %v5262
        %v5275 = vshrl.u32 920167782, %v5263
        %v5276 = vor.u32 %v5274, %v5275
        %v5277 = vshll.u32 920167782, %v5262
        %v5278 = vshrl.u32 1326507024, %v5263
        %v5279 = vor.u32 %v5277, %v5278
        %vm5280 = vcmp.lt.s32.totalorder %v5261, 1
        %vm5281 = vcmp.lt.s32.totalorder %v5261, 2
        %vm5282 = vcmp.lt.s32.totalorder %v5261, 3
        %vm5283 = vcmp.lt.s32.totalorder %v5261, 4
        %v5284 = vsel %vm5280, %v5264, %v5267
        %v5285 = vsel %vm5283, %v5273, 2102212464
        %v5286 = vsel %vm5282, %v5270, %v5285
        %v5287 = vsel %vm5281, %v5284, %v5286
        %v5288 = vsel %vm5280, %v5267, %v5270
        %v5289 = vsel %vm5283, %v5276, 920167782
        %v5290 = vsel %vm5282, %v5273, %v5289
        %v5291 = vsel %vm5281, %v5288, %v5290
        %v5292 = vsel %vm5280, %v5270, %v5273
        %v5293 = vsel %vm5283, %v5279, 1326507024
        %v5294 = vsel %vm5282, %v5276, %v5293
        %v5295 = vsel %vm5281, %v5292, %v5294
        %v5296 = vshll.u32 %v5256, 8
        %v5297 = vand.u32 %v5296, 65535
        %v5298 = vshrl.u32 %v5296, 16
        %v5299 = vand.u32 %v5295, 65535
        %v5300 = vshrl.u32 %v5295, 16
        %v5301 = vmul.u32 %v5297, %v5299
        %v5302 = vmul.u32 %v5297, %v5300
        %v5303 = vmul.u32 %v5298, %v5299
        %v5304 = vmul.u32 %v5298, %v5300
        %v5305 = vshll.u32 %v5302, 16
        %v5306 = vshrl.u32 %v5302, 16
        %v5307 = vshll.u32 %v5303, 16
        %v5308 = vshrl.u32 %v5303, 16
        %vm5309 = vc.u32 %v5301, %v5305
        %v5310 = vsel %vm5309, 1, 0
        %v5311 = vadd.s32 %v5301, %v5305
        %v5312 = vadd.s32 %v5304, %v5310
        %vm5313 = vc.u32 %v5311, %v5307
        %v5314 = vsel %vm5313, 1, 0
        %v5315 = vadd.s32 %v5311, %v5307
        %v5316 = vadd.s32 %v5312, %v5314
        %v5317 = vadd.s32 %v5316, %v5306
        %v5318 = vadd.s32 %v5317, %v5308
        %v5319 = vand.u32 %v5296, 65535
        %v5320 = vshrl.u32 %v5296, 16
        %v5321 = vand.u32 %v5291, 65535
        %v5322 = vshrl.u32 %v5291, 16
        %v5323 = vmul.u32 %v5319, %v5321
        %v5324 = vmul.u32 %v5319, %v5322
        %v5325 = vmul.u32 %v5320, %v5321
        %v5326 = vmul.u32 %v5320, %v5322
        %v5327 = vshll.u32 %v5324, 16
        %v5328 = vshrl.u32 %v5324, 16
        %v5329 = vshll.u32 %v5325, 16
        %v5330 = vshrl.u32 %v5325, 16
        %vm5331 = vc.u32 %v5323, %v5327
        %v5332 = vsel %vm5331, 1, 0
        %v5333 = vadd.s32 %v5323, %v5327
        %v5334 = vadd.s32 %v5326, %v5332
        %vm5335 = vc.u32 %v5333, %v5329
        %v5336 = vsel %vm5335, 1, 0
        %v5337 = vadd.s32 %v5333, %v5329
        %v5338 = vadd.s32 %v5334, %v5336
        %v5339 = vadd.s32 %v5338, %v5328
        %v5340 = vadd.s32 %v5339, %v5330
        %v5341 = vmul.u32 %v5296, %v5287
        %v5342 = vadd.s32 %v5318, %v5337
        %vm5343 = vc.u32 %v5318, %v5337
        %v5344 = vadd.s32 %v5340, 1
        %v5345 = vsel %vm5343, %v5344, %v5340
        %v5346 = vadd.s32 %v5341, %v5345
        %v5347 = vadd.s32 %v5346, 536870912
        %v5348 = vshrl.u32 %v5347, 30
        %v5349 = vshll.u32 %v5348, 30
        %v5350 = vsub.s32 %v5346, %v5349
        %vm5351 = vcmp.lt.s32.totalorder %v5350, 0
        %v5352 = vsub.s32 0, %v5350
        %v5353 = vsel %vm5351, %v5352, %v5350
        %v5354 = vclz %v5353
        %v5355 = vsub.s32 %v5354, 2
        %vm5356 = vcmp.gt.s32.totalorder 0, %v5355
        %v5357 = vsel %vm5356, 0, %v5355
        %v5358 = vsub.s32 32, %v5357
        %v5359 = vshll.u32 %v5350, %v5357
        %v5360 = vshrl.u32 %v5342, %v5358
        %v5361 = vor.u32 %v5359, %v5360
        %v5362 = vsub.s32 4294967266, %v5357
        %v5363 = vadd.s32 %v5362, 127
        %v5364 = vshll.u32 %v5363, 23
        %v5365 = vor.u32 4788187, %v5364
        %v5366 = vand.u32 2147483647, %v5365
        %v5368 = vcvt.s32.f32 %v5361
        %v5369 = vmul.f32 %v5368, %v5366
        %v5370 = vxor.u32 %v5369, 2147483648
        %v5371 = vsel %vm5250, %v5370, %v5369
        %v5372 = vsub.s32 4, %v5348
        %v5373 = vsel %vm5250, %v5372, %v5348
        %v5374 = vsel %vm5249, %v276, %v5371
        %v5375 = vsel %vm5249, 0, %v5373
        %v5376 = vmul.f32 %v5374, %v5374
        %v5377 = vmul.f32 %v5376, -0.001358992
        %v5378 = vadd.f32 %v5377, 0.041655596
        %v5379 = vmul.f32 %v5376, %v5378
        %v5380 = vadd.f32 %v5379, -0.4999988
        %v5381 = vmul.f32 %v5376, %v5380
        %v5382 = vadd.f32 1.0, %v5381
        %v5383 = vmul.f32 %v5374, %v5374
        %v5384 = vmul.f32 %v5383, -0.00019511016
        %v5385 = vadd.f32 %v5384, 0.008332121
        %v5386 = vmul.f32 %v5383, %v5385
        %v5387 = vadd.f32 %v5386, -0.16666654
        %v5388 = vmul.f32 %v5383, %v5387
        %v5389 = vadd.f32 %v5388, 1.0
        %v5390 = vmul.f32 %v5389, %v5374
        %vm5391 = vweird.f32 %v276
        %v5392 = vand.u32 %v5375, 3
        %vm5393 = vcmp.lt.s32.totalorder %v5392, 2
        %vm5394 = vcmp.eq.s32.totalorder %v5392, 0
        %v5395 = vxor.u32 %v5390, 2147483648
        %v5396 = vsel %vm5394, %v5382, %v5395
        %vm5397 = vcmp.eq.s32.totalorder %v5392, 2
        %v5398 = vxor.u32 %v5382, 2147483648
        %v5399 = vsel %vm5397, %v5398, %v5390
        %v5400 = vsel %vm5393, %v5396, %v5399
        %v5401 = vsel %vm5391, nan, %v5400
        %v5402 = vand.u32 2147483647, %v277
        %vm5403 = vcmp.le.f32.partialorder %v5402, 0.7853982
        %vm5404 = vcmp.lt.s32.totalorder %v277, 0
        %v5405 = vand.u32 %v277, 2139095040
        %v5406 = vshrl.u32 %v5405, 23
        %v5407 = vsub.s32 %v5406, 127
        %v5408 = vand.u32 2147483647, %v277
        %v5409 = vand.u32 %v5408, 8388607
        %v5410 = vor.u32 %v5409, 8388608
        %v5411 = vsub.s32 0, %v5410
        %v5412 = vadd.s32 %v5407, 1
        %vm5413 = vcmp.gt.s32.totalorder %v5412, 0
        %v5414 = vsel %vm5413, %v5412, 0
        %v5415 = vshrl.u32 %v5414, 5
        %v5416 = vand.u32 %v5414, 31
        %v5417 = vsub.s32 32, %v5416
        %v5418 = vshrl.u32 683565275, %v5417
        %v5419 = vshll.u32 683565275, %v5416
        %v5420 = vshrl.u32 2475754826, %v5417
        %v5421 = vor.u32 %v5419, %v5420
        %v5422 = vshll.u32 2475754826, %v5416
        %v5423 = vshrl.u32 2131351028, %v5417
        %v5424 = vor.u32 %v5422, %v5423
        %v5425 = vshll.u32 2131351028, %v5416
        %v5426 = vshrl.u32 2102212464, %v5417
        %v5427 = vor.u32 %v5425, %v5426
        %v5428 = vshll.u32 2102212464, %v5416
        %v5429 = vshrl.u32 920167782, %v5417
        %v5430 = vor.u32 %v5428, %v5429
        %v5431 = vshll.u32 920167782, %v5416
        %v5432 = vshrl.u32 1326507024, %v5417
        %v5433 = vor.u32 %v5431, %v5432
        %vm5434 = vcmp.lt.s32.totalorder %v5415, 1
        %vm5435 = vcmp.lt.s32.totalorder %v5415, 2
        %vm5436 = vcmp.lt.s32.totalorder %v5415, 3
        %vm5437 = vcmp.lt.s32.totalorder %v5415, 4
        %v5438 = vsel %vm5434, %v5418, %v5421
        %v5439 = vsel %vm5437, %v5427, 2102212464
        %v5440 = vsel %vm5436, %v5424, %v5439
        %v5441 = vsel %vm5435, %v5438, %v5440
        %v5442 = vsel %vm5434, %v5421, %v5424
        %v5443 = vsel %vm5437, %v5430, 920167782
        %v5444 = vsel %vm5436, %v5427, %v5443
        %v5445 = vsel %vm5435, %v5442, %v5444
        %v5446 = vsel %vm5434, %v5424, %v5427
        %v5447 = vsel %vm5437, %v5433, 1326507024
        %v5448 = vsel %vm5436, %v5430, %v5447
        %v5449 = vsel %vm5435, %v5446, %v5448
        %v5450 = vshll.u32 %v5410, 8
        %v5451 = vand.u32 %v5450, 65535
        %v5452 = vshrl.u32 %v5450, 16
        %v5453 = vand.u32 %v5449, 65535
        %v5454 = vshrl.u32 %v5449, 16
        %v5455 = vmul.u32 %v5451, %v5453
        %v5456 = vmul.u32 %v5451, %v5454
        %v5457 = vmul.u32 %v5452, %v5453
        %v5458 = vmul.u32 %v5452, %v5454
        %v5459 = vshll.u32 %v5456, 16
        %v5460 = vshrl.u32 %v5456, 16
        %v5461 = vshll.u32 %v5457, 16
        %v5462 = vshrl.u32 %v5457, 16
        %vm5463 = vc.u32 %v5455, %v5459
        %v5464 = vsel %vm5463, 1, 0
        %v5465 = vadd.s32 %v5455, %v5459
        %v5466 = vadd.s32 %v5458, %v5464
        %vm5467 = vc.u32 %v5465, %v5461
        %v5468 = vsel %vm5467, 1, 0
        %v5469 = vadd.s32 %v5465, %v5461
        %v5470 = vadd.s32 %v5466, %v5468
        %v5471 = vadd.s32 %v5470, %v5460
        %v5472 = vadd.s32 %v5471, %v5462
        %v5473 = vand.u32 %v5450, 65535
        %v5474 = vshrl.u32 %v5450, 16
        %v5475 = vand.u32 %v5445, 65535
        %v5476 = vshrl.u32 %v5445, 16
        %v5477 = vmul.u32 %v5473, %v5475
        %v5478 = vmul.u32 %v5473, %v5476
        %v5479 = vmul.u32 %v5474, %v5475
        %v5480 = vmul.u32 %v5474, %v5476
        %v5481 = vshll.u32 %v5478, 16
        %v5482 = vshrl.u32 %v5478, 16
        %v5483 = vshll.u32 %v5479, 16
        %v5484 = vshrl.u32 %v5479, 16
        %vm5485 = vc.u32 %v5477, %v5481
        %v5486 = vsel %vm5485, 1, 0
        %v5487 = vadd.s32 %v5477, %v5481
        %v5488 = vadd.s32 %v5480, %v5486
        %vm5489 = vc.u32 %v5487, %v5483
        %v5490 = vsel %vm5489, 1, 0
        %v5491 = vadd.s32 %v5487, %v5483
        %v5492 = vadd.s32 %v5488, %v5490
        %v5493 = vadd.s32 %v5492, %v5482
        %v5494 = vadd.s32 %v5493, %v5484
        %v5495 = vmul.u32 %v5450, %v5441
        %v5496 = vadd.s32 %v5472, %v5491
        %vm5497 = vc.u32 %v5472, %v5491
        %v5498 = vadd.s32 %v5494, 1
        %v5499 = vsel %vm5497, %v5498, %v5494
        %v5500 = vadd.s32 %v5495, %v5499
        %v5501 = vadd.s32 %v5500, 536870912
        %v5502 = vshrl.u32 %v5501, 30
        %v5503 = vshll.u32 %v5502, 30
        %v5504 = vsub.s32 %v5500, %v5503
        %vm5505 = vcmp.lt.s32.totalorder %v5504, 0
        %v5506 = vsub.s32 0, %v5504
        %v5507 = vsel %vm5505, %v5506, %v5504
        %v5508 = vclz %v5507
        %v5509 = vsub.s32 %v5508, 2
        %vm5510 = vcmp.gt.s32.totalorder 0, %v5509
        %v5511 = vsel %vm5510, 0, %v5509
        %v5512 = vsub.s32 32, %v5511
        %v5513 = vshll.u32 %v5504, %v5511
        %v5514 = vshrl.u32 %v5496, %v5512
        %v5515 = vor.u32 %v5513, %v5514
        %v5516 = vsub.s32 4294967266, %v5511
        %v5517 = vadd.s32 %v5516, 127
        %v5518 = vshll.u32 %v5517, 23
        %v5519 = vor.u32 4788187, %v5518
        %v5520 = vand.u32 2147483647, %v5519
        %v5522 = vcvt.s32.f32 %v5515
        %v5523 = vmul.f32 %v5522, %v5520
        %v5524 = vxor.u32 %v5523, 2147483648
        %v5525 = vsel %vm5404, %v5524, %v5523
        %v5526 = vsub.s32 4, %v5502
        %v5527 = vsel %vm5404, %v5526, %v5502
        %v5528 = vsel %vm5403, %v277, %v5525
        %v5529 = vsel %vm5403, 0, %v5527
        %v5530 = vmul.f32 %v5528, %v5528
        %v5531 = vmul.f32 %v5530, -0.001358992
        %v5532 = vadd.f32 %v5531, 0.041655596
        %v5533 = vmul.f32 %v5530, %v5532
        %v5534 = vadd.f32 %v5533, -0.4999988
        %v5535 = vmul.f32 %v5530, %v5534
        %v5536 = vadd.f32 1.0, %v5535
        %v5537 = vmul.f32 %v5528, %v5528
        %v5538 = vmul.f32 %v5537, -0.00019511016
        %v5539 = vadd.f32 %v5538, 0.008332121
        %v5540 = vmul.f32 %v5537, %v5539
        %v5541 = vadd.f32 %v5540, -0.16666654
        %v5542 = vmul.f32 %v5537, %v5541
        %v5543 = vadd.f32 %v5542, 1.0
        %v5544 = vmul.f32 %v5543, %v5528
        %vm5545 = vweird.f32 %v277
        %v5546 = vand.u32 %v5529, 3
        %vm5547 = vcmp.lt.s32.totalorder %v5546, 2
        %vm5548 = vcmp.eq.s32.totalorder %v5546, 0
        %v5549 = vxor.u32 %v5544, 2147483648
        %v5550 = vsel %vm5548, %v5536, %v5549
        %vm5551 = vcmp.eq.s32.totalorder %v5546, 2
        %v5552 = vxor.u32 %v5536, 2147483648
        %v5553 = vsel %vm5551, %v5552, %v5544
        %v5554 = vsel %vm5547, %v5550, %v5553
        %v5555 = vsel %vm5545, nan, %v5554
        %v5556 = vand.u32 2147483647, %v278
        %vm5557 = vcmp.le.f32.partialorder %v5556, 0.7853982
        %vm5558 = vcmp.lt.s32.totalorder %v278, 0
        %v5559 = vand.u32 %v278, 2139095040
        %v5560 = vshrl.u32 %v5559, 23
        %v5561 = vsub.s32 %v5560, 127
        %v5562 = vand.u32 2147483647, %v278
        %v5563 = vand.u32 %v5562, 8388607
        %v5564 = vor.u32 %v5563, 8388608
        %v5565 = vsub.s32 0, %v5564
        %v5566 = vadd.s32 %v5561, 1
        %vm5567 = vcmp.gt.s32.totalorder %v5566, 0
        %v5568 = vsel %vm5567, %v5566, 0
        %v5569 = vshrl.u32 %v5568, 5
        %v5570 = vand.u32 %v5568, 31
        %v5571 = vsub.s32 32, %v5570
        %v5572 = vshrl.u32 683565275, %v5571
        %v5573 = vshll.u32 683565275, %v5570
        %v5574 = vshrl.u32 2475754826, %v5571
        %v5575 = vor.u32 %v5573, %v5574
        %v5576 = vshll.u32 2475754826, %v5570
        %v5577 = vshrl.u32 2131351028, %v5571
        %v5578 = vor.u32 %v5576, %v5577
        %v5579 = vshll.u32 2131351028, %v5570
        %v5580 = vshrl.u32 2102212464, %v5571
        %v5581 = vor.u32 %v5579, %v5580
        %v5582 = vshll.u32 2102212464, %v5570
        %v5583 = vshrl.u32 920167782, %v5571
        %v5584 = vor.u32 %v5582, %v5583
        %v5585 = vshll.u32 920167782, %v5570
        %v5586 = vshrl.u32 1326507024, %v5571
        %v5587 = vor.u32 %v5585, %v5586
        %vm5588 = vcmp.lt.s32.totalorder %v5569, 1
        %vm5589 = vcmp.lt.s32.totalorder %v5569, 2
        %vm5590 = vcmp.lt.s32.totalorder %v5569, 3
        %vm5591 = vcmp.lt.s32.totalorder %v5569, 4
        %v5592 = vsel %vm5588, %v5572, %v5575
        %v5593 = vsel %vm5591, %v5581, 2102212464
        %v5594 = vsel %vm5590, %v5578, %v5593
        %v5595 = vsel %vm5589, %v5592, %v5594
        %v5596 = vsel %vm5588, %v5575, %v5578
        %v5597 = vsel %vm5591, %v5584, 920167782
        %v5598 = vsel %vm5590, %v5581, %v5597
        %v5599 = vsel %vm5589, %v5596, %v5598
        %v5600 = vsel %vm5588, %v5578, %v5581
        %v5601 = vsel %vm5591, %v5587, 1326507024
        %v5602 = vsel %vm5590, %v5584, %v5601
        %v5603 = vsel %vm5589, %v5600, %v5602
        %v5604 = vshll.u32 %v5564, 8
        %v5605 = vand.u32 %v5604, 65535
        %v5606 = vshrl.u32 %v5604, 16
        %v5607 = vand.u32 %v5603, 65535
        %v5608 = vshrl.u32 %v5603, 16
        %v5609 = vmul.u32 %v5605, %v5607
        %v5610 = vmul.u32 %v5605, %v5608
        %v5611 = vmul.u32 %v5606, %v5607
        %v5612 = vmul.u32 %v5606, %v5608
        %v5613 = vshll.u32 %v5610, 16
        %v5614 = vshrl.u32 %v5610, 16
        %v5615 = vshll.u32 %v5611, 16
        %v5616 = vshrl.u32 %v5611, 16
        %vm5617 = vc.u32 %v5609, %v5613
        %v5618 = vsel %vm5617, 1, 0
        %v5619 = vadd.s32 %v5609, %v5613
        %v5620 = vadd.s32 %v5612, %v5618
        %vm5621 = vc.u32 %v5619, %v5615
        %v5622 = vsel %vm5621, 1, 0
        %v5623 = vadd.s32 %v5619, %v5615
        %v5624 = vadd.s32 %v5620, %v5622
        %v5625 = vadd.s32 %v5624, %v5614
        %v5626 = vadd.s32 %v5625, %v5616
        %v5627 = vand.u32 %v5604, 65535
        %v5628 = vshrl.u32 %v5604, 16
        %v5629 = vand.u32 %v5599, 65535
        %v5630 = vshrl.u32 %v5599, 16
        %v5631 = vmul.u32 %v5627, %v5629
        %v5632 = vmul.u32 %v5627, %v5630
        %v5633 = vmul.u32 %v5628, %v5629
        %v5634 = vmul.u32 %v5628, %v5630
        %v5635 = vshll.u32 %v5632, 16
        %v5636 = vshrl.u32 %v5632, 16
        %v5637 = vshll.u32 %v5633, 16
        %v5638 = vshrl.u32 %v5633, 16
        %vm5639 = vc.u32 %v5631, %v5635
        %v5640 = vsel %vm5639, 1, 0
        %v5641 = vadd.s32 %v5631, %v5635
        %v5642 = vadd.s32 %v5634, %v5640
        %vm5643 = vc.u32 %v5641, %v5637
        %v5644 = vsel %vm5643, 1, 0
        %v5645 = vadd.s32 %v5641, %v5637
        %v5646 = vadd.s32 %v5642, %v5644
        %v5647 = vadd.s32 %v5646, %v5636
        %v5648 = vadd.s32 %v5647, %v5638
        %v5649 = vmul.u32 %v5604, %v5595
        %v5650 = vadd.s32 %v5626, %v5645
        %vm5651 = vc.u32 %v5626, %v5645
        %v5652 = vadd.s32 %v5648, 1
        %v5653 = vsel %vm5651, %v5652, %v5648
        %v5654 = vadd.s32 %v5649, %v5653
        %v5655 = vadd.s32 %v5654, 536870912
        %v5656 = vshrl.u32 %v5655, 30
        %v5657 = vshll.u32 %v5656, 30
        %v5658 = vsub.s32 %v5654, %v5657
        %vm5659 = vcmp.lt.s32.totalorder %v5658, 0
        %v5660 = vsub.s32 0, %v5658
        %v5661 = vsel %vm5659, %v5660, %v5658
        %v5662 = vclz %v5661
        %v5663 = vsub.s32 %v5662, 2
        %vm5664 = vcmp.gt.s32.totalorder 0, %v5663
        %v5665 = vsel %vm5664, 0, %v5663
        %v5666 = vsub.s32 32, %v5665
        %v5667 = vshll.u32 %v5658, %v5665
        %v5668 = vshrl.u32 %v5650, %v5666
        %v5669 = vor.u32 %v5667, %v5668
        %v5670 = vsub.s32 4294967266, %v5665
        %v5671 = vadd.s32 %v5670, 127
        %v5672 = vshll.u32 %v5671, 23
        %v5673 = vor.u32 4788187, %v5672
        %v5674 = vand.u32 2147483647, %v5673
        %v5676 = vcvt.s32.f32 %v5669
        %v5677 = vmul.f32 %v5676, %v5674
        %v5678 = vxor.u32 %v5677, 2147483648
        %v5679 = vsel %vm5558, %v5678, %v5677
        %v5680 = vsub.s32 4, %v5656
        %v5681 = vsel %vm5558, %v5680, %v5656
        %v5682 = vsel %vm5557, %v278, %v5679
        %v5683 = vsel %vm5557, 0, %v5681
        %v5684 = vmul.f32 %v5682, %v5682
        %v5685 = vmul.f32 %v5684, -0.001358992
        %v5686 = vadd.f32 %v5685, 0.041655596
        %v5687 = vmul.f32 %v5684, %v5686
        %v5688 = vadd.f32 %v5687, -0.4999988
        %v5689 = vmul.f32 %v5684, %v5688
        %v5690 = vadd.f32 1.0, %v5689
        %v5691 = vmul.f32 %v5682, %v5682
        %v5692 = vmul.f32 %v5691, -0.00019511016
        %v5693 = vadd.f32 %v5692, 0.008332121
        %v5694 = vmul.f32 %v5691, %v5693
        %v5695 = vadd.f32 %v5694, -0.16666654
        %v5696 = vmul.f32 %v5691, %v5695
        %v5697 = vadd.f32 %v5696, 1.0
        %v5698 = vmul.f32 %v5697, %v5682
        %vm5699 = vweird.f32 %v278
        %v5700 = vand.u32 %v5683, 3
        %vm5701 = vcmp.lt.s32.totalorder %v5700, 2
        %vm5702 = vcmp.eq.s32.totalorder %v5700, 0
        %v5703 = vxor.u32 %v5698, 2147483648
        %v5704 = vsel %vm5702, %v5690, %v5703
        %vm5705 = vcmp.eq.s32.totalorder %v5700, 2
        %v5706 = vxor.u32 %v5690, 2147483648
        %v5707 = vsel %vm5705, %v5706, %v5698
        %v5708 = vsel %vm5701, %v5704, %v5707
        %v5709 = vsel %vm5699, nan, %v5708
        %v5710 = vand.u32 2147483647, %v279
        %vm5711 = vcmp.le.f32.partialorder %v5710, 0.7853982
        %vm5712 = vcmp.lt.s32.totalorder %v279, 0
        %v5713 = vand.u32 %v279, 2139095040
        %v5714 = vshrl.u32 %v5713, 23
        %v5715 = vsub.s32 %v5714, 127
        %v5716 = vand.u32 2147483647, %v279
        %v5717 = vand.u32 %v5716, 8388607
        %v5718 = vor.u32 %v5717, 8388608
        %v5719 = vsub.s32 0, %v5718
        %v5720 = vadd.s32 %v5715, 1
        %vm5721 = vcmp.gt.s32.totalorder %v5720, 0
        %v5722 = vsel %vm5721, %v5720, 0
        %v5723 = vshrl.u32 %v5722, 5
        %v5724 = vand.u32 %v5722, 31
        %v5725 = vsub.s32 32, %v5724
        %v5726 = vshrl.u32 683565275, %v5725
        %v5727 = vshll.u32 683565275, %v5724
        %v5728 = vshrl.u32 2475754826, %v5725
        %v5729 = vor.u32 %v5727, %v5728
        %v5730 = vshll.u32 2475754826, %v5724
        %v5731 = vshrl.u32 2131351028, %v5725
        %v5732 = vor.u32 %v5730, %v5731
        %v5733 = vshll.u32 2131351028, %v5724
        %v5734 = vshrl.u32 2102212464, %v5725
        %v5735 = vor.u32 %v5733, %v5734
        %v5736 = vshll.u32 2102212464, %v5724
        %v5737 = vshrl.u32 920167782, %v5725
        %v5738 = vor.u32 %v5736, %v5737
        %v5739 = vshll.u32 920167782, %v5724
        %v5740 = vshrl.u32 1326507024, %v5725
        %v5741 = vor.u32 %v5739, %v5740
        %vm5742 = vcmp.lt.s32.totalorder %v5723, 1
        %vm5743 = vcmp.lt.s32.totalorder %v5723, 2
        %vm5744 = vcmp.lt.s32.totalorder %v5723, 3
        %vm5745 = vcmp.lt.s32.totalorder %v5723, 4
        %v5746 = vsel %vm5742, %v5726, %v5729
        %v5747 = vsel %vm5745, %v5735, 2102212464
        %v5748 = vsel %vm5744, %v5732, %v5747
        %v5749 = vsel %vm5743, %v5746, %v5748
        %v5750 = vsel %vm5742, %v5729, %v5732
        %v5751 = vsel %vm5745, %v5738, 920167782
        %v5752 = vsel %vm5744, %v5735, %v5751
        %v5753 = vsel %vm5743, %v5750, %v5752
        %v5754 = vsel %vm5742, %v5732, %v5735
        %v5755 = vsel %vm5745, %v5741, 1326507024
        %v5756 = vsel %vm5744, %v5738, %v5755
        %v5757 = vsel %vm5743, %v5754, %v5756
        %v5758 = vshll.u32 %v5718, 8
        %v5759 = vand.u32 %v5758, 65535
        %v5760 = vshrl.u32 %v5758, 16
        %v5761 = vand.u32 %v5757, 65535
        %v5762 = vshrl.u32 %v5757, 16
        %v5763 = vmul.u32 %v5759, %v5761
        %v5764 = vmul.u32 %v5759, %v5762
        %v5765 = vmul.u32 %v5760, %v5761
        %v5766 = vmul.u32 %v5760, %v5762
        %v5767 = vshll.u32 %v5764, 16
        %v5768 = vshrl.u32 %v5764, 16
        %v5769 = vshll.u32 %v5765, 16
        %v5770 = vshrl.u32 %v5765, 16
        %vm5771 = vc.u32 %v5763, %v5767
        %v5772 = vsel %vm5771, 1, 0
        %v5773 = vadd.s32 %v5763, %v5767
        %v5774 = vadd.s32 %v5766, %v5772
        %vm5775 = vc.u32 %v5773, %v5769
        %v5776 = vsel %vm5775, 1, 0
        %v5777 = vadd.s32 %v5773, %v5769
        %v5778 = vadd.s32 %v5774, %v5776
        %v5779 = vadd.s32 %v5778, %v5768
        %v5780 = vadd.s32 %v5779, %v5770
        %v5781 = vand.u32 %v5758, 65535
        %v5782 = vshrl.u32 %v5758, 16
        %v5783 = vand.u32 %v5753, 65535
        %v5784 = vshrl.u32 %v5753, 16
        %v5785 = vmul.u32 %v5781, %v5783
        %v5786 = vmul.u32 %v5781, %v5784
        %v5787 = vmul.u32 %v5782, %v5783
        %v5788 = vmul.u32 %v5782, %v5784
        %v5789 = vshll.u32 %v5786, 16
        %v5790 = vshrl.u32 %v5786, 16
        %v5791 = vshll.u32 %v5787, 16
        %v5792 = vshrl.u32 %v5787, 16
        %vm5793 = vc.u32 %v5785, %v5789
        %v5794 = vsel %vm5793, 1, 0
        %v5795 = vadd.s32 %v5785, %v5789
        %v5796 = vadd.s32 %v5788, %v5794
        %vm5797 = vc.u32 %v5795, %v5791
        %v5798 = vsel %vm5797, 1, 0
        %v5799 = vadd.s32 %v5795, %v5791
        %v5800 = vadd.s32 %v5796, %v5798
        %v5801 = vadd.s32 %v5800, %v5790
        %v5802 = vadd.s32 %v5801, %v5792
        %v5803 = vmul.u32 %v5758, %v5749
        %v5804 = vadd.s32 %v5780, %v5799
        %vm5805 = vc.u32 %v5780, %v5799
        %v5806 = vadd.s32 %v5802, 1
        %v5807 = vsel %vm5805, %v5806, %v5802
        %v5808 = vadd.s32 %v5803, %v5807
        %v5809 = vadd.s32 %v5808, 536870912
        %v5810 = vshrl.u32 %v5809, 30
        %v5811 = vshll.u32 %v5810, 30
        %v5812 = vsub.s32 %v5808, %v5811
        %vm5813 = vcmp.lt.s32.totalorder %v5812, 0
        %v5814 = vsub.s32 0, %v5812
        %v5815 = vsel %vm5813, %v5814, %v5812
        %v5816 = vclz %v5815
        %v5817 = vsub.s32 %v5816, 2
        %vm5818 = vcmp.gt.s32.totalorder 0, %v5817
        %v5819 = vsel %vm5818, 0, %v5817
        %v5820 = vsub.s32 32, %v5819
        %v5821 = vshll.u32 %v5812, %v5819
        %v5822 = vshrl.u32 %v5804, %v5820
        %v5823 = vor.u32 %v5821, %v5822
        %v5824 = vsub.s32 4294967266, %v5819
        %v5825 = vadd.s32 %v5824, 127
        %v5826 = vshll.u32 %v5825, 23
        %v5827 = vor.u32 4788187, %v5826
        %v5828 = vand.u32 2147483647, %v5827
        %v5830 = vcvt.s32.f32 %v5823
        %v5831 = vmul.f32 %v5830, %v5828
        %v5832 = vxor.u32 %v5831, 2147483648
        %v5833 = vsel %vm5712, %v5832, %v5831
        %v5834 = vsub.s32 4, %v5810
        %v5835 = vsel %vm5712, %v5834, %v5810
        %v5836 = vsel %vm5711, %v279, %v5833
        %v5837 = vsel %vm5711, 0, %v5835
        %v5838 = vmul.f32 %v5836, %v5836
        %v5839 = vmul.f32 %v5838, -0.001358992
        %v5840 = vadd.f32 %v5839, 0.041655596
        %v5841 = vmul.f32 %v5838, %v5840
        %v5842 = vadd.f32 %v5841, -0.4999988
        %v5843 = vmul.f32 %v5838, %v5842
        %v5844 = vadd.f32 1.0, %v5843
        %v5845 = vmul.f32 %v5836, %v5836
        %v5846 = vmul.f32 %v5845, -0.00019511016
        %v5847 = vadd.f32 %v5846, 0.008332121
        %v5848 = vmul.f32 %v5845, %v5847
        %v5849 = vadd.f32 %v5848, -0.16666654
        %v5850 = vmul.f32 %v5845, %v5849
        %v5851 = vadd.f32 %v5850, 1.0
        %v5852 = vmul.f32 %v5851, %v5836
        %vm5853 = vweird.f32 %v279
        %v5854 = vand.u32 %v5837, 3
        %vm5855 = vcmp.lt.s32.totalorder %v5854, 2
        %vm5856 = vcmp.eq.s32.totalorder %v5854, 0
        %v5857 = vxor.u32 %v5852, 2147483648
        %v5858 = vsel %vm5856, %v5844, %v5857
        %vm5859 = vcmp.eq.s32.totalorder %v5854, 2
        %v5860 = vxor.u32 %v5844, 2147483648
        %v5861 = vsel %vm5859, %v5860, %v5852
        %v5862 = vsel %vm5855, %v5858, %v5861
        %v5863 = vsel %vm5853, nan, %v5862
        %v5864 = vand.u32 2147483647, %v280
        %vm5865 = vcmp.le.f32.partialorder %v5864, 0.7853982
        %vm5866 = vcmp.lt.s32.totalorder %v280, 0
        %v5867 = vand.u32 %v280, 2139095040
        %v5868 = vshrl.u32 %v5867, 23
        %v5869 = vsub.s32 %v5868, 127
        %v5870 = vand.u32 2147483647, %v280
        %v5871 = vand.u32 %v5870, 8388607
        %v5872 = vor.u32 %v5871, 8388608
        %v5873 = vsub.s32 0, %v5872
        %v5874 = vadd.s32 %v5869, 1
        %vm5875 = vcmp.gt.s32.totalorder %v5874, 0
        %v5876 = vsel %vm5875, %v5874, 0
        %v5877 = vshrl.u32 %v5876, 5
        %v5878 = vand.u32 %v5876, 31
        %v5879 = vsub.s32 32, %v5878
        %v5880 = vshrl.u32 683565275, %v5879
        %v5881 = vshll.u32 683565275, %v5878
        %v5882 = vshrl.u32 2475754826, %v5879
        %v5883 = vor.u32 %v5881, %v5882
        %v5884 = vshll.u32 2475754826, %v5878
        %v5885 = vshrl.u32 2131351028, %v5879
        %v5886 = vor.u32 %v5884, %v5885
        %v5887 = vshll.u32 2131351028, %v5878
        %v5888 = vshrl.u32 2102212464, %v5879
        %v5889 = vor.u32 %v5887, %v5888
        %v5890 = vshll.u32 2102212464, %v5878
        %v5891 = vshrl.u32 920167782, %v5879
        %v5892 = vor.u32 %v5890, %v5891
        %v5893 = vshll.u32 920167782, %v5878
        %v5894 = vshrl.u32 1326507024, %v5879
        %v5895 = vor.u32 %v5893, %v5894
        %vm5896 = vcmp.lt.s32.totalorder %v5877, 1
        %vm5897 = vcmp.lt.s32.totalorder %v5877, 2
        %vm5898 = vcmp.lt.s32.totalorder %v5877, 3
        %vm5899 = vcmp.lt.s32.totalorder %v5877, 4
        %v5900 = vsel %vm5896, %v5880, %v5883
        %v5901 = vsel %vm5899, %v5889, 2102212464
        %v5902 = vsel %vm5898, %v5886, %v5901
        %v5903 = vsel %vm5897, %v5900, %v5902
        %v5904 = vsel %vm5896, %v5883, %v5886
        %v5905 = vsel %vm5899, %v5892, 920167782
        %v5906 = vsel %vm5898, %v5889, %v5905
        %v5907 = vsel %vm5897, %v5904, %v5906
        %v5908 = vsel %vm5896, %v5886, %v5889
        %v5909 = vsel %vm5899, %v5895, 1326507024
        %v5910 = vsel %vm5898, %v5892, %v5909
        %v5911 = vsel %vm5897, %v5908, %v5910
        %v5912 = vshll.u32 %v5872, 8
        %v5913 = vand.u32 %v5912, 65535
        %v5914 = vshrl.u32 %v5912, 16
        %v5915 = vand.u32 %v5911, 65535
        %v5916 = vshrl.u32 %v5911, 16
        %v5917 = vmul.u32 %v5913, %v5915
        %v5918 = vmul.u32 %v5913, %v5916
        %v5919 = vmul.u32 %v5914, %v5915
        %v5920 = vmul.u32 %v5914, %v5916
        %v5921 = vshll.u32 %v5918, 16
        %v5922 = vshrl.u32 %v5918, 16
        %v5923 = vshll.u32 %v5919, 16
        %v5924 = vshrl.u32 %v5919, 16
        %vm5925 = vc.u32 %v5917, %v5921
        %v5926 = vsel %vm5925, 1, 0
        %v5927 = vadd.s32 %v5917, %v5921
        %v5928 = vadd.s32 %v5920, %v5926
        %vm5929 = vc.u32 %v5927, %v5923
        %v5930 = vsel %vm5929, 1, 0
        %v5931 = vadd.s32 %v5927, %v5923
        %v5932 = vadd.s32 %v5928, %v5930
        %v5933 = vadd.s32 %v5932, %v5922
        %v5934 = vadd.s32 %v5933, %v5924
        %v5935 = vand.u32 %v5912, 65535
        %v5936 = vshrl.u32 %v5912, 16
        %v5937 = vand.u32 %v5907, 65535
        %v5938 = vshrl.u32 %v5907, 16
        %v5939 = vmul.u32 %v5935, %v5937
        %v5940 = vmul.u32 %v5935, %v5938
        %v5941 = vmul.u32 %v5936, %v5937
        %v5942 = vmul.u32 %v5936, %v5938
        %v5943 = vshll.u32 %v5940, 16
        %v5944 = vshrl.u32 %v5940, 16
        %v5945 = vshll.u32 %v5941, 16
        %v5946 = vshrl.u32 %v5941, 16
        %vm5947 = vc.u32 %v5939, %v5943
        %v5948 = vsel %vm5947, 1, 0
        %v5949 = vadd.s32 %v5939, %v5943
        %v5950 = vadd.s32 %v5942, %v5948
        %vm5951 = vc.u32 %v5949, %v5945
        %v5952 = vsel %vm5951, 1, 0
        %v5953 = vadd.s32 %v5949, %v5945
        %v5954 = vadd.s32 %v5950, %v5952
        %v5955 = vadd.s32 %v5954, %v5944
        %v5956 = vadd.s32 %v5955, %v5946
        %v5957 = vmul.u32 %v5912, %v5903
        %v5958 = vadd.s32 %v5934, %v5953
        %vm5959 = vc.u32 %v5934, %v5953
        %v5960 = vadd.s32 %v5956, 1
        %v5961 = vsel %vm5959, %v5960, %v5956
        %v5962 = vadd.s32 %v5957, %v5961
        %v5963 = vadd.s32 %v5962, 536870912
        %v5964 = vshrl.u32 %v5963, 30
        %v5965 = vshll.u32 %v5964, 30
        %v5966 = vsub.s32 %v5962, %v5965
        %vm5967 = vcmp.lt.s32.totalorder %v5966, 0
        %v5968 = vsub.s32 0, %v5966
        %v5969 = vsel %vm5967, %v5968, %v5966
        %v5970 = vclz %v5969
        %v5971 = vsub.s32 %v5970, 2
        %vm5972 = vcmp.gt.s32.totalorder 0, %v5971
        %v5973 = vsel %vm5972, 0, %v5971
        %v5974 = vsub.s32 32, %v5973
        %v5975 = vshll.u32 %v5966, %v5973
        %v5976 = vshrl.u32 %v5958, %v5974
        %v5977 = vor.u32 %v5975, %v5976
        %v5978 = vsub.s32 4294967266, %v5973
        %v5979 = vadd.s32 %v5978, 127
        %v5980 = vshll.u32 %v5979, 23
        %v5981 = vor.u32 4788187, %v5980
        %v5982 = vand.u32 2147483647, %v5981
        %v5984 = vcvt.s32.f32 %v5977
        %v5985 = vmul.f32 %v5984, %v5982
        %v5986 = vxor.u32 %v5985, 2147483648
        %v5987 = vsel %vm5866, %v5986, %v5985
        %v5988 = vsub.s32 4, %v5964
        %v5989 = vsel %vm5866, %v5988, %v5964
        %v5990 = vsel %vm5865, %v280, %v5987
        %v5991 = vsel %vm5865, 0, %v5989
        %v5992 = vmul.f32 %v5990, %v5990
        %v5993 = vmul.f32 %v5992, -0.001358992
        %v5994 = vadd.f32 %v5993, 0.041655596
        %v5995 = vmul.f32 %v5992, %v5994
        %v5996 = vadd.f32 %v5995, -0.4999988
        %v5997 = vmul.f32 %v5992, %v5996
        %v5998 = vadd.f32 1.0, %v5997
        %v5999 = vmul.f32 %v5990, %v5990
        %v6000 = vmul.f32 %v5999, -0.00019511016
        %v6001 = vadd.f32 %v6000, 0.008332121
        %v6002 = vmul.f32 %v5999, %v6001
        %v6003 = vadd.f32 %v6002, -0.16666654
        %v6004 = vmul.f32 %v5999, %v6003
        %v6005 = vadd.f32 %v6004, 1.0
        %v6006 = vmul.f32 %v6005, %v5990
        %vm6007 = vweird.f32 %v280
        %v6008 = vand.u32 %v5991, 3
        %vm6009 = vcmp.lt.s32.totalorder %v6008, 2
        %vm6010 = vcmp.eq.s32.totalorder %v6008, 0
        %v6011 = vxor.u32 %v6006, 2147483648
        %v6012 = vsel %vm6010, %v5998, %v6011
        %vm6013 = vcmp.eq.s32.totalorder %v6008, 2
        %v6014 = vxor.u32 %v5998, 2147483648
        %v6015 = vsel %vm6013, %v6014, %v6006
        %v6016 = vsel %vm6009, %v6012, %v6015
        %v6017 = vsel %vm6007, nan, %v6016
        %v6018 = vand.u32 2147483647, %v281
        %vm6019 = vcmp.le.f32.partialorder %v6018, 0.7853982
        %vm6020 = vcmp.lt.s32.totalorder %v281, 0
        %v6021 = vand.u32 %v281, 2139095040
        %v6022 = vshrl.u32 %v6021, 23
        %v6023 = vsub.s32 %v6022, 127
        %v6024 = vand.u32 2147483647, %v281
        %v6025 = vand.u32 %v6024, 8388607
        %v6026 = vor.u32 %v6025, 8388608
        %v6027 = vsub.s32 0, %v6026
        %v6028 = vadd.s32 %v6023, 1
        %vm6029 = vcmp.gt.s32.totalorder %v6028, 0
        %v6030 = vsel %vm6029, %v6028, 0
        %v6031 = vshrl.u32 %v6030, 5
        %v6032 = vand.u32 %v6030, 31
        %v6033 = vsub.s32 32, %v6032
        %v6034 = vshrl.u32 683565275, %v6033
        %v6035 = vshll.u32 683565275, %v6032
        %v6036 = vshrl.u32 2475754826, %v6033
        %v6037 = vor.u32 %v6035, %v6036
        %v6038 = vshll.u32 2475754826, %v6032
        %v6039 = vshrl.u32 2131351028, %v6033
        %v6040 = vor.u32 %v6038, %v6039
        %v6041 = vshll.u32 2131351028, %v6032
        %v6042 = vshrl.u32 2102212464, %v6033
        %v6043 = vor.u32 %v6041, %v6042
        %v6044 = vshll.u32 2102212464, %v6032
        %v6045 = vshrl.u32 920167782, %v6033
        %v6046 = vor.u32 %v6044, %v6045
        %v6047 = vshll.u32 920167782, %v6032
        %v6048 = vshrl.u32 1326507024, %v6033
        %v6049 = vor.u32 %v6047, %v6048
        %vm6050 = vcmp.lt.s32.totalorder %v6031, 1
        %vm6051 = vcmp.lt.s32.totalorder %v6031, 2
        %vm6052 = vcmp.lt.s32.totalorder %v6031, 3
        %vm6053 = vcmp.lt.s32.totalorder %v6031, 4
        %v6054 = vsel %vm6050, %v6034, %v6037
        %v6055 = vsel %vm6053, %v6043, 2102212464
        %v6056 = vsel %vm6052, %v6040, %v6055
        %v6057 = vsel %vm6051, %v6054, %v6056
        %v6058 = vsel %vm6050, %v6037, %v6040
        %v6059 = vsel %vm6053, %v6046, 920167782
        %v6060 = vsel %vm6052, %v6043, %v6059
        %v6061 = vsel %vm6051, %v6058, %v6060
        %v6062 = vsel %vm6050, %v6040, %v6043
        %v6063 = vsel %vm6053, %v6049, 1326507024
        %v6064 = vsel %vm6052, %v6046, %v6063
        %v6065 = vsel %vm6051, %v6062, %v6064
        %v6066 = vshll.u32 %v6026, 8
        %v6067 = vand.u32 %v6066, 65535
        %v6068 = vshrl.u32 %v6066, 16
        %v6069 = vand.u32 %v6065, 65535
        %v6070 = vshrl.u32 %v6065, 16
        %v6071 = vmul.u32 %v6067, %v6069
        %v6072 = vmul.u32 %v6067, %v6070
        %v6073 = vmul.u32 %v6068, %v6069
        %v6074 = vmul.u32 %v6068, %v6070
        %v6075 = vshll.u32 %v6072, 16
        %v6076 = vshrl.u32 %v6072, 16
        %v6077 = vshll.u32 %v6073, 16
        %v6078 = vshrl.u32 %v6073, 16
        %vm6079 = vc.u32 %v6071, %v6075
        %v6080 = vsel %vm6079, 1, 0
        %v6081 = vadd.s32 %v6071, %v6075
        %v6082 = vadd.s32 %v6074, %v6080
        %vm6083 = vc.u32 %v6081, %v6077
        %v6084 = vsel %vm6083, 1, 0
        %v6085 = vadd.s32 %v6081, %v6077
        %v6086 = vadd.s32 %v6082, %v6084
        %v6087 = vadd.s32 %v6086, %v6076
        %v6088 = vadd.s32 %v6087, %v6078
        %v6089 = vand.u32 %v6066, 65535
        %v6090 = vshrl.u32 %v6066, 16
        %v6091 = vand.u32 %v6061, 65535
        %v6092 = vshrl.u32 %v6061, 16
        %v6093 = vmul.u32 %v6089, %v6091
        %v6094 = vmul.u32 %v6089, %v6092
        %v6095 = vmul.u32 %v6090, %v6091
        %v6096 = vmul.u32 %v6090, %v6092
        %v6097 = vshll.u32 %v6094, 16
        %v6098 = vshrl.u32 %v6094, 16
        %v6099 = vshll.u32 %v6095, 16
        %v6100 = vshrl.u32 %v6095, 16
        %vm6101 = vc.u32 %v6093, %v6097
        %v6102 = vsel %vm6101, 1, 0
        %v6103 = vadd.s32 %v6093, %v6097
        %v6104 = vadd.s32 %v6096, %v6102
        %vm6105 = vc.u32 %v6103, %v6099
        %v6106 = vsel %vm6105, 1, 0
        %v6107 = vadd.s32 %v6103, %v6099
        %v6108 = vadd.s32 %v6104, %v6106
        %v6109 = vadd.s32 %v6108, %v6098
        %v6110 = vadd.s32 %v6109, %v6100
        %v6111 = vmul.u32 %v6066, %v6057
        %v6112 = vadd.s32 %v6088, %v6107
        %vm6113 = vc.u32 %v6088, %v6107
        %v6114 = vadd.s32 %v6110, 1
        %v6115 = vsel %vm6113, %v6114, %v6110
        %v6116 = vadd.s32 %v6111, %v6115
        %v6117 = vadd.s32 %v6116, 536870912
        %v6118 = vshrl.u32 %v6117, 30
        %v6119 = vshll.u32 %v6118, 30
        %v6120 = vsub.s32 %v6116, %v6119
        %vm6121 = vcmp.lt.s32.totalorder %v6120, 0
        %v6122 = vsub.s32 0, %v6120
        %v6123 = vsel %vm6121, %v6122, %v6120
        %v6124 = vclz %v6123
        %v6125 = vsub.s32 %v6124, 2
        %vm6126 = vcmp.gt.s32.totalorder 0, %v6125
        %v6127 = vsel %vm6126, 0, %v6125
        %v6128 = vsub.s32 32, %v6127
        %v6129 = vshll.u32 %v6120, %v6127
        %v6130 = vshrl.u32 %v6112, %v6128
        %v6131 = vor.u32 %v6129, %v6130
        %v6132 = vsub.s32 4294967266, %v6127
        %v6133 = vadd.s32 %v6132, 127
        %v6134 = vshll.u32 %v6133, 23
        %v6135 = vor.u32 4788187, %v6134
        %v6136 = vand.u32 2147483647, %v6135
        %v6138 = vcvt.s32.f32 %v6131
        %v6139 = vmul.f32 %v6138, %v6136
        %v6140 = vxor.u32 %v6139, 2147483648
        %v6141 = vsel %vm6020, %v6140, %v6139
        %v6142 = vsub.s32 4, %v6118
        %v6143 = vsel %vm6020, %v6142, %v6118
        %v6144 = vsel %vm6019, %v281, %v6141
        %v6145 = vsel %vm6019, 0, %v6143
        %v6146 = vmul.f32 %v6144, %v6144
        %v6147 = vmul.f32 %v6146, -0.001358992
        %v6148 = vadd.f32 %v6147, 0.041655596
        %v6149 = vmul.f32 %v6146, %v6148
        %v6150 = vadd.f32 %v6149, -0.4999988
        %v6151 = vmul.f32 %v6146, %v6150
        %v6152 = vadd.f32 1.0, %v6151
        %v6153 = vmul.f32 %v6144, %v6144
        %v6154 = vmul.f32 %v6153, -0.00019511016
        %v6155 = vadd.f32 %v6154, 0.008332121
        %v6156 = vmul.f32 %v6153, %v6155
        %v6157 = vadd.f32 %v6156, -0.16666654
        %v6158 = vmul.f32 %v6153, %v6157
        %v6159 = vadd.f32 %v6158, 1.0
        %v6160 = vmul.f32 %v6159, %v6144
        %vm6161 = vweird.f32 %v281
        %v6162 = vand.u32 %v6145, 3
        %vm6163 = vcmp.lt.s32.totalorder %v6162, 2
        %vm6164 = vcmp.eq.s32.totalorder %v6162, 0
        %v6165 = vxor.u32 %v6160, 2147483648
        %v6166 = vsel %vm6164, %v6152, %v6165
        %vm6167 = vcmp.eq.s32.totalorder %v6162, 2
        %v6168 = vxor.u32 %v6152, 2147483648
        %v6169 = vsel %vm6167, %v6168, %v6160
        %v6170 = vsel %vm6163, %v6166, %v6169
        %v6171 = vsel %vm6161, nan, %v6170
        %6172 = vst [vmem:[%s137 + $0x8] sm:$0xff] %v3399
        %6173 = vst [vmem:[%s137 + $0x18] sm:$0xff] %v3553
        %6174 = vst [vmem:[%s137 + $0x28] sm:$0xff] %v3707
        %6175 = vst [vmem:[%s137 + $0x38] sm:$0xff] %v3861
        %6176 = vst [vmem:[%s137 + $0x48] sm:$0xff] %v4015
        %6177 = vst [vmem:[%s137 + $0x58] sm:$0xff] %v4169
        %6178 = vst [vmem:[%s137 + $0x68] sm:$0xff] %v4323
        %6179 = vst [vmem:[%s137 + $0x78] sm:$0xff] %v4477
        %6180 = vst [vmem:[%s137 + $0x88] sm:$0xff] %v4631
        %6181 = vst [vmem:[%s137 + $0x98] sm:$0xff] %v4785
        %6182 = vst [vmem:[%s137 + $0xa8] sm:$0xff] %v4939
        %6183 = vst [vmem:[%s137 + $0xb8] sm:$0xff] %v5093
        %6184 = vst [vmem:[%s137 + $0xc8] sm:$0xff] %v5247
        %6185 = vst [vmem:[%s137 + $0xd8] sm:$0xff] %v5401
        %6186 = vst [vmem:[%s137 + $0xe8] sm:$0xff] %v5555
        %6187 = vst [vmem:[%s137 + $0xf8] sm:$0xff] %v5709
        %6188 = vst [vmem:[%s137 + $0x108] sm:$0xff] %v5863
        %6189 = vst [vmem:[%s137 + $0x118] sm:$0xff] %v6017
        %6190 = vst [vmem:[%s137 + $0x128] sm:$0xff] %v6171
        %s6191 = sand.u32 %s71, 1
        %s6192 = scalar_lea.sflag [#allocation3], %s6191
        %s6193 = sand.u32 %s71, 1
        %s6194 = smul.addr %s6193, 304
        %s6195 = scalar_lea.vmem [#allocation2], %s6194
        // Predicated region
        $region29: #{tpu_custom_call.1} parent=27 // pred_check
          %p6196 = pneg %p81
        $region30: #{tpu_custom_call.1} parent=27 // pred_check_branch
          %6198 = sbr.rel (%p6196) target = $region32
        $region31: #{tpu_custom_call.1} parent=27 // pred_region
          %s6199 = smul.u32 19, %s16
          %6201 = vsyncadd %s6192, 0
          %s6202 = smul.addr %s6199, 2
          %s6203 = smul.addr %s6202, 8
          %s6204 = scalar_lea.hbm %s2, %s6203
          %s6205 = sshll.u32 %s6195, 4
          %s6206 = int_to_ptr.vmem [resolvable:$true] %s6205
          %s6207 = sshll.u32 %s6204, 4
          %s6208 = int_to_ptr.hbm [resolvable:$true] %s6207
          %6213 = dma.vmem_to_hbm [thread:$0]  %s6206, 4864, %s6208, %s6192, 256, 256, 16
        $region32: #{tpu_custom_call.1} parent=27 // pred_fallthru
          _
      $region28: #{tpu_custom_call.1} parent=5 // pred_fallthru
        _
      %p6214 = scmp.le.s32.totalorder 2, %s11
      // Predicated region
      $region33: #{tpu_custom_call.1} parent=5 // pred_check
        %p6215 = pneg %p6214
      $region34: #{tpu_custom_call.1} parent=5 // pred_check_branch
        %6217 = sbr.rel (%p6215) target = $region36
      $region35: #{tpu_custom_call.1} parent=5 // pred_region
        %s6218 = ssub.s32 %s11, 2
        // Predicated region
        $region37: #{tpu_custom_call.1} parent=35 // pred_check
          %p6219 = pneg %p87
        $region38: #{tpu_custom_call.1} parent=35 // pred_check_branch
          %6221 = sbr.rel (%p6219) target = $region40
        $region39: #{tpu_custom_call.1} parent=35 // pred_region
          %s6222 = sand.u32 %s72, 1
          %s6223 = scalar_lea.sflag [#allocation3], %s6222
          %s6224 = sand.u32 %s72, 1
          %s6225 = smul.addr %s6224, 304
          %s6226 = scalar_lea.vmem [#allocation2], %s6225
          %6228 = dma.done %s6223, 4864
        $region40: #{tpu_custom_call.1} parent=35 // pred_fallthru
          _
      $region36: #{tpu_custom_call.1} parent=5 // pred_fallthru
        _
    $region6: #{tpu_custom_call.1} parent=1 // loop_footer
      %s15 = sadd.s32 1, %s11
    $region7: #{tpu_custom_call.1} parent=1 // loop_footer_branch
      %10 = sbr.rel target = $region3
    $region8: #{tpu_custom_call.1} parent=1 // loop_exit
      _
    %6229 = vsyncpa [#allocation3], 1
    %s6230 = scalar_lea.sflag [#allocation3], 1
    %6231 = vsyncpa %s6230, 1

</llo_original>
